<compile_context>
chip_gen: v5e
topology: v5e:2x2
jax: 0.10.0
libtpu: 0.0.40
codegen_flags: <defaults>
</compile_context>

<pallas_src>
import math

import jax
import jax.numpy as jnp
from jax import lax
from jax.experimental import pallas as pl
from jax.experimental.pallas import tpu as pltpu

_EPS = 1e-15
_BALL_EPS = 4e-3                      # f32 boundary epsilon (as in hgcn PoincareBall.proj)
_ATANH_CLAMP = 1.0 - 1e-7
_ART_MAX = math.atanh(1.0 - _BALL_EPS)   # tangent-space norm equivalent of the boundary proj
FD_R = 2.0                            # Fermi-Dirac decoder radius
FD_T = 1.0                            # Fermi-Dirac decoder temperature


# ---------------------------------------------------------------------------
# Poincare-ball helpers (pure jnp; usable both inside kernels and host-side,
# except _mobius_add which uses pl.reciprocal and is kernel-only)
# ---------------------------------------------------------------------------
def _artanh(x):
    x = jnp.clip(x, -_ATANH_CLAMP, _ATANH_CLAMP)
    return 0.5 * jnp.log((1.0 + x) / (1.0 - x))


def _norm(x, axis=-1):
    return jnp.sqrt(jnp.maximum(jnp.sum(x * x, axis=axis, keepdims=True), _EPS))


def _proj(x, c, axis=-1):
    norm = _norm(x, axis)
    maxnorm = (1.0 - _BALL_EPS) / jnp.sqrt(c)
    return x * jnp.minimum(1.0, maxnorm / norm)


def _mobius_add(x, y, c, axis=-1):
    # kernel-only (uses pl.reciprocal)
    x2 = jnp.sum(x * x, axis=axis, keepdims=True)
    y2 = jnp.sum(y * y, axis=axis, keepdims=True)
    xy = jnp.sum(x * y, axis=axis, keepdims=True)
    num = (1.0 + 2.0 * c * xy + c * y2) * x + (1.0 - c * x2) * y
    den = 1.0 + 2.0 * c * xy + c * c * x2 * y2
    return num * pl.reciprocal(jnp.maximum(den, _EPS), approx=True)


def _hyp_bias(b, c):
    """proj(expmap0(b, c), c) -- parameter-only, hoisted out of the kernel (host-side jnp)."""
    b = b.reshape(1, -1).astype(jnp.float32)
    sqrt_c = jnp.sqrt(c)                          # c: (1, 1)
    n = _norm(b)
    hb = jnp.tanh(sqrt_c * n) * b / (sqrt_c * n)
    return _proj(hb, c)


# ---------------------------------------------------------------------------
# Fused HGAT layer kernel: HypLinear + GAT aggregation + hyperbolic ReLU
# ---------------------------------------------------------------------------
def _hgat_layer_kernel(xk_ref, xq_ref, wT_ref, hb_ref, asrc_ref, adst_ref, adj_ref,
                       cin_ref, cout_ref, o_ref):
    c_in = cin_ref[0, 0]
    c_out = cout_ref[0, 0]
    sqrt_cin = jnp.sqrt(c_in)
    sqrt_cout = jnp.sqrt(c_out)
    wT = wT_ref[...]                   # (d_in, d_out) bf16, cast once in the wrapper
    hyp_b = hb_ref[...]                # (1, d_out) f32, already hyperbolized

    def hyp_linear_tangent(x):
        """mobius_matvec(W, x) (+ mobius bias), projected, then logmap0 -> tangent space."""
        x_norm = _norm(x)
        mx = jnp.dot(x.astype(jnp.bfloat16), wT, preferred_element_type=jnp.float32)
        mx_sq = jnp.sum(mx * mx, axis=-1, keepdims=True)
        mx_norm = jnp.sqrt(jnp.maximum(mx_sq, _EPS))
        ratio = mx_norm * pl.reciprocal(x_norm, approx=True)
        res = (jnp.tanh(ratio * _artanh(sqrt_cin * x_norm)) * mx
               * pl.reciprocal(mx_norm * sqrt_cin, approx=True))
        res = jnp.where(mx_sq <= _EPS, jnp.zeros_like(res), res)   # zero-input-row guard
        h = _proj(_mobius_add(_proj(res, c_in), hyp_b, c_in), c_in)
        h_norm = _norm(h)
        return _artanh(sqrt_cin * h_norm) * h * pl.reciprocal(h_norm * sqrt_cin, approx=True)

    t_k = hyp_linear_tangent(xk_ref[...])        # (N,  d_out) keys (all nodes)
    t_q = hyp_linear_tangent(xq_ref[...])        # (tq, d_out) queries (this row block)

    # GAT logits e_ij = leakyrelu(a_src . t_i + a_dst . t_j), masked by adjacency
    s_src = jnp.sum(t_q * asrc_ref[...], axis=-1, keepdims=True)            # (tq, 1)
    s_dst = lax.dot_general(adst_ref[...], t_k, (((1,), (1,)), ((), ())),
                            preferred_element_type=jnp.float32)             # (1, N)
    e = s_src + s_dst                                                       # (tq, N)
    e = jnp.where(e > 0.0, e, 0.2 * e)                                      # LeakyReLU(0.2)
    mask = adj_ref[...] > 0.0
    e = jnp.where(mask, e, -1e9)
    e = e - jnp.max(e, axis=-1, keepdims=True)
    p = jnp.where(mask, jnp.exp(e), 0.0)
    denom = jnp.maximum(jnp.sum(p, axis=-1, keepdims=True), _EPS)
    att = p * pl.reciprocal(denom, approx=True)                             # row softmax
    agg = jnp.dot(att.astype(jnp.bfloat16), t_k.astype(jnp.bfloat16),
                  preferred_element_type=jnp.float32)                       # (tq, d_out) MXU

    # hyperbolic ReLU activation, c_in -> c_out.
    # relu(logmap0(proj(expmap0(agg, c_in)), c_in)) == relu(clamp_norm(agg, artanh(1-eps)/sqrt(c_in)))
    t_max = _ART_MAX / sqrt_cin
    agg_norm = _norm(agg)
    xt = jnp.maximum(agg * jnp.minimum(1.0, t_max / agg_norm), 0.0)
    xt_norm = _norm(xt)
    h_out = jnp.tanh(sqrt_cout * xt_norm) * xt * pl.reciprocal(sqrt_cout * xt_norm, approx=True)
    o_ref[...] = _proj(h_out, c_out)


def hgat_layer(x, w, b_hyp, a_src, a_dst, adj, c_in, c_out, *, block_q=8):
    """One HGAT layer. x: (N, d_in) hyperbolic points, w: (d_out, d_in), adj: (N, N) dense."""
    n, d_in = x.shape
    d_out = w.shape[0]
    if block_q is not None and block_q % 8 == 0 and n % block_q == 0 and block_q < n:
        tq = block_q
    else:
        tq = n
    grid = (n // tq,)
    wT = w.T.astype(jnp.bfloat16)                     # cast once; MXU native input is bf16
    smem_spec = pl.BlockSpec(memory_space=pltpu.MemorySpace.SMEM)
    return pl.pallas_call(
        _hgat_layer_kernel,
        grid=grid,
        in_specs=[
            pl.BlockSpec((n, d_in), lambda i: (0, 0)),     # x for keys (resident across steps)
            pl.BlockSpec((tq, d_in), lambda i: (i, 0)),    # x query-row block
            pl.BlockSpec((d_in, d_out), lambda i: (0, 0)), # W^T (bf16)
            pl.BlockSpec((1, d_out), lambda i: (0, 0)),    # hyperbolized bias
            pl.BlockSpec((1, d_out), lambda i: (0, 0)),    # a_src
            pl.BlockSpec((1, d_out), lambda i: (0, 0)),    # a_dst
            pl.BlockSpec((tq, n), lambda i: (i, 0)),       # adjacency row block
            smem_spec,                                     # c_in  (scalar, SMEM)
            smem_spec,                                     # c_out (scalar, SMEM)
        ],
        out_specs=pl.BlockSpec((tq, d_out), lambda i: (i, 0)),
        out_shape=jax.ShapeDtypeStruct((n, d_out), jnp.float32),
        compiler_params=pltpu.CompilerParams(
            dimension_semantics=("parallel",),             # v7x: shard row blocks over 2 TCs
            vmem_limit_bytes=64 * 1024 * 1024,
        ),
    )(x, x, wT, b_hyp, a_src, a_dst, adj, c_in, c_out)


# ---------------------------------------------------------------------------
# Fermi-Dirac decoder kernel (lane-dense (1, B) output)
# ---------------------------------------------------------------------------
def _fermi_dirac_kernel(uT_ref, iT_ref, c_ref, o_ref):
    """probs = 1 / (exp((sqdist(u, i) - r) / t) + 1), inputs transposed to (d, B)."""
    c = c_ref[0, 0]
    sqrt_c = jnp.sqrt(c)
    u = _proj(uT_ref[...], c, axis=0)
    it = _proj(iT_ref[...], c, axis=0)
    ma = _mobius_add(-u, it, c, axis=0)                                     # (d, B)
    dist = (2.0 / sqrt_c) * _artanh(sqrt_c * _norm(ma, axis=0))             # (1, B)
    sqd = dist * dist
    z = (sqd - FD_R) / FD_T
    # overflow-safe sigmoid(-z), clipped to [0, 1] (approx reciprocal has ~2^-12 rel. error)
    ez = jnp.exp(-jnp.abs(z))
    inv = pl.reciprocal(1.0 + ez, approx=True)
    prob = jnp.where(z >= 0.0, ez * inv, inv)
    o_ref[...] = jnp.clip(prob, 0.0, 1.0)


def fermi_dirac(u_emb, i_emb, c):
    b, d = u_emb.shape
    smem_spec = pl.BlockSpec(memory_space=pltpu.MemorySpace.SMEM)
    out = pl.pallas_call(
        _fermi_dirac_kernel,
        grid=(1,),
        in_specs=[pl.BlockSpec((d, b), lambda i: (0, 0)),
                  pl.BlockSpec((d, b), lambda i: (0, 0)),
                  smem_spec],
        out_specs=pl.BlockSpec((1, b), lambda i: (0, 0)),   # lane-dense store
        out_shape=jax.ShapeDtypeStruct((1, b), jnp.float32),
    )(u_emb.T, i_emb.T, c)
    return out.reshape(b, 1)


# ---------------------------------------------------------------------------
# Full model forward (glue: embedding gathers, readout gather, bias hoist)
# ---------------------------------------------------------------------------
@jax.jit
def hgat_model_forward(params, u_idx, graph_x, adj, item_sel):
    # u_embedding = self.user_embedding(u); i_embedding = self.item_embedding(graph.x)
    u_emb = jnp.take(params["user_emb"], u_idx, axis=0)        # (B, dim)     gather glue
    x = jnp.take(params["item_emb"], graph_x, axis=0)          # (N, hidden1) gather glue
    c_in, c_out = params["c_in"], params["c_out"]
    hb1 = _hyp_bias(params["b1"], c_in)                        # graph-invariant, hoisted
    hb2 = _hyp_bias(params["b2"], c_in)
    # conv1 = HGAT(hidden1 -> hidden2), conv2 = HGAT(hidden2 -> dim)  (one fused kernel each)
    h = hgat_layer(x, params["w1"], hb1, params["a1_src"], params["a1_dst"], adj, c_in, c_out)
    h = hgat_layer(h, params["w2"], hb2, params["a2_src"], params["a2_dst"], adj, c_in, c_out)
    # i_embedding = squeeze(matmul(i, i_embedding)) -- i is one-hot => row gather
    i_emb = jnp.take(h, item_sel, axis=0)                      # (B, dim)
    # u_i = cat((u_embedding, i_embedding), 1); out = fc1(u_i)  (decoder splits it back)
    return fermi_dirac(u_emb, i_emb, c_out)                    # (B, 1)


def edge_index_to_adj(edge_index, n):
    src, dst = edge_index[0], edge_index[1]
    adj = jnp.zeros((n, n), jnp.float32).at[dst, src].set(1.0)
    return jnp.maximum(adj, jnp.eye(n, dtype=jnp.float32))     # add self loops


if __name__ == "__main__":
    dim, hidden_1, hidden_2 = 16, 32, 32
    u_nodes, i_nodes, batch, n_edges = 8, 16, 4, 32

    key = jax.random.PRNGKey(0)
    ks = jax.random.split(key, 12)

    params = {
        "user_emb": 0.1 * jax.random.normal(ks[0], (u_nodes, dim), jnp.float32),
        "item_emb": 0.1 * jax.random.normal(ks[1], (i_nodes, hidden_1), jnp.float32),
        "w1": 0.1 * jax.random.normal(ks[2], (hidden_2, hidden_1), jnp.float32),
        "b1": jnp.zeros((hidden_2,), jnp.float32),
        "a1_src": 0.1 * jax.random.normal(ks[3], (1, hidden_2), jnp.float32),
        "a1_dst": 0.1 * jax.random.normal(ks[4], (1, hidden_2), jnp.float32),
        "w2": 0.1 * jax.random.normal(ks[5], (dim, hidden_2), jnp.float32),
        "b2": jnp.zeros((dim,), jnp.float32),
        "a2_src": 0.1 * jax.random.normal(ks[6], (1, dim), jnp.float32),
        "a2_dst": 0.1 * jax.random.normal(ks[7], (1, dim), jnp.float32),
        "c_in": jnp.ones((1, 1), jnp.float32),
        "c_out": jnp.ones((1, 1), jnp.float32),
    }

    u_idx = jax.random.randint(ks[8], (batch,), 0, u_nodes)
    graph_x = jnp.arange(i_nodes, dtype=jnp.int32)
    src = jax.random.randint(ks[9], (n_edges,), 0, i_nodes)
    dst = jax.random.randint(ks[10], (n_edges,), 0, i_nodes)
    edge_index = jnp.stack([src, dst])                          # (2, E)
    adj = edge_index_to_adj(edge_index, i_nodes)
    item_sel = jax.random.randint(ks[11], (batch,), 0, i_nodes)

    out = hgat_model_forward(params, u_idx, graph_x, adj, item_sel)
    out = jax.block_until_ready(out)
    assert out.shape == (batch, 1), out.shape
    assert bool(jnp.all(jnp.isfinite(out)))
    assert bool(jnp.all((out >= 0.0) & (out <= 1.0)))
    print("KERNEL_OK")
</pallas_src>

<mosaic_0001>
module attributes {stable_mosaic.version = 11 : i64} {
  func.func @_hgat_layer_kernel(%arg0: i32, %arg1: memref<16x32xf32, #tpu.memory_space<vmem>>, %arg2: memref<8x32xf32, #tpu.memory_space<vmem>>, %arg3: memref<32x32xbf16, #tpu.memory_space<vmem>>, %arg4: memref<1x32xf32, #tpu.memory_space<vmem>>, %arg5: memref<1x32xf32, #tpu.memory_space<vmem>>, %arg6: memref<1x32xf32, #tpu.memory_space<vmem>>, %arg7: memref<8x16xf32, #tpu.memory_space<vmem>>, %arg8: memref<1x1xf32, #tpu.memory_space<smem>>, %arg9: memref<1x1xf32, #tpu.memory_space<smem>>, %arg10: memref<8x32xf32, #tpu.memory_space<vmem>>) attributes {dimension_semantics = [#tpu.dimension_semantics<parallel>], iteration_bounds = array<i64: 2>, scalar_prefetch = 0 : i64, scratch_operands = 0 : i64, tpu.core_type = #tpu.core_type<tc>, window_params = [{pipeline_mode = #tpu.pipeline_mode<synchronous>, transform_indices = @transform_0, window_bounds = array<i64: 16, 32>}, {transform_indices = @transform_1, window_bounds = array<i64: 8, 32>}, {pipeline_mode = #tpu.pipeline_mode<synchronous>, transform_indices = @transform_2, window_bounds = array<i64: 32, 32>}, {pipeline_mode = #tpu.pipeline_mode<synchronous>, transform_indices = @transform_3, window_bounds = array<i64: 1, 32>}, {pipeline_mode = #tpu.pipeline_mode<synchronous>, transform_indices = @transform_4, window_bounds = array<i64: 1, 32>}, {pipeline_mode = #tpu.pipeline_mode<synchronous>, transform_indices = @transform_5, window_bounds = array<i64: 1, 32>}, {transform_indices = @transform_6, window_bounds = array<i64: 8, 16>}, {transform_indices = @transform_7, window_bounds = array<i64: 1, 1>}, {transform_indices = @transform_8, window_bounds = array<i64: 1, 1>}, {transform_indices = @transform_9, window_bounds = array<i64: 8, 32>}]} {
    %c0 = arith.constant 0 : index
    %c0_0 = arith.constant 0 : index
    %0 = memref.load %arg8[%c0, %c0_0] : memref<1x1xf32, #tpu.memory_space<smem>>
    %c0_1 = arith.constant 0 : index
    %c0_2 = arith.constant 0 : index
    %1 = memref.load %arg9[%c0_1, %c0_2] : memref<1x1xf32, #tpu.memory_space<smem>>
    %2 = math.sqrt %0 : f32
    %3 = math.sqrt %1 : f32
    %c0_3 = arith.constant 0 : index
    %c0_4 = arith.constant 0 : index
    %4 = vector.load %arg3[%c0_3, %c0_4] : memref<32x32xbf16, #tpu.memory_space<vmem>>, vector<32x32xbf16>
    %c0_5 = arith.constant 0 : index
    %c0_6 = arith.constant 0 : index
    %5 = vector.load %arg4[%c0_5, %c0_6] : memref<1x32xf32, #tpu.memory_space<vmem>>, vector<1x32xf32>
    %c0_7 = arith.constant 0 : index
    %c0_8 = arith.constant 0 : index
    %6 = vector.load %arg1[%c0_7, %c0_8] : memref<16x32xf32, #tpu.memory_space<vmem>>, vector<16x32xf32>
    %7 = arith.mulf %6, %6 : vector<16x32xf32>
    %cst = arith.constant dense<0.000000e+00> : vector<16xf32>
    %8 = vector.multi_reduction <add>, %7, %cst [1] : vector<16x32xf32> to vector<16xf32>
    %9 = vector.shape_cast %8 : vector<16xf32> to vector<16x1xf32>
    %cst_9 = arith.constant 1.000000e-15 : f32
    %10 = vector.broadcast %cst_9 : f32 to vector<16x1xf32>
    %11 = arith.maximumf %9, %10 : vector<16x1xf32>
    %12 = math.sqrt %11 : vector<16x1xf32>
    %13 = arith.truncf %6 : vector<16x32xf32> to vector<16x32xbf16>
    %cst_10 = arith.constant dense<0.000000e+00> : vector<16x32xf32>
    %14 = tpu.matmul %13, %4, %cst_10 {dimension_numbers = #tpu.dot_dimension_numbers<[1], [0], [0], [1], [0, 0, 1, 1], [], []>} : vector<16x32xbf16>, vector<32x32xbf16>, vector<16x32xf32> -> vector<16x32xf32>
    %15 = arith.mulf %14, %14 : vector<16x32xf32>
    %cst_11 = arith.constant dense<0.000000e+00> : vector<16xf32>
    %16 = vector.multi_reduction <add>, %15, %cst_11 [1] : vector<16x32xf32> to vector<16xf32>
    %17 = vector.shape_cast %16 : vector<16xf32> to vector<16x1xf32>
    %cst_12 = arith.constant 1.000000e-15 : f32
    %18 = vector.broadcast %cst_12 : f32 to vector<16x1xf32>
    %19 = arith.maximumf %17, %18 : vector<16x1xf32>
    %20 = math.sqrt %19 : vector<16x1xf32>
    %21 = tpu.reciprocal %12 {approx = true} : vector<16x1xf32> -> vector<16x1xf32>
    %22 = arith.mulf %20, %21 : vector<16x1xf32>
    %23 = vector.broadcast %2 : f32 to vector<16x1xf32>
    %24 = arith.mulf %23, %12 : vector<16x1xf32>
    %cst_13 = arith.constant -0.99999988 : f32
    %cst_14 = arith.constant 0.99999988 : f32
    %25 = vector.broadcast %cst_13 : f32 to vector<16x1xf32>
    %26 = arith.maximumf %25, %24 : vector<16x1xf32>
    %27 = vector.broadcast %cst_14 : f32 to vector<16x1xf32>
    %28 = arith.minimumf %27, %26 : vector<16x1xf32>
    %cst_15 = arith.constant 1.000000e+00 : f32
    %29 = vector.broadcast %cst_15 : f32 to vector<16x1xf32>
    %30 = arith.addf %29, %28 : vector<16x1xf32>
    %cst_16 = arith.constant 1.000000e+00 : f32
    %31 = vector.broadcast %cst_16 : f32 to vector<16x1xf32>
    %32 = arith.subf %31, %28 : vector<16x1xf32>
    %33 = arith.divf %30, %32 : vector<16x1xf32>
    %34 = math.log %33 : vector<16x1xf32>
    %cst_17 = arith.constant 5.000000e-01 : f32
    %35 = vector.broadcast %cst_17 : f32 to vector<16x1xf32>
    %36 = arith.mulf %35, %34 : vector<16x1xf32>
    %37 = arith.mulf %22, %36 : vector<16x1xf32>
    %38 = math.tanh %37 : vector<16x1xf32>
    %39 = vector.broadcast %38 : vector<16x1xf32> to vector<16x32xf32>
    %40 = arith.mulf %39, %14 : vector<16x32xf32>
    %41 = vector.broadcast %2 : f32 to vector<16x1xf32>
    %42 = arith.mulf %20, %41 : vector<16x1xf32>
    %43 = tpu.reciprocal %42 {approx = true} : vector<16x1xf32> -> vector<16x1xf32>
    %44 = vector.broadcast %43 : vector<16x1xf32> to vector<16x32xf32>
    %45 = arith.mulf %40, %44 : vector<16x32xf32>
    %cst_18 = arith.constant 1.000000e-15 : f32
    %46 = vector.broadcast %cst_18 : f32 to vector<16x1xf32>
    %47 = arith.cmpf ole, %17, %46 : vector<16x1xf32>
    %cst_19 = arith.constant 0.000000e+00 : f32
    %48 = vector.broadcast %cst_19 : f32 to vector<16x32xf32>
    %49 = vector.shape_cast %47 : vector<16x1xi1> to vector<16x1xi1>
    %50 = vector.broadcast %49 : vector<16x1xi1> to vector<16x32xi1>
    %51 = arith.select %50, %48, %45 : vector<16x32xi1>, vector<16x32xf32>
    %52 = arith.mulf %51, %51 : vector<16x32xf32>
    %cst_20 = arith.constant dense<0.000000e+00> : vector<16xf32>
    %53 = vector.multi_reduction <add>, %52, %cst_20 [1] : vector<16x32xf32> to vector<16xf32>
    %54 = vector.shape_cast %53 : vector<16xf32> to vector<16x1xf32>
    %cst_21 = arith.constant 1.000000e-15 : f32
    %55 = vector.broadcast %cst_21 : f32 to vector<16x1xf32>
    %56 = arith.maximumf %54, %55 : vector<16x1xf32>
    %57 = math.sqrt %56 : vector<16x1xf32>
    %58 = math.sqrt %0 : f32
    %cst_22 = arith.constant 0.995999991 : f32
    %59 = arith.divf %cst_22, %58 : f32
    %60 = vector.broadcast %59 : f32 to vector<16x1xf32>
    %61 = arith.divf %60, %57 : vector<16x1xf32>
    %cst_23 = arith.constant 1.000000e+00 : f32
    %62 = vector.broadcast %cst_23 : f32 to vector<16x1xf32>
    %63 = arith.minimumf %62, %61 : vector<16x1xf32>
    %64 = vector.broadcast %63 : vector<16x1xf32> to vector<16x32xf32>
    %65 = arith.mulf %51, %64 : vector<16x32xf32>
    %66 = arith.mulf %65, %65 : vector<16x32xf32>
    %cst_24 = arith.constant dense<0.000000e+00> : vector<16xf32>
    %67 = vector.multi_reduction <add>, %66, %cst_24 [1] : vector<16x32xf32> to vector<16xf32>
    %68 = vector.shape_cast %67 : vector<16xf32> to vector<16x1xf32>
    %69 = arith.mulf %5, %5 : vector<1x32xf32>
    %cst_25 = arith.constant dense<0.000000e+00> : vector<1xf32>
    %70 = vector.multi_reduction <add>, %69, %cst_25 [1] : vector<1x32xf32> to vector<1xf32>
    %71 = vector.shape_cast %70 : vector<1xf32> to vector<1x1xf32>
    %72 = vector.broadcast %5 : vector<1x32xf32> to vector<16x32xf32>
    %73 = arith.mulf %65, %72 : vector<16x32xf32>
    %cst_26 = arith.constant dense<0.000000e+00> : vector<16xf32>
    %74 = vector.multi_reduction <add>, %73, %cst_26 [1] : vector<16x32xf32> to vector<16xf32>
    %75 = vector.shape_cast %74 : vector<16xf32> to vector<16x1xf32>
    %cst_27 = arith.constant 2.000000e+00 : f32
    %76 = arith.mulf %cst_27, %0 : f32
    %77 = vector.broadcast %76 : f32 to vector<16x1xf32>
    %78 = arith.mulf %77, %75 : vector<16x1xf32>
    %cst_28 = arith.constant 1.000000e+00 : f32
    %79 = vector.broadcast %cst_28 : f32 to vector<16x1xf32>
    %80 = arith.addf %79, %78 : vector<16x1xf32>
    %81 = vector.broadcast %0 : f32 to vector<1x1xf32>
    %82 = arith.mulf %81, %71 : vector<1x1xf32>
    %83 = vector.broadcast %82 : vector<1x1xf32> to vector<16x1xf32>
    %84 = arith.addf %80, %83 : vector<16x1xf32>
    %85 = vector.broadcast %84 : vector<16x1xf32> to vector<16x32xf32>
    %86 = arith.mulf %85, %65 : vector<16x32xf32>
    %87 = vector.broadcast %0 : f32 to vector<16x1xf32>
    %88 = arith.mulf %87, %68 : vector<16x1xf32>
    %cst_29 = arith.constant 1.000000e+00 : f32
    %89 = vector.broadcast %cst_29 : f32 to vector<16x1xf32>
    %90 = arith.subf %89, %88 : vector<16x1xf32>
    %91 = vector.broadcast %90 : vector<16x1xf32> to vector<16x32xf32>
    %92 = vector.broadcast %5 : vector<1x32xf32> to vector<16x32xf32>
    %93 = arith.mulf %91, %92 : vector<16x32xf32>
    %94 = arith.addf %86, %93 : vector<16x32xf32>
    %cst_30 = arith.constant 2.000000e+00 : f32
    %95 = arith.mulf %cst_30, %0 : f32
    %96 = vector.broadcast %95 : f32 to vector<16x1xf32>
    %97 = arith.mulf %96, %75 : vector<16x1xf32>
    %cst_31 = arith.constant 1.000000e+00 : f32
    %98 = vector.broadcast %cst_31 : f32 to vector<16x1xf32>
    %99 = arith.addf %98, %97 : vector<16x1xf32>
    %100 = arith.mulf %0, %0 : f32
    %101 = vector.broadcast %100 : f32 to vector<16x1xf32>
    %102 = arith.mulf %101, %68 : vector<16x1xf32>
    %103 = vector.broadcast %71 : vector<1x1xf32> to vector<16x1xf32>
    %104 = arith.mulf %102, %103 : vector<16x1xf32>
    %105 = arith.addf %99, %104 : vector<16x1xf32>
    %cst_32 = arith.constant 1.000000e-15 : f32
    %106 = vector.broadcast %cst_32 : f32 to vector<16x1xf32>
    %107 = arith.maximumf %105, %106 : vector<16x1xf32>
    %108 = tpu.reciprocal %107 {approx = true} : vector<16x1xf32> -> vector<16x1xf32>
    %109 = vector.broadcast %108 : vector<16x1xf32> to vector<16x32xf32>
    %110 = arith.mulf %94, %109 : vector<16x32xf32>
    %111 = arith.mulf %110, %110 : vector<16x32xf32>
    %cst_33 = arith.constant dense<0.000000e+00> : vector<16xf32>
    %112 = vector.multi_reduction <add>, %111, %cst_33 [1] : vector<16x32xf32> to vector<16xf32>
    %113 = vector.shape_cast %112 : vector<16xf32> to vector<16x1xf32>
    %cst_34 = arith.constant 1.000000e-15 : f32
    %114 = vector.broadcast %cst_34 : f32 to vector<16x1xf32>
    %115 = arith.maximumf %113, %114 : vector<16x1xf32>
    %116 = math.sqrt %115 : vector<16x1xf32>
    %117 = math.sqrt %0 : f32
    %cst_35 = arith.constant 0.995999991 : f32
    %118 = arith.divf %cst_35, %117 : f32
    %119 = vector.broadcast %118 : f32 to vector<16x1xf32>
    %120 = arith.divf %119, %116 : vector<16x1xf32>
    %cst_36 = arith.constant 1.000000e+00 : f32
    %121 = vector.broadcast %cst_36 : f32 to vector<16x1xf32>
    %122 = arith.minimumf %121, %120 : vector<16x1xf32>
    %123 = vector.broadcast %122 : vector<16x1xf32> to vector<16x32xf32>
    %124 = arith.mulf %110, %123 : vector<16x32xf32>
    %125 = arith.mulf %124, %124 : vector<16x32xf32>
    %cst_37 = arith.constant dense<0.000000e+00> : vector<16xf32>
    %126 = vector.multi_reduction <add>, %125, %cst_37 [1] : vector<16x32xf32> to vector<16xf32>
    %127 = vector.shape_cast %126 : vector<16xf32> to vector<16x1xf32>
    %cst_38 = arith.constant 1.000000e-15 : f32
    %128 = vector.broadcast %cst_38 : f32 to vector<16x1xf32>
    %129 = arith.maximumf %127, %128 : vector<16x1xf32>
    %130 = math.sqrt %129 : vector<16x1xf32>
    %131 = vector.broadcast %2 : f32 to vector<16x1xf32>
    %132 = arith.mulf %131, %130 : vector<16x1xf32>
    %cst_39 = arith.constant -0.99999988 : f32
    %cst_40 = arith.constant 0.99999988 : f32
    %133 = vector.broadcast %cst_39 : f32 to vector<16x1xf32>
    %134 = arith.maximumf %133, %132 : vector<16x1xf32>
    %135 = vector.broadcast %cst_40 : f32 to vector<16x1xf32>
    %136 = arith.minimumf %135, %134 : vector<16x1xf32>
    %cst_41 = arith.constant 1.000000e+00 : f32
    %137 = vector.broadcast %cst_41 : f32 to vector<16x1xf32>
    %138 = arith.addf %137, %136 : vector<16x1xf32>
    %cst_42 = arith.constant 1.000000e+00 : f32
    %139 = vector.broadcast %cst_42 : f32 to vector<16x1xf32>
    %140 = arith.subf %139, %136 : vector<16x1xf32>
    %141 = arith.divf %138, %140 : vector<16x1xf32>
    %142 = math.log %141 : vector<16x1xf32>
    %cst_43 = arith.constant 5.000000e-01 : f32
    %143 = vector.broadcast %cst_43 : f32 to vector<16x1xf32>
    %144 = arith.mulf %143, %142 : vector<16x1xf32>
    %145 = vector.broadcast %144 : vector<16x1xf32> to vector<16x32xf32>
    %146 = arith.mulf %145, %124 : vector<16x32xf32>
    %147 = vector.broadcast %2 : f32 to vector<16x1xf32>
    %148 = arith.mulf %130, %147 : vector<16x1xf32>
    %149 = tpu.reciprocal %148 {approx = true} : vector<16x1xf32> -> vector<16x1xf32>
    %150 = vector.broadcast %149 : vector<16x1xf32> to vector<16x32xf32>
    %151 = arith.mulf %146, %150 : vector<16x32xf32>
    %c0_44 = arith.constant 0 : index
    %c0_45 = arith.constant 0 : index
    %152 = vector.load %arg2[%c0_44, %c0_45] : memref<8x32xf32, #tpu.memory_space<vmem>>, vector<8x32xf32>
    %153 = arith.mulf %152, %152 : vector<8x32xf32>
    %cst_46 = arith.constant dense<0.000000e+00> : vector<8xf32>
    %154 = vector.multi_reduction <add>, %153, %cst_46 [1] : vector<8x32xf32> to vector<8xf32>
    %155 = vector.shape_cast %154 : vector<8xf32> to vector<8x1xf32>
    %cst_47 = arith.constant 1.000000e-15 : f32
    %156 = vector.broadcast %cst_47 : f32 to vector<8x1xf32>
    %157 = arith.maximumf %155, %156 : vector<8x1xf32>
    %158 = math.sqrt %157 : vector<8x1xf32>
    %159 = arith.truncf %152 : vector<8x32xf32> to vector<8x32xbf16>
    %cst_48 = arith.constant dense<0.000000e+00> : vector<8x32xf32>
    %160 = tpu.matmul %159, %4, %cst_48 {dimension_numbers = #tpu.dot_dimension_numbers<[1], [0], [0], [1], [0, 0, 1, 1], [], []>} : vector<8x32xbf16>, vector<32x32xbf16>, vector<8x32xf32> -> vector<8x32xf32>
    %161 = arith.mulf %160, %160 : vector<8x32xf32>
    %cst_49 = arith.constant dense<0.000000e+00> : vector<8xf32>
    %162 = vector.multi_reduction <add>, %161, %cst_49 [1] : vector<8x32xf32> to vector<8xf32>
    %163 = vector.shape_cast %162 : vector<8xf32> to vector<8x1xf32>
    %cst_50 = arith.constant 1.000000e-15 : f32
    %164 = vector.broadcast %cst_50 : f32 to vector<8x1xf32>
    %165 = arith.maximumf %163, %164 : vector<8x1xf32>
    %166 = math.sqrt %165 : vector<8x1xf32>
    %167 = tpu.reciprocal %158 {approx = true} : vector<8x1xf32> -> vector<8x1xf32>
    %168 = arith.mulf %166, %167 : vector<8x1xf32>
    %169 = vector.broadcast %2 : f32 to vector<8x1xf32>
    %170 = arith.mulf %169, %158 : vector<8x1xf32>
    %cst_51 = arith.constant -0.99999988 : f32
    %cst_52 = arith.constant 0.99999988 : f32
    %171 = vector.broadcast %cst_51 : f32 to vector<8x1xf32>
    %172 = arith.maximumf %171, %170 : vector<8x1xf32>
    %173 = vector.broadcast %cst_52 : f32 to vector<8x1xf32>
    %174 = arith.minimumf %173, %172 : vector<8x1xf32>
    %cst_53 = arith.constant 1.000000e+00 : f32
    %175 = vector.broadcast %cst_53 : f32 to vector<8x1xf32>
    %176 = arith.addf %175, %174 : vector<8x1xf32>
    %cst_54 = arith.constant 1.000000e+00 : f32
    %177 = vector.broadcast %cst_54 : f32 to vector<8x1xf32>
    %178 = arith.subf %177, %174 : vector<8x1xf32>
    %179 = arith.divf %176, %178 : vector<8x1xf32>
    %180 = math.log %179 : vector<8x1xf32>
    %cst_55 = arith.constant 5.000000e-01 : f32
    %181 = vector.broadcast %cst_55 : f32 to vector<8x1xf32>
    %182 = arith.mulf %181, %180 : vector<8x1xf32>
    %183 = arith.mulf %168, %182 : vector<8x1xf32>
    %184 = math.tanh %183 : vector<8x1xf32>
    %185 = vector.broadcast %184 : vector<8x1xf32> to vector<8x32xf32>
    %186 = arith.mulf %185, %160 : vector<8x32xf32>
    %187 = vector.broadcast %2 : f32 to vector<8x1xf32>
    %188 = arith.mulf %166, %187 : vector<8x1xf32>
    %189 = tpu.reciprocal %188 {approx = true} : vector<8x1xf32> -> vector<8x1xf32>
    %190 = vector.broadcast %189 : vector<8x1xf32> to vector<8x32xf32>
    %191 = arith.mulf %186, %190 : vector<8x32xf32>
    %cst_56 = arith.constant 1.000000e-15 : f32
    %192 = vector.broadcast %cst_56 : f32 to vector<8x1xf32>
    %193 = arith.cmpf ole, %163, %192 : vector<8x1xf32>
    %cst_57 = arith.constant 0.000000e+00 : f32
    %194 = vector.broadcast %cst_57 : f32 to vector<8x32xf32>
    %195 = vector.shape_cast %193 : vector<8x1xi1> to vector<8x1xi1>
    %196 = vector.broadcast %195 : vector<8x1xi1> to vector<8x32xi1>
    %197 = arith.select %196, %194, %191 : vector<8x32xi1>, vector<8x32xf32>
    %198 = arith.mulf %197, %197 : vector<8x32xf32>
    %cst_58 = arith.constant dense<0.000000e+00> : vector<8xf32>
    %199 = vector.multi_reduction <add>, %198, %cst_58 [1] : vector<8x32xf32> to vector<8xf32>
    %200 = vector.shape_cast %199 : vector<8xf32> to vector<8x1xf32>
    %cst_59 = arith.constant 1.000000e-15 : f32
    %201 = vector.broadcast %cst_59 : f32 to vector<8x1xf32>
    %202 = arith.maximumf %200, %201 : vector<8x1xf32>
    %203 = math.sqrt %202 : vector<8x1xf32>
    %204 = math.sqrt %0 : f32
    %cst_60 = arith.constant 0.995999991 : f32
    %205 = arith.divf %cst_60, %204 : f32
    %206 = vector.broadcast %205 : f32 to vector<8x1xf32>
    %207 = arith.divf %206, %203 : vector<8x1xf32>
    %cst_61 = arith.constant 1.000000e+00 : f32
    %208 = vector.broadcast %cst_61 : f32 to vector<8x1xf32>
    %209 = arith.minimumf %208, %207 : vector<8x1xf32>
    %210 = vector.broadcast %209 : vector<8x1xf32> to vector<8x32xf32>
    %211 = arith.mulf %197, %210 : vector<8x32xf32>
    %212 = arith.mulf %211, %211 : vector<8x32xf32>
    %cst_62 = arith.constant dense<0.000000e+00> : vector<8xf32>
    %213 = vector.multi_reduction <add>, %212, %cst_62 [1] : vector<8x32xf32> to vector<8xf32>
    %214 = vector.shape_cast %213 : vector<8xf32> to vector<8x1xf32>
    %215 = arith.mulf %5, %5 : vector<1x32xf32>
    %cst_63 = arith.constant dense<0.000000e+00> : vector<1xf32>
    %216 = vector.multi_reduction <add>, %215, %cst_63 [1] : vector<1x32xf32> to vector<1xf32>
    %217 = vector.shape_cast %216 : vector<1xf32> to vector<1x1xf32>
    %218 = vector.broadcast %5 : vector<1x32xf32> to vector<8x32xf32>
    %219 = arith.mulf %211, %218 : vector<8x32xf32>
    %cst_64 = arith.constant dense<0.000000e+00> : vector<8xf32>
    %220 = vector.multi_reduction <add>, %219, %cst_64 [1] : vector<8x32xf32> to vector<8xf32>
    %221 = vector.shape_cast %220 : vector<8xf32> to vector<8x1xf32>
    %cst_65 = arith.constant 2.000000e+00 : f32
    %222 = arith.mulf %cst_65, %0 : f32
    %223 = vector.broadcast %222 : f32 to vector<8x1xf32>
    %224 = arith.mulf %223, %221 : vector<8x1xf32>
    %cst_66 = arith.constant 1.000000e+00 : f32
    %225 = vector.broadcast %cst_66 : f32 to vector<8x1xf32>
    %226 = arith.addf %225, %224 : vector<8x1xf32>
    %227 = vector.broadcast %0 : f32 to vector<1x1xf32>
    %228 = arith.mulf %227, %217 : vector<1x1xf32>
    %229 = vector.broadcast %228 : vector<1x1xf32> to vector<8x1xf32>
    %230 = arith.addf %226, %229 : vector<8x1xf32>
    %231 = vector.broadcast %230 : vector<8x1xf32> to vector<8x32xf32>
    %232 = arith.mulf %231, %211 : vector<8x32xf32>
    %233 = vector.broadcast %0 : f32 to vector<8x1xf32>
    %234 = arith.mulf %233, %214 : vector<8x1xf32>
    %cst_67 = arith.constant 1.000000e+00 : f32
    %235 = vector.broadcast %cst_67 : f32 to vector<8x1xf32>
    %236 = arith.subf %235, %234 : vector<8x1xf32>
    %237 = vector.broadcast %236 : vector<8x1xf32> to vector<8x32xf32>
    %238 = vector.broadcast %5 : vector<1x32xf32> to vector<8x32xf32>
    %239 = arith.mulf %237, %238 : vector<8x32xf32>
    %240 = arith.addf %232, %239 : vector<8x32xf32>
    %cst_68 = arith.constant 2.000000e+00 : f32
    %241 = arith.mulf %cst_68, %0 : f32
    %242 = vector.broadcast %241 : f32 to vector<8x1xf32>
    %243 = arith.mulf %242, %221 : vector<8x1xf32>
    %cst_69 = arith.constant 1.000000e+00 : f32
    %244 = vector.broadcast %cst_69 : f32 to vector<8x1xf32>
    %245 = arith.addf %244, %243 : vector<8x1xf32>
    %246 = arith.mulf %0, %0 : f32
    %247 = vector.broadcast %246 : f32 to vector<8x1xf32>
    %248 = arith.mulf %247, %214 : vector<8x1xf32>
    %249 = vector.broadcast %217 : vector<1x1xf32> to vector<8x1xf32>
    %250 = arith.mulf %248, %249 : vector<8x1xf32>
    %251 = arith.addf %245, %250 : vector<8x1xf32>
    %cst_70 = arith.constant 1.000000e-15 : f32
    %252 = vector.broadcast %cst_70 : f32 to vector<8x1xf32>
    %253 = arith.maximumf %251, %252 : vector<8x1xf32>
    %254 = tpu.reciprocal %253 {approx = true} : vector<8x1xf32> -> vector<8x1xf32>
    %255 = vector.broadcast %254 : vector<8x1xf32> to vector<8x32xf32>
    %256 = arith.mulf %240, %255 : vector<8x32xf32>
    %257 = arith.mulf %256, %256 : vector<8x32xf32>
    %cst_71 = arith.constant dense<0.000000e+00> : vector<8xf32>
    %258 = vector.multi_reduction <add>, %257, %cst_71 [1] : vector<8x32xf32> to vector<8xf32>
    %259 = vector.shape_cast %258 : vector<8xf32> to vector<8x1xf32>
    %cst_72 = arith.constant 1.000000e-15 : f32
    %260 = vector.broadcast %cst_72 : f32 to vector<8x1xf32>
    %261 = arith.maximumf %259, %260 : vector<8x1xf32>
    %262 = math.sqrt %261 : vector<8x1xf32>
    %263 = math.sqrt %0 : f32
    %cst_73 = arith.constant 0.995999991 : f32
    %264 = arith.divf %cst_73, %263 : f32
    %265 = vector.broadcast %264 : f32 to vector<8x1xf32>
    %266 = arith.divf %265, %262 : vector<8x1xf32>
    %cst_74 = arith.constant 1.000000e+00 : f32
    %267 = vector.broadcast %cst_74 : f32 to vector<8x1xf32>
    %268 = arith.minimumf %267, %266 : vector<8x1xf32>
    %269 = vector.broadcast %268 : vector<8x1xf32> to vector<8x32xf32>
    %270 = arith.mulf %256, %269 : vector<8x32xf32>
    %271 = arith.mulf %270, %270 : vector<8x32xf32>
    %cst_75 = arith.constant dense<0.000000e+00> : vector<8xf32>
    %272 = vector.multi_reduction <add>, %271, %cst_75 [1] : vector<8x32xf32> to vector<8xf32>
    %273 = vector.shape_cast %272 : vector<8xf32> to vector<8x1xf32>
    %cst_76 = arith.constant 1.000000e-15 : f32
    %274 = vector.broadcast %cst_76 : f32 to vector<8x1xf32>
    %275 = arith.maximumf %273, %274 : vector<8x1xf32>
    %276 = math.sqrt %275 : vector<8x1xf32>
    %277 = vector.broadcast %2 : f32 to vector<8x1xf32>
    %278 = arith.mulf %277, %276 : vector<8x1xf32>
    %cst_77 = arith.constant -0.99999988 : f32
    %cst_78 = arith.constant 0.99999988 : f32
    %279 = vector.broadcast %cst_77 : f32 to vector<8x1xf32>
    %280 = arith.maximumf %279, %278 : vector<8x1xf32>
    %281 = vector.broadcast %cst_78 : f32 to vector<8x1xf32>
    %282 = arith.minimumf %281, %280 : vector<8x1xf32>
    %cst_79 = arith.constant 1.000000e+00 : f32
    %283 = vector.broadcast %cst_79 : f32 to vector<8x1xf32>
    %284 = arith.addf %283, %282 : vector<8x1xf32>
    %cst_80 = arith.constant 1.000000e+00 : f32
    %285 = vector.broadcast %cst_80 : f32 to vector<8x1xf32>
    %286 = arith.subf %285, %282 : vector<8x1xf32>
    %287 = arith.divf %284, %286 : vector<8x1xf32>
    %288 = math.log %287 : vector<8x1xf32>
    %cst_81 = arith.constant 5.000000e-01 : f32
    %289 = vector.broadcast %cst_81 : f32 to vector<8x1xf32>
    %290 = arith.mulf %289, %288 : vector<8x1xf32>
    %291 = vector.broadcast %290 : vector<8x1xf32> to vector<8x32xf32>
    %292 = arith.mulf %291, %270 : vector<8x32xf32>
    %293 = vector.broadcast %2 : f32 to vector<8x1xf32>
    %294 = arith.mulf %276, %293 : vector<8x1xf32>
    %295 = tpu.reciprocal %294 {approx = true} : vector<8x1xf32> -> vector<8x1xf32>
    %296 = vector.broadcast %295 : vector<8x1xf32> to vector<8x32xf32>
    %297 = arith.mulf %292, %296 : vector<8x32xf32>
    %c0_82 = arith.constant 0 : index
    %c0_83 = arith.constant 0 : index
    %298 = vector.load %arg5[%c0_82, %c0_83] : memref<1x32xf32, #tpu.memory_space<vmem>>, vector<1x32xf32>
    %299 = vector.broadcast %298 : vector<1x32xf32> to vector<8x32xf32>
    %300 = arith.mulf %297, %299 : vector<8x32xf32>
    %cst_84 = arith.constant dense<0.000000e+00> : vector<8xf32>
    %301 = vector.multi_reduction <add>, %300, %cst_84 [1] : vector<8x32xf32> to vector<8xf32>
    %302 = vector.shape_cast %301 : vector<8xf32> to vector<8x1xf32>
    %c0_85 = arith.constant 0 : index
    %c0_86 = arith.constant 0 : index
    %303 = vector.load %arg6[%c0_85, %c0_86] : memref<1x32xf32, #tpu.memory_space<vmem>>, vector<1x32xf32>
    %cst_87 = arith.constant dense<0.000000e+00> : vector<1x16xf32>
    %304 = tpu.matmul %303, %151, %cst_87 {dimension_numbers = #tpu.dot_dimension_numbers<[1], [1], [0], [0], [0, 0, 1, 0], [], []>} : vector<1x32xf32>, vector<16x32xf32>, vector<1x16xf32> -> vector<1x16xf32>
    %305 = vector.broadcast %302 : vector<8x1xf32> to vector<8x16xf32>
    %306 = vector.broadcast %304 : vector<1x16xf32> to vector<8x16xf32>
    %307 = arith.addf %305, %306 : vector<8x16xf32>
    %cst_88 = arith.constant 0.000000e+00 : f32
    %308 = vector.broadcast %cst_88 : f32 to vector<8x16xf32>
    %309 = arith.cmpf ogt, %307, %308 : vector<8x16xf32>
    %cst_89 = arith.constant 2.000000e-01 : f32
    %310 = vector.broadcast %cst_89 : f32 to vector<8x16xf32>
    %311 = arith.mulf %310, %307 : vector<8x16xf32>
    %312 = arith.select %309, %307, %311 : vector<8x16xi1>, vector<8x16xf32>
    %c0_90 = arith.constant 0 : index
    %c0_91 = arith.constant 0 : index
    %313 = vector.load %arg7[%c0_90, %c0_91] : memref<8x16xf32, #tpu.memory_space<vmem>>, vector<8x16xf32>
    %cst_92 = arith.constant 0.000000e+00 : f32
    %314 = vector.broadcast %cst_92 : f32 to vector<8x16xf32>
    %315 = arith.cmpf ogt, %313, %314 : vector<8x16xf32>
    %cst_93 = arith.constant -1.000000e+09 : f32
    %316 = vector.broadcast %cst_93 : f32 to vector<8x16xf32>
    %317 = arith.select %315, %312, %316 : vector<8x16xi1>, vector<8x16xf32>
    %cst_94 = arith.constant dense<0xFF800000> : vector<8xf32>
    %318 = vector.multi_reduction <maximumf>, %317, %cst_94 [1] : vector<8x16xf32> to vector<8xf32>
    %319 = vector.shape_cast %318 : vector<8xf32> to vector<8x1xf32>
    %320 = vector.broadcast %319 : vector<8x1xf32> to vector<8x16xf32>
    %321 = arith.subf %317, %320 : vector<8x16xf32>
    %322 = math.exp %321 : vector<8x16xf32>
    %cst_95 = arith.constant 0.000000e+00 : f32
    %323 = vector.broadcast %cst_95 : f32 to vector<8x16xf32>
    %324 = arith.select %315, %322, %323 : vector<8x16xi1>, vector<8x16xf32>
    %cst_96 = arith.constant dense<0.000000e+00> : vector<8xf32>
    %325 = vector.multi_reduction <add>, %324, %cst_96 [1] : vector<8x16xf32> to vector<8xf32>
    %326 = vector.shape_cast %325 : vector<8xf32> to vector<8x1xf32>
    %cst_97 = arith.constant 1.000000e-15 : f32
    %327 = vector.broadcast %cst_97 : f32 to vector<8x1xf32>
    %328 = arith.maximumf %326, %327 : vector<8x1xf32>
    %329 = tpu.reciprocal %328 {approx = true} : vector<8x1xf32> -> vector<8x1xf32>
    %330 = vector.broadcast %329 : vector<8x1xf32> to vector<8x16xf32>
    %331 = arith.mulf %324, %330 : vector<8x16xf32>
    %332 = arith.truncf %331 : vector<8x16xf32> to vector<8x16xbf16>
    %333 = arith.truncf %151 : vector<16x32xf32> to vector<16x32xbf16>
    %cst_98 = arith.constant dense<0.000000e+00> : vector<8x32xf32>
    %334 = tpu.matmul %332, %333, %cst_98 {dimension_numbers = #tpu.dot_dimension_numbers<[1], [0], [0], [1], [0, 0, 1, 1], [], []>} : vector<8x16xbf16>, vector<16x32xbf16>, vector<8x32xf32> -> vector<8x32xf32>
    %cst_99 = arith.constant 3.10630298 : f32
    %335 = arith.divf %cst_99, %2 : f32
    %336 = arith.mulf %334, %334 : vector<8x32xf32>
    %cst_100 = arith.constant dense<0.000000e+00> : vector<8xf32>
    %337 = vector.multi_reduction <add>, %336, %cst_100 [1] : vector<8x32xf32> to vector<8xf32>
    %338 = vector.shape_cast %337 : vector<8xf32> to vector<8x1xf32>
    %cst_101 = arith.constant 1.000000e-15 : f32
    %339 = vector.broadcast %cst_101 : f32 to vector<8x1xf32>
    %340 = arith.maximumf %338, %339 : vector<8x1xf32>
    %341 = math.sqrt %340 : vector<8x1xf32>
    %342 = vector.broadcast %335 : f32 to vector<8x1xf32>
    %343 = arith.divf %342, %341 : vector<8x1xf32>
    %cst_102 = arith.constant 1.000000e+00 : f32
    %344 = vector.broadcast %cst_102 : f32 to vector<8x1xf32>
    %345 = arith.minimumf %344, %343 : vector<8x1xf32>
    %346 = vector.broadcast %345 : vector<8x1xf32> to vector<8x32xf32>
    %347 = arith.mulf %334, %346 : vector<8x32xf32>
    %cst_103 = arith.constant 0.000000e+00 : f32
    %348 = vector.broadcast %cst_103 : f32 to vector<8x32xf32>
    %349 = arith.maximumf %347, %348 : vector<8x32xf32>
    %350 = arith.mulf %349, %349 : vector<8x32xf32>
    %cst_104 = arith.constant dense<0.000000e+00> : vector<8xf32>
    %351 = vector.multi_reduction <add>, %350, %cst_104 [1] : vector<8x32xf32> to vector<8xf32>
    %352 = vector.shape_cast %351 : vector<8xf32> to vector<8x1xf32>
    %cst_105 = arith.constant 1.000000e-15 : f32
    %353 = vector.broadcast %cst_105 : f32 to vector<8x1xf32>
    %354 = arith.maximumf %352, %353 : vector<8x1xf32>
    %355 = math.sqrt %354 : vector<8x1xf32>
    %356 = vector.broadcast %3 : f32 to vector<8x1xf32>
    %357 = arith.mulf %356, %355 : vector<8x1xf32>
    %358 = math.tanh %357 : vector<8x1xf32>
    %359 = vector.broadcast %358 : vector<8x1xf32> to vector<8x32xf32>
    %360 = arith.mulf %359, %349 : vector<8x32xf32>
    %361 = vector.broadcast %3 : f32 to vector<8x1xf32>
    %362 = arith.mulf %361, %355 : vector<8x1xf32>
    %363 = tpu.reciprocal %362 {approx = true} : vector<8x1xf32> -> vector<8x1xf32>
    %364 = vector.broadcast %363 : vector<8x1xf32> to vector<8x32xf32>
    %365 = arith.mulf %360, %364 : vector<8x32xf32>
    %366 = arith.mulf %365, %365 : vector<8x32xf32>
    %cst_106 = arith.constant dense<0.000000e+00> : vector<8xf32>
    %367 = vector.multi_reduction <add>, %366, %cst_106 [1] : vector<8x32xf32> to vector<8xf32>
    %368 = vector.shape_cast %367 : vector<8xf32> to vector<8x1xf32>
    %cst_107 = arith.constant 1.000000e-15 : f32
    %369 = vector.broadcast %cst_107 : f32 to vector<8x1xf32>
    %370 = arith.maximumf %368, %369 : vector<8x1xf32>
    %371 = math.sqrt %370 : vector<8x1xf32>
    %372 = math.sqrt %1 : f32
    %cst_108 = arith.constant 0.995999991 : f32
    %373 = arith.divf %cst_108, %372 : f32
    %374 = vector.broadcast %373 : f32 to vector<8x1xf32>
    %375 = arith.divf %374, %371 : vector<8x1xf32>
    %cst_109 = arith.constant 1.000000e+00 : f32
    %376 = vector.broadcast %cst_109 : f32 to vector<8x1xf32>
    %377 = arith.minimumf %376, %375 : vector<8x1xf32>
    %378 = vector.broadcast %377 : vector<8x1xf32> to vector<8x32xf32>
    %379 = arith.mulf %365, %378 : vector<8x32xf32>
    %c0_110 = arith.constant 0 : index
    %c0_111 = arith.constant 0 : index
    %380 = vector.load %arg10[%c0_110, %c0_111] : memref<8x32xf32, #tpu.memory_space<vmem>>, vector<8x32xf32>
    tpu.vector_store %arg10[%c0_110, %c0_111], %379 {strides = array<i32>} : memref<8x32xf32, #tpu.memory_space<vmem>>, vector<8x32xf32>,
    return
  }
  func.func @transform_0(%arg0: i32) -> (i32, i32) {
    %c0_i32 = arith.constant 0 : i32
    %c0_i32_0 = arith.constant 0 : i32
    %c0_i32_1 = arith.constant 0 : i32
    return %c0_i32, %c0_i32_0 : i32, i32
  }
  func.func @transform_1(%arg0: i32) -> (i32, i32) {
    %c0_i32 = arith.constant 0 : i32
    %c0_i32_0 = arith.constant 0 : i32
    return %arg0, %c0_i32 : i32, i32
  }
  func.func @transform_2(%arg0: i32) -> (i32, i32) {
    %c0_i32 = arith.constant 0 : i32
    %c0_i32_0 = arith.constant 0 : i32
    %c0_i32_1 = arith.constant 0 : i32
    return %c0_i32, %c0_i32_0 : i32, i32
  }
  func.func @transform_3(%arg0: i32) -> (i32, i32) {
    %c0_i32 = arith.constant 0 : i32
    %c0_i32_0 = arith.constant 0 : i32
    %c0_i32_1 = arith.constant 0 : i32
    return %c0_i32, %c0_i32_0 : i32, i32
  }
  func.func @transform_4(%arg0: i32) -> (i32, i32) {
    %c0_i32 = arith.constant 0 : i32
    %c0_i32_0 = arith.constant 0 : i32
    %c0_i32_1 = arith.constant 0 : i32
    return %c0_i32, %c0_i32_0 : i32, i32
  }
  func.func @transform_5(%arg0: i32) -> (i32, i32) {
    %c0_i32 = arith.constant 0 : i32
    %c0_i32_0 = arith.constant 0 : i32
    %c0_i32_1 = arith.constant 0 : i32
    return %c0_i32, %c0_i32_0 : i32, i32
  }
  func.func @transform_6(%arg0: i32) -> (i32, i32) {
    %c0_i32 = arith.constant 0 : i32
    %c0_i32_0 = arith.constant 0 : i32
    return %arg0, %c0_i32 : i32, i32
  }
  func.func @transform_7(%arg0: i32) -> (i32, i32) {
    %c0_i32 = arith.constant 0 : i32
    %c0_i32_0 = arith.constant 0 : i32
    %c0_i32_1 = arith.constant 0 : i32
    return %c0_i32, %c0_i32_0 : i32, i32
  }
  func.func @transform_8(%arg0: i32) -> (i32, i32) {
    %c0_i32 = arith.constant 0 : i32
    %c0_i32_0 = arith.constant 0 : i32
    %c0_i32_1 = arith.constant 0 : i32
    return %c0_i32, %c0_i32_0 : i32, i32
  }
  func.func @transform_9(%arg0: i32) -> (i32, i32) {
    %c0_i32 = arith.constant 0 : i32
    %c0_i32_0 = arith.constant 0 : i32
    return %arg0, %c0_i32 : i32, i32
  }
}

module attributes {stable_mosaic.version = 11 : i64} {
  func.func @_hgat_layer_kernel(%arg0: i32, %arg1: memref<16x32xf32, #tpu.memory_space<vmem>>, %arg2: memref<8x32xf32, #tpu.memory_space<vmem>>, %arg3: memref<32x16xbf16, #tpu.memory_space<vmem>>, %arg4: memref<1x16xf32, #tpu.memory_space<vmem>>, %arg5: memref<1x16xf32, #tpu.memory_space<vmem>>, %arg6: memref<1x16xf32, #tpu.memory_space<vmem>>, %arg7: memref<8x16xf32, #tpu.memory_space<vmem>>, %arg8: memref<1x1xf32, #tpu.memory_space<smem>>, %arg9: memref<1x1xf32, #tpu.memory_space<smem>>, %arg10: memref<8x16xf32, #tpu.memory_space<vmem>>) attributes {dimension_semantics = [#tpu.dimension_semantics<parallel>], iteration_bounds = array<i64: 2>, scalar_prefetch = 0 : i64, scratch_operands = 0 : i64, tpu.core_type = #tpu.core_type<tc>, window_params = [{pipeline_mode = #tpu.pipeline_mode<synchronous>, transform_indices = @transform_0, window_bounds = array<i64: 16, 32>}, {transform_indices = @transform_1, window_bounds = array<i64: 8, 32>}, {pipeline_mode = #tpu.pipeline_mode<synchronous>, transform_indices = @transform_2, window_bounds = array<i64: 32, 16>}, {pipeline_mode = #tpu.pipeline_mode<synchronous>, transform_indices = @transform_3, window_bounds = array<i64: 1, 16>}, {pipeline_mode = #tpu.pipeline_mode<synchronous>, transform_indices = @transform_4, window_bounds = array<i64: 1, 16>}, {pipeline_mode = #tpu.pipeline_mode<synchronous>, transform_indices = @transform_5, window_bounds = array<i64: 1, 16>}, {transform_indices = @transform_6, window_bounds = array<i64: 8, 16>}, {transform_indices = @transform_7, window_bounds = array<i64: 1, 1>}, {transform_indices = @transform_8, window_bounds = array<i64: 1, 1>}, {transform_indices = @transform_9, window_bounds = array<i64: 8, 16>}]} {
    %c0 = arith.constant 0 : index
    %c0_0 = arith.constant 0 : index
    %0 = memref.load %arg8[%c0, %c0_0] : memref<1x1xf32, #tpu.memory_space<smem>>
    %c0_1 = arith.constant 0 : index
    %c0_2 = arith.constant 0 : index
    %1 = memref.load %arg9[%c0_1, %c0_2] : memref<1x1xf32, #tpu.memory_space<smem>>
    %2 = math.sqrt %0 : f32
    %3 = math.sqrt %1 : f32
    %c0_3 = arith.constant 0 : index
    %c0_4 = arith.constant 0 : index
    %4 = vector.load %arg3[%c0_3, %c0_4] : memref<32x16xbf16, #tpu.memory_space<vmem>>, vector<32x16xbf16>
    %c0_5 = arith.constant 0 : index
    %c0_6 = arith.constant 0 : index
    %5 = vector.load %arg4[%c0_5, %c0_6] : memref<1x16xf32, #tpu.memory_space<vmem>>, vector<1x16xf32>
    %c0_7 = arith.constant 0 : index
    %c0_8 = arith.constant 0 : index
    %6 = vector.load %arg1[%c0_7, %c0_8] : memref<16x32xf32, #tpu.memory_space<vmem>>, vector<16x32xf32>
    %7 = arith.mulf %6, %6 : vector<16x32xf32>
    %cst = arith.constant dense<0.000000e+00> : vector<16xf32>
    %8 = vector.multi_reduction <add>, %7, %cst [1] : vector<16x32xf32> to vector<16xf32>
    %9 = vector.shape_cast %8 : vector<16xf32> to vector<16x1xf32>
    %cst_9 = arith.constant 1.000000e-15 : f32
    %10 = vector.broadcast %cst_9 : f32 to vector<16x1xf32>
    %11 = arith.maximumf %9, %10 : vector<16x1xf32>
    %12 = math.sqrt %11 : vector<16x1xf32>
    %13 = arith.truncf %6 : vector<16x32xf32> to vector<16x32xbf16>
    %cst_10 = arith.constant dense<0.000000e+00> : vector<16x16xf32>
    %14 = tpu.matmul %13, %4, %cst_10 {dimension_numbers = #tpu.dot_dimension_numbers<[1], [0], [0], [1], [0, 0, 1, 1], [], []>} : vector<16x32xbf16>, vector<32x16xbf16>, vector<16x16xf32> -> vector<16x16xf32>
    %15 = arith.mulf %14, %14 : vector<16x16xf32>
    %cst_11 = arith.constant dense<0.000000e+00> : vector<16xf32>
    %16 = vector.multi_reduction <add>, %15, %cst_11 [1] : vector<16x16xf32> to vector<16xf32>
    %17 = vector.shape_cast %16 : vector<16xf32> to vector<16x1xf32>
    %cst_12 = arith.constant 1.000000e-15 : f32
    %18 = vector.broadcast %cst_12 : f32 to vector<16x1xf32>
    %19 = arith.maximumf %17, %18 : vector<16x1xf32>
    %20 = math.sqrt %19 : vector<16x1xf32>
    %21 = tpu.reciprocal %12 {approx = true} : vector<16x1xf32> -> vector<16x1xf32>
    %22 = arith.mulf %20, %21 : vector<16x1xf32>
    %23 = vector.broadcast %2 : f32 to vector<16x1xf32>
    %24 = arith.mulf %23, %12 : vector<16x1xf32>
    %cst_13 = arith.constant -0.99999988 : f32
    %cst_14 = arith.constant 0.99999988 : f32
    %25 = vector.broadcast %cst_13 : f32 to vector<16x1xf32>
    %26 = arith.maximumf %25, %24 : vector<16x1xf32>
    %27 = vector.broadcast %cst_14 : f32 to vector<16x1xf32>
    %28 = arith.minimumf %27, %26 : vector<16x1xf32>
    %cst_15 = arith.constant 1.000000e+00 : f32
    %29 = vector.broadcast %cst_15 : f32 to vector<16x1xf32>
    %30 = arith.addf %29, %28 : vector<16x1xf32>
    %cst_16 = arith.constant 1.000000e+00 : f32
    %31 = vector.broadcast %cst_16 : f32 to vector<16x1xf32>
    %32 = arith.subf %31, %28 : vector<16x1xf32>
    %33 = arith.divf %30, %32 : vector<16x1xf32>
    %34 = math.log %33 : vector<16x1xf32>
    %cst_17 = arith.constant 5.000000e-01 : f32
    %35 = vector.broadcast %cst_17 : f32 to vector<16x1xf32>
    %36 = arith.mulf %35, %34 : vector<16x1xf32>
    %37 = arith.mulf %22, %36 : vector<16x1xf32>
    %38 = math.tanh %37 : vector<16x1xf32>
    %39 = vector.broadcast %38 : vector<16x1xf32> to vector<16x16xf32>
    %40 = arith.mulf %39, %14 : vector<16x16xf32>
    %41 = vector.broadcast %2 : f32 to vector<16x1xf32>
    %42 = arith.mulf %20, %41 : vector<16x1xf32>
    %43 = tpu.reciprocal %42 {approx = true} : vector<16x1xf32> -> vector<16x1xf32>
    %44 = vector.broadcast %43 : vector<16x1xf32> to vector<16x16xf32>
    %45 = arith.mulf %40, %44 : vector<16x16xf32>
    %cst_18 = arith.constant 1.000000e-15 : f32
    %46 = vector.broadcast %cst_18 : f32 to vector<16x1xf32>
    %47 = arith.cmpf ole, %17, %46 : vector<16x1xf32>
    %cst_19 = arith.constant 0.000000e+00 : f32
    %48 = vector.broadcast %cst_19 : f32 to vector<16x16xf32>
    %49 = vector.shape_cast %47 : vector<16x1xi1> to vector<16x1xi1>
    %50 = vector.broadcast %49 : vector<16x1xi1> to vector<16x16xi1>
    %51 = arith.select %50, %48, %45 : vector<16x16xi1>, vector<16x16xf32>
    %52 = arith.mulf %51, %51 : vector<16x16xf32>
    %cst_20 = arith.constant dense<0.000000e+00> : vector<16xf32>
    %53 = vector.multi_reduction <add>, %52, %cst_20 [1] : vector<16x16xf32> to vector<16xf32>
    %54 = vector.shape_cast %53 : vector<16xf32> to vector<16x1xf32>
    %cst_21 = arith.constant 1.000000e-15 : f32
    %55 = vector.broadcast %cst_21 : f32 to vector<16x1xf32>
    %56 = arith.maximumf %54, %55 : vector<16x1xf32>
    %57 = math.sqrt %56 : vector<16x1xf32>
    %58 = math.sqrt %0 : f32
    %cst_22 = arith.constant 0.995999991 : f32
    %59 = arith.divf %cst_22, %58 : f32
    %60 = vector.broadcast %59 : f32 to vector<16x1xf32>
    %61 = arith.divf %60, %57 : vector<16x1xf32>
    %cst_23 = arith.constant 1.000000e+00 : f32
    %62 = vector.broadcast %cst_23 : f32 to vector<16x1xf32>
    %63 = arith.minimumf %62, %61 : vector<16x1xf32>
    %64 = vector.broadcast %63 : vector<16x1xf32> to vector<16x16xf32>
    %65 = arith.mulf %51, %64 : vector<16x16xf32>
    %66 = arith.mulf %65, %65 : vector<16x16xf32>
    %cst_24 = arith.constant dense<0.000000e+00> : vector<16xf32>
    %67 = vector.multi_reduction <add>, %66, %cst_24 [1] : vector<16x16xf32> to vector<16xf32>
    %68 = vector.shape_cast %67 : vector<16xf32> to vector<16x1xf32>
    %69 = arith.mulf %5, %5 : vector<1x16xf32>
    %cst_25 = arith.constant dense<0.000000e+00> : vector<1xf32>
    %70 = vector.multi_reduction <add>, %69, %cst_25 [1] : vector<1x16xf32> to vector<1xf32>
    %71 = vector.shape_cast %70 : vector<1xf32> to vector<1x1xf32>
    %72 = vector.broadcast %5 : vector<1x16xf32> to vector<16x16xf32>
    %73 = arith.mulf %65, %72 : vector<16x16xf32>
    %cst_26 = arith.constant dense<0.000000e+00> : vector<16xf32>
    %74 = vector.multi_reduction <add>, %73, %cst_26 [1] : vector<16x16xf32> to vector<16xf32>
    %75 = vector.shape_cast %74 : vector<16xf32> to vector<16x1xf32>
    %cst_27 = arith.constant 2.000000e+00 : f32
    %76 = arith.mulf %cst_27, %0 : f32
    %77 = vector.broadcast %76 : f32 to vector<16x1xf32>
    %78 = arith.mulf %77, %75 : vector<16x1xf32>
    %cst_28 = arith.constant 1.000000e+00 : f32
    %79 = vector.broadcast %cst_28 : f32 to vector<16x1xf32>
    %80 = arith.addf %79, %78 : vector<16x1xf32>
    %81 = vector.broadcast %0 : f32 to vector<1x1xf32>
    %82 = arith.mulf %81, %71 : vector<1x1xf32>
    %83 = vector.broadcast %82 : vector<1x1xf32> to vector<16x1xf32>
    %84 = arith.addf %80, %83 : vector<16x1xf32>
    %85 = vector.broadcast %84 : vector<16x1xf32> to vector<16x16xf32>
    %86 = arith.mulf %85, %65 : vector<16x16xf32>
    %87 = vector.broadcast %0 : f32 to vector<16x1xf32>
    %88 = arith.mulf %87, %68 : vector<16x1xf32>
    %cst_29 = arith.constant 1.000000e+00 : f32
    %89 = vector.broadcast %cst_29 : f32 to vector<16x1xf32>
    %90 = arith.subf %89, %88 : vector<16x1xf32>
    %91 = vector.broadcast %90 : vector<16x1xf32> to vector<16x16xf32>
    %92 = vector.broadcast %5 : vector<1x16xf32> to vector<16x16xf32>
    %93 = arith.mulf %91, %92 : vector<16x16xf32>
    %94 = arith.addf %86, %93 : vector<16x16xf32>
    %cst_30 = arith.constant 2.000000e+00 : f32
    %95 = arith.mulf %cst_30, %0 : f32
    %96 = vector.broadcast %95 : f32 to vector<16x1xf32>
    %97 = arith.mulf %96, %75 : vector<16x1xf32>
    %cst_31 = arith.constant 1.000000e+00 : f32
    %98 = vector.broadcast %cst_31 : f32 to vector<16x1xf32>
    %99 = arith.addf %98, %97 : vector<16x1xf32>
    %100 = arith.mulf %0, %0 : f32
    %101 = vector.broadcast %100 : f32 to vector<16x1xf32>
    %102 = arith.mulf %101, %68 : vector<16x1xf32>
    %103 = vector.broadcast %71 : vector<1x1xf32> to vector<16x1xf32>
    %104 = arith.mulf %102, %103 : vector<16x1xf32>
    %105 = arith.addf %99, %104 : vector<16x1xf32>
    %cst_32 = arith.constant 1.000000e-15 : f32
    %106 = vector.broadcast %cst_32 : f32 to vector<16x1xf32>
    %107 = arith.maximumf %105, %106 : vector<16x1xf32>
    %108 = tpu.reciprocal %107 {approx = true} : vector<16x1xf32> -> vector<16x1xf32>
    %109 = vector.broadcast %108 : vector<16x1xf32> to vector<16x16xf32>
    %110 = arith.mulf %94, %109 : vector<16x16xf32>
    %111 = arith.mulf %110, %110 : vector<16x16xf32>
    %cst_33 = arith.constant dense<0.000000e+00> : vector<16xf32>
    %112 = vector.multi_reduction <add>, %111, %cst_33 [1] : vector<16x16xf32> to vector<16xf32>
    %113 = vector.shape_cast %112 : vector<16xf32> to vector<16x1xf32>
    %cst_34 = arith.constant 1.000000e-15 : f32
    %114 = vector.broadcast %cst_34 : f32 to vector<16x1xf32>
    %115 = arith.maximumf %113, %114 : vector<16x1xf32>
    %116 = math.sqrt %115 : vector<16x1xf32>
    %117 = math.sqrt %0 : f32
    %cst_35 = arith.constant 0.995999991 : f32
    %118 = arith.divf %cst_35, %117 : f32
    %119 = vector.broadcast %118 : f32 to vector<16x1xf32>
    %120 = arith.divf %119, %116 : vector<16x1xf32>
    %cst_36 = arith.constant 1.000000e+00 : f32
    %121 = vector.broadcast %cst_36 : f32 to vector<16x1xf32>
    %122 = arith.minimumf %121, %120 : vector<16x1xf32>
    %123 = vector.broadcast %122 : vector<16x1xf32> to vector<16x16xf32>
    %124 = arith.mulf %110, %123 : vector<16x16xf32>
    %125 = arith.mulf %124, %124 : vector<16x16xf32>
    %cst_37 = arith.constant dense<0.000000e+00> : vector<16xf32>
    %126 = vector.multi_reduction <add>, %125, %cst_37 [1] : vector<16x16xf32> to vector<16xf32>
    %127 = vector.shape_cast %126 : vector<16xf32> to vector<16x1xf32>
    %cst_38 = arith.constant 1.000000e-15 : f32
    %128 = vector.broadcast %cst_38 : f32 to vector<16x1xf32>
    %129 = arith.maximumf %127, %128 : vector<16x1xf32>
    %130 = math.sqrt %129 : vector<16x1xf32>
    %131 = vector.broadcast %2 : f32 to vector<16x1xf32>
    %132 = arith.mulf %131, %130 : vector<16x1xf32>
    %cst_39 = arith.constant -0.99999988 : f32
    %cst_40 = arith.constant 0.99999988 : f32
    %133 = vector.broadcast %cst_39 : f32 to vector<16x1xf32>
    %134 = arith.maximumf %133, %132 : vector<16x1xf32>
    %135 = vector.broadcast %cst_40 : f32 to vector<16x1xf32>
    %136 = arith.minimumf %135, %134 : vector<16x1xf32>
    %cst_41 = arith.constant 1.000000e+00 : f32
    %137 = vector.broadcast %cst_41 : f32 to vector<16x1xf32>
    %138 = arith.addf %137, %136 : vector<16x1xf32>
    %cst_42 = arith.constant 1.000000e+00 : f32
    %139 = vector.broadcast %cst_42 : f32 to vector<16x1xf32>
    %140 = arith.subf %139, %136 : vector<16x1xf32>
    %141 = arith.divf %138, %140 : vector<16x1xf32>
    %142 = math.log %141 : vector<16x1xf32>
    %cst_43 = arith.constant 5.000000e-01 : f32
    %143 = vector.broadcast %cst_43 : f32 to vector<16x1xf32>
    %144 = arith.mulf %143, %142 : vector<16x1xf32>
    %145 = vector.broadcast %144 : vector<16x1xf32> to vector<16x16xf32>
    %146 = arith.mulf %145, %124 : vector<16x16xf32>
    %147 = vector.broadcast %2 : f32 to vector<16x1xf32>
    %148 = arith.mulf %130, %147 : vector<16x1xf32>
    %149 = tpu.reciprocal %148 {approx = true} : vector<16x1xf32> -> vector<16x1xf32>
    %150 = vector.broadcast %149 : vector<16x1xf32> to vector<16x16xf32>
    %151 = arith.mulf %146, %150 : vector<16x16xf32>
    %c0_44 = arith.constant 0 : index
    %c0_45 = arith.constant 0 : index
    %152 = vector.load %arg2[%c0_44, %c0_45] : memref<8x32xf32, #tpu.memory_space<vmem>>, vector<8x32xf32>
    %153 = arith.mulf %152, %152 : vector<8x32xf32>
    %cst_46 = arith.constant dense<0.000000e+00> : vector<8xf32>
    %154 = vector.multi_reduction <add>, %153, %cst_46 [1] : vector<8x32xf32> to vector<8xf32>
    %155 = vector.shape_cast %154 : vector<8xf32> to vector<8x1xf32>
    %cst_47 = arith.constant 1.000000e-15 : f32
    %156 = vector.broadcast %cst_47 : f32 to vector<8x1xf32>
    %157 = arith.maximumf %155, %156 : vector<8x1xf32>
    %158 = math.sqrt %157 : vector<8x1xf32>
    %159 = arith.truncf %152 : vector<8x32xf32> to vector<8x32xbf16>
    %cst_48 = arith.constant dense<0.000000e+00> : vector<8x16xf32>
    %160 = tpu.matmul %159, %4, %cst_48 {dimension_numbers = #tpu.dot_dimension_numbers<[1], [0], [0], [1], [0, 0, 1, 1], [], []>} : vector<8x32xbf16>, vector<32x16xbf16>, vector<8x16xf32> -> vector<8x16xf32>
    %161 = arith.mulf %160, %160 : vector<8x16xf32>
    %cst_49 = arith.constant dense<0.000000e+00> : vector<8xf32>
    %162 = vector.multi_reduction <add>, %161, %cst_49 [1] : vector<8x16xf32> to vector<8xf32>
    %163 = vector.shape_cast %162 : vector<8xf32> to vector<8x1xf32>
    %cst_50 = arith.constant 1.000000e-15 : f32
    %164 = vector.broadcast %cst_50 : f32 to vector<8x1xf32>
    %165 = arith.maximumf %163, %164 : vector<8x1xf32>
    %166 = math.sqrt %165 : vector<8x1xf32>
    %167 = tpu.reciprocal %158 {approx = true} : vector<8x1xf32> -> vector<8x1xf32>
    %168 = arith.mulf %166, %167 : vector<8x1xf32>
    %169 = vector.broadcast %2 : f32 to vector<8x1xf32>
    %170 = arith.mulf %169, %158 : vector<8x1xf32>
    %cst_51 = arith.constant -0.99999988 : f32
    %cst_52 = arith.constant 0.99999988 : f32
    %171 = vector.broadcast %cst_51 : f32 to vector<8x1xf32>
    %172 = arith.maximumf %171, %170 : vector<8x1xf32>
    %173 = vector.broadcast %cst_52 : f32 to vector<8x1xf32>
    %174 = arith.minimumf %173, %172 : vector<8x1xf32>
    %cst_53 = arith.constant 1.000000e+00 : f32
    %175 = vector.broadcast %cst_53 : f32 to vector<8x1xf32>
    %176 = arith.addf %175, %174 : vector<8x1xf32>
    %cst_54 = arith.constant 1.000000e+00 : f32
    %177 = vector.broadcast %cst_54 : f32 to vector<8x1xf32>
    %178 = arith.subf %177, %174 : vector<8x1xf32>
    %179 = arith.divf %176, %178 : vector<8x1xf32>
    %180 = math.log %179 : vector<8x1xf32>
    %cst_55 = arith.constant 5.000000e-01 : f32
    %181 = vector.broadcast %cst_55 : f32 to vector<8x1xf32>
    %182 = arith.mulf %181, %180 : vector<8x1xf32>
    %183 = arith.mulf %168, %182 : vector<8x1xf32>
    %184 = math.tanh %183 : vector<8x1xf32>
    %185 = vector.broadcast %184 : vector<8x1xf32> to vector<8x16xf32>
    %186 = arith.mulf %185, %160 : vector<8x16xf32>
    %187 = vector.broadcast %2 : f32 to vector<8x1xf32>
    %188 = arith.mulf %166, %187 : vector<8x1xf32>
    %189 = tpu.reciprocal %188 {approx = true} : vector<8x1xf32> -> vector<8x1xf32>
    %190 = vector.broadcast %189 : vector<8x1xf32> to vector<8x16xf32>
    %191 = arith.mulf %186, %190 : vector<8x16xf32>
    %cst_56 = arith.constant 1.000000e-15 : f32
    %192 = vector.broadcast %cst_56 : f32 to vector<8x1xf32>
    %193 = arith.cmpf ole, %163, %192 : vector<8x1xf32>
    %cst_57 = arith.constant 0.000000e+00 : f32
    %194 = vector.broadcast %cst_57 : f32 to vector<8x16xf32>
    %195 = vector.shape_cast %193 : vector<8x1xi1> to vector<8x1xi1>
    %196 = vector.broadcast %195 : vector<8x1xi1> to vector<8x16xi1>
    %197 = arith.select %196, %194, %191 : vector<8x16xi1>, vector<8x16xf32>
    %198 = arith.mulf %197, %197 : vector<8x16xf32>
    %cst_58 = arith.constant dense<0.000000e+00> : vector<8xf32>
    %199 = vector.multi_reduction <add>, %198, %cst_58 [1] : vector<8x16xf32> to vector<8xf32>
    %200 = vector.shape_cast %199 : vector<8xf32> to vector<8x1xf32>
    %cst_59 = arith.constant 1.000000e-15 : f32
    %201 = vector.broadcast %cst_59 : f32 to vector<8x1xf32>
    %202 = arith.maximumf %200, %201 : vector<8x1xf32>
    %203 = math.sqrt %202 : vector<8x1xf32>
    %204 = math.sqrt %0 : f32
    %cst_60 = arith.constant 0.995999991 : f32
    %205 = arith.divf %cst_60, %204 : f32
    %206 = vector.broadcast %205 : f32 to vector<8x1xf32>
    %207 = arith.divf %206, %203 : vector<8x1xf32>
    %cst_61 = arith.constant 1.000000e+00 : f32
    %208 = vector.broadcast %cst_61 : f32 to vector<8x1xf32>
    %209 = arith.minimumf %208, %207 : vector<8x1xf32>
    %210 = vector.broadcast %209 : vector<8x1xf32> to vector<8x16xf32>
    %211 = arith.mulf %197, %210 : vector<8x16xf32>
    %212 = arith.mulf %211, %211 : vector<8x16xf32>
    %cst_62 = arith.constant dense<0.000000e+00> : vector<8xf32>
    %213 = vector.multi_reduction <add>, %212, %cst_62 [1] : vector<8x16xf32> to vector<8xf32>
    %214 = vector.shape_cast %213 : vector<8xf32> to vector<8x1xf32>
    %215 = arith.mulf %5, %5 : vector<1x16xf32>
    %cst_63 = arith.constant dense<0.000000e+00> : vector<1xf32>
    %216 = vector.multi_reduction <add>, %215, %cst_63 [1] : vector<1x16xf32> to vector<1xf32>
    %217 = vector.shape_cast %216 : vector<1xf32> to vector<1x1xf32>
    %218 = vector.broadcast %5 : vector<1x16xf32> to vector<8x16xf32>
    %219 = arith.mulf %211, %218 : vector<8x16xf32>
    %cst_64 = arith.constant dense<0.000000e+00> : vector<8xf32>
    %220 = vector.multi_reduction <add>, %219, %cst_64 [1] : vector<8x16xf32> to vector<8xf32>
    %221 = vector.shape_cast %220 : vector<8xf32> to vector<8x1xf32>
    %cst_65 = arith.constant 2.000000e+00 : f32
    %222 = arith.mulf %cst_65, %0 : f32
    %223 = vector.broadcast %222 : f32 to vector<8x1xf32>
    %224 = arith.mulf %223, %221 : vector<8x1xf32>
    %cst_66 = arith.constant 1.000000e+00 : f32
    %225 = vector.broadcast %cst_66 : f32 to vector<8x1xf32>
    %226 = arith.addf %225, %224 : vector<8x1xf32>
    %227 = vector.broadcast %0 : f32 to vector<1x1xf32>
    %228 = arith.mulf %227, %217 : vector<1x1xf32>
    %229 = vector.broadcast %228 : vector<1x1xf32> to vector<8x1xf32>
    %230 = arith.addf %226, %229 : vector<8x1xf32>
    %231 = vector.broadcast %230 : vector<8x1xf32> to vector<8x16xf32>
    %232 = arith.mulf %231, %211 : vector<8x16xf32>
    %233 = vector.broadcast %0 : f32 to vector<8x1xf32>
    %234 = arith.mulf %233, %214 : vector<8x1xf32>
    %cst_67 = arith.constant 1.000000e+00 : f32
    %235 = vector.broadcast %cst_67 : f32 to vector<8x1xf32>
    %236 = arith.subf %235, %234 : vector<8x1xf32>
    %237 = vector.broadcast %236 : vector<8x1xf32> to vector<8x16xf32>
    %238 = vector.broadcast %5 : vector<1x16xf32> to vector<8x16xf32>
    %239 = arith.mulf %237, %238 : vector<8x16xf32>
    %240 = arith.addf %232, %239 : vector<8x16xf32>
    %cst_68 = arith.constant 2.000000e+00 : f32
    %241 = arith.mulf %cst_68, %0 : f32
    %242 = vector.broadcast %241 : f32 to vector<8x1xf32>
    %243 = arith.mulf %242, %221 : vector<8x1xf32>
    %cst_69 = arith.constant 1.000000e+00 : f32
    %244 = vector.broadcast %cst_69 : f32 to vector<8x1xf32>
    %245 = arith.addf %244, %243 : vector<8x1xf32>
    %246 = arith.mulf %0, %0 : f32
    %247 = vector.broadcast %246 : f32 to vector<8x1xf32>
    %248 = arith.mulf %247, %214 : vector<8x1xf32>
    %249 = vector.broadcast %217 : vector<1x1xf32> to vector<8x1xf32>
    %250 = arith.mulf %248, %249 : vector<8x1xf32>
    %251 = arith.addf %245, %250 : vector<8x1xf32>
    %cst_70 = arith.constant 1.000000e-15 : f32
    %252 = vector.broadcast %cst_70 : f32 to vector<8x1xf32>
    %253 = arith.maximumf %251, %252 : vector<8x1xf32>
    %254 = tpu.reciprocal %253 {approx = true} : vector<8x1xf32> -> vector<8x1xf32>
    %255 = vector.broadcast %254 : vector<8x1xf32> to vector<8x16xf32>
    %256 = arith.mulf %240, %255 : vector<8x16xf32>
    %257 = arith.mulf %256, %256 : vector<8x16xf32>
    %cst_71 = arith.constant dense<0.000000e+00> : vector<8xf32>
    %258 = vector.multi_reduction <add>, %257, %cst_71 [1] : vector<8x16xf32> to vector<8xf32>
    %259 = vector.shape_cast %258 : vector<8xf32> to vector<8x1xf32>
    %cst_72 = arith.constant 1.000000e-15 : f32
    %260 = vector.broadcast %cst_72 : f32 to vector<8x1xf32>
    %261 = arith.maximumf %259, %260 : vector<8x1xf32>
    %262 = math.sqrt %261 : vector<8x1xf32>
    %263 = math.sqrt %0 : f32
    %cst_73 = arith.constant 0.995999991 : f32
    %264 = arith.divf %cst_73, %263 : f32
    %265 = vector.broadcast %264 : f32 to vector<8x1xf32>
    %266 = arith.divf %265, %262 : vector<8x1xf32>
    %cst_74 = arith.constant 1.000000e+00 : f32
    %267 = vector.broadcast %cst_74 : f32 to vector<8x1xf32>
    %268 = arith.minimumf %267, %266 : vector<8x1xf32>
    %269 = vector.broadcast %268 : vector<8x1xf32> to vector<8x16xf32>
    %270 = arith.mulf %256, %269 : vector<8x16xf32>
    %271 = arith.mulf %270, %270 : vector<8x16xf32>
    %cst_75 = arith.constant dense<0.000000e+00> : vector<8xf32>
    %272 = vector.multi_reduction <add>, %271, %cst_75 [1] : vector<8x16xf32> to vector<8xf32>
    %273 = vector.shape_cast %272 : vector<8xf32> to vector<8x1xf32>
    %cst_76 = arith.constant 1.000000e-15 : f32
    %274 = vector.broadcast %cst_76 : f32 to vector<8x1xf32>
    %275 = arith.maximumf %273, %274 : vector<8x1xf32>
    %276 = math.sqrt %275 : vector<8x1xf32>
    %277 = vector.broadcast %2 : f32 to vector<8x1xf32>
    %278 = arith.mulf %277, %276 : vector<8x1xf32>
    %cst_77 = arith.constant -0.99999988 : f32
    %cst_78 = arith.constant 0.99999988 : f32
    %279 = vector.broadcast %cst_77 : f32 to vector<8x1xf32>
    %280 = arith.maximumf %279, %278 : vector<8x1xf32>
    %281 = vector.broadcast %cst_78 : f32 to vector<8x1xf32>
    %282 = arith.minimumf %281, %280 : vector<8x1xf32>
    %cst_79 = arith.constant 1.000000e+00 : f32
    %283 = vector.broadcast %cst_79 : f32 to vector<8x1xf32>
    %284 = arith.addf %283, %282 : vector<8x1xf32>
    %cst_80 = arith.constant 1.000000e+00 : f32
    %285 = vector.broadcast %cst_80 : f32 to vector<8x1xf32>
    %286 = arith.subf %285, %282 : vector<8x1xf32>
    %287 = arith.divf %284, %286 : vector<8x1xf32>
    %288 = math.log %287 : vector<8x1xf32>
    %cst_81 = arith.constant 5.000000e-01 : f32
    %289 = vector.broadcast %cst_81 : f32 to vector<8x1xf32>
    %290 = arith.mulf %289, %288 : vector<8x1xf32>
    %291 = vector.broadcast %290 : vector<8x1xf32> to vector<8x16xf32>
    %292 = arith.mulf %291, %270 : vector<8x16xf32>
    %293 = vector.broadcast %2 : f32 to vector<8x1xf32>
    %294 = arith.mulf %276, %293 : vector<8x1xf32>
    %295 = tpu.reciprocal %294 {approx = true} : vector<8x1xf32> -> vector<8x1xf32>
    %296 = vector.broadcast %295 : vector<8x1xf32> to vector<8x16xf32>
    %297 = arith.mulf %292, %296 : vector<8x16xf32>
    %c0_82 = arith.constant 0 : index
    %c0_83 = arith.constant 0 : index
    %298 = vector.load %arg5[%c0_82, %c0_83] : memref<1x16xf32, #tpu.memory_space<vmem>>, vector<1x16xf32>
    %299 = vector.broadcast %298 : vector<1x16xf32> to vector<8x16xf32>
    %300 = arith.mulf %297, %299 : vector<8x16xf32>
    %cst_84 = arith.constant dense<0.000000e+00> : vector<8xf32>
    %301 = vector.multi_reduction <add>, %300, %cst_84 [1] : vector<8x16xf32> to vector<8xf32>
    %302 = vector.shape_cast %301 : vector<8xf32> to vector<8x1xf32>
    %c0_85 = arith.constant 0 : index
    %c0_86 = arith.constant 0 : index
    %303 = vector.load %arg6[%c0_85, %c0_86] : memref<1x16xf32, #tpu.memory_space<vmem>>, vector<1x16xf32>
    %cst_87 = arith.constant dense<0.000000e+00> : vector<1x16xf32>
    %304 = tpu.matmul %303, %151, %cst_87 {dimension_numbers = #tpu.dot_dimension_numbers<[1], [1], [0], [0], [0, 0, 1, 0], [], []>} : vector<1x16xf32>, vector<16x16xf32>, vector<1x16xf32> -> vector<1x16xf32>
    %305 = vector.broadcast %302 : vector<8x1xf32> to vector<8x16xf32>
    %306 = vector.broadcast %304 : vector<1x16xf32> to vector<8x16xf32>
    %307 = arith.addf %305, %306 : vector<8x16xf32>
    %cst_88 = arith.constant 0.000000e+00 : f32
    %308 = vector.broadcast %cst_88 : f32 to vector<8x16xf32>
    %309 = arith.cmpf ogt, %307, %308 : vector<8x16xf32>
    %cst_89 = arith.constant 2.000000e-01 : f32
    %310 = vector.broadcast %cst_89 : f32 to vector<8x16xf32>
    %311 = arith.mulf %310, %307 : vector<8x16xf32>
    %312 = arith.select %309, %307, %311 : vector<8x16xi1>, vector<8x16xf32>
    %c0_90 = arith.constant 0 : index
    %c0_91 = arith.constant 0 : index
    %313 = vector.load %arg7[%c0_90, %c0_91] : memref<8x16xf32, #tpu.memory_space<vmem>>, vector<8x16xf32>
    %cst_92 = arith.constant 0.000000e+00 : f32
    %314 = vector.broadcast %cst_92 : f32 to vector<8x16xf32>
    %315 = arith.cmpf ogt, %313, %314 : vector<8x16xf32>
    %cst_93 = arith.constant -1.000000e+09 : f32
    %316 = vector.broadcast %cst_93 : f32 to vector<8x16xf32>
    %317 = arith.select %315, %312, %316 : vector<8x16xi1>, vector<8x16xf32>
    %cst_94 = arith.constant dense<0xFF800000> : vector<8xf32>
    %318 = vector.multi_reduction <maximumf>, %317, %cst_94 [1] : vector<8x16xf32> to vector<8xf32>
    %319 = vector.shape_cast %318 : vector<8xf32> to vector<8x1xf32>
    %320 = vector.broadcast %319 : vector<8x1xf32> to vector<8x16xf32>
    %321 = arith.subf %317, %320 : vector<8x16xf32>
    %322 = math.exp %321 : vector<8x16xf32>
    %cst_95 = arith.constant 0.000000e+00 : f32
    %323 = vector.broadcast %cst_95 : f32 to vector<8x16xf32>
    %324 = arith.select %315, %322, %323 : vector<8x16xi1>, vector<8x16xf32>
    %cst_96 = arith.constant dense<0.000000e+00> : vector<8xf32>
    %325 = vector.multi_reduction <add>, %324, %cst_96 [1] : vector<8x16xf32> to vector<8xf32>
    %326 = vector.shape_cast %325 : vector<8xf32> to vector<8x1xf32>
    %cst_97 = arith.constant 1.000000e-15 : f32
    %327 = vector.broadcast %cst_97 : f32 to vector<8x1xf32>
    %328 = arith.maximumf %326, %327 : vector<8x1xf32>
    %329 = tpu.reciprocal %328 {approx = true} : vector<8x1xf32> -> vector<8x1xf32>
    %330 = vector.broadcast %329 : vector<8x1xf32> to vector<8x16xf32>
    %331 = arith.mulf %324, %330 : vector<8x16xf32>
    %332 = arith.truncf %331 : vector<8x16xf32> to vector<8x16xbf16>
    %333 = arith.truncf %151 : vector<16x16xf32> to vector<16x16xbf16>
    %cst_98 = arith.constant dense<0.000000e+00> : vector<8x16xf32>
    %334 = tpu.matmul %332, %333, %cst_98 {dimension_numbers = #tpu.dot_dimension_numbers<[1], [0], [0], [1], [0, 0, 1, 1], [], []>} : vector<8x16xbf16>, vector<16x16xbf16>, vector<8x16xf32> -> vector<8x16xf32>
    %cst_99 = arith.constant 3.10630298 : f32
    %335 = arith.divf %cst_99, %2 : f32
    %336 = arith.mulf %334, %334 : vector<8x16xf32>
    %cst_100 = arith.constant dense<0.000000e+00> : vector<8xf32>
    %337 = vector.multi_reduction <add>, %336, %cst_100 [1] : vector<8x16xf32> to vector<8xf32>
    %338 = vector.shape_cast %337 : vector<8xf32> to vector<8x1xf32>
    %cst_101 = arith.constant 1.000000e-15 : f32
    %339 = vector.broadcast %cst_101 : f32 to vector<8x1xf32>
    %340 = arith.maximumf %338, %339 : vector<8x1xf32>
    %341 = math.sqrt %340 : vector<8x1xf32>
    %342 = vector.broadcast %335 : f32 to vector<8x1xf32>
    %343 = arith.divf %342, %341 : vector<8x1xf32>
    %cst_102 = arith.constant 1.000000e+00 : f32
    %344 = vector.broadcast %cst_102 : f32 to vector<8x1xf32>
    %345 = arith.minimumf %344, %343 : vector<8x1xf32>
    %346 = vector.broadcast %345 : vector<8x1xf32> to vector<8x16xf32>
    %347 = arith.mulf %334, %346 : vector<8x16xf32>
    %cst_103 = arith.constant 0.000000e+00 : f32
    %348 = vector.broadcast %cst_103 : f32 to vector<8x16xf32>
    %349 = arith.maximumf %347, %348 : vector<8x16xf32>
    %350 = arith.mulf %349, %349 : vector<8x16xf32>
    %cst_104 = arith.constant dense<0.000000e+00> : vector<8xf32>
    %351 = vector.multi_reduction <add>, %350, %cst_104 [1] : vector<8x16xf32> to vector<8xf32>
    %352 = vector.shape_cast %351 : vector<8xf32> to vector<8x1xf32>
    %cst_105 = arith.constant 1.000000e-15 : f32
    %353 = vector.broadcast %cst_105 : f32 to vector<8x1xf32>
    %354 = arith.maximumf %352, %353 : vector<8x1xf32>
    %355 = math.sqrt %354 : vector<8x1xf32>
    %356 = vector.broadcast %3 : f32 to vector<8x1xf32>
    %357 = arith.mulf %356, %355 : vector<8x1xf32>
    %358 = math.tanh %357 : vector<8x1xf32>
    %359 = vector.broadcast %358 : vector<8x1xf32> to vector<8x16xf32>
    %360 = arith.mulf %359, %349 : vector<8x16xf32>
    %361 = vector.broadcast %3 : f32 to vector<8x1xf32>
    %362 = arith.mulf %361, %355 : vector<8x1xf32>
    %363 = tpu.reciprocal %362 {approx = true} : vector<8x1xf32> -> vector<8x1xf32>
    %364 = vector.broadcast %363 : vector<8x1xf32> to vector<8x16xf32>
    %365 = arith.mulf %360, %364 : vector<8x16xf32>
    %366 = arith.mulf %365, %365 : vector<8x16xf32>
    %cst_106 = arith.constant dense<0.000000e+00> : vector<8xf32>
    %367 = vector.multi_reduction <add>, %366, %cst_106 [1] : vector<8x16xf32> to vector<8xf32>
    %368 = vector.shape_cast %367 : vector<8xf32> to vector<8x1xf32>
    %cst_107 = arith.constant 1.000000e-15 : f32
    %369 = vector.broadcast %cst_107 : f32 to vector<8x1xf32>
    %370 = arith.maximumf %368, %369 : vector<8x1xf32>
    %371 = math.sqrt %370 : vector<8x1xf32>
    %372 = math.sqrt %1 : f32
    %cst_108 = arith.constant 0.995999991 : f32
    %373 = arith.divf %cst_108, %372 : f32
    %374 = vector.broadcast %373 : f32 to vector<8x1xf32>
    %375 = arith.divf %374, %371 : vector<8x1xf32>
    %cst_109 = arith.constant 1.000000e+00 : f32
    %376 = vector.broadcast %cst_109 : f32 to vector<8x1xf32>
    %377 = arith.minimumf %376, %375 : vector<8x1xf32>
    %378 = vector.broadcast %377 : vector<8x1xf32> to vector<8x16xf32>
    %379 = arith.mulf %365, %378 : vector<8x16xf32>
    %c0_110 = arith.constant 0 : index
    %c0_111 = arith.constant 0 : index
    %380 = vector.load %arg10[%c0_110, %c0_111] : memref<8x16xf32, #tpu.memory_space<vmem>>, vector<8x16xf32>
    tpu.vector_store %arg10[%c0_110, %c0_111], %379 {strides = array<i32>} : memref<8x16xf32, #tpu.memory_space<vmem>>, vector<8x16xf32>,
    return
  }
  func.func @transform_0(%arg0: i32) -> (i32, i32) {
    %c0_i32 = arith.constant 0 : i32
    %c0_i32_0 = arith.constant 0 : i32
    %c0_i32_1 = arith.constant 0 : i32
    return %c0_i32, %c0_i32_0 : i32, i32
  }
  func.func @transform_1(%arg0: i32) -> (i32, i32) {
    %c0_i32 = arith.constant 0 : i32
    %c0_i32_0 = arith.constant 0 : i32
    return %arg0, %c0_i32 : i32, i32
  }
  func.func @transform_2(%arg0: i32) -> (i32, i32) {
    %c0_i32 = arith.constant 0 : i32
    %c0_i32_0 = arith.constant 0 : i32
    %c0_i32_1 = arith.constant 0 : i32
    return %c0_i32, %c0_i32_0 : i32, i32
  }
  func.func @transform_3(%arg0: i32) -> (i32, i32) {
    %c0_i32 = arith.constant 0 : i32
    %c0_i32_0 = arith.constant 0 : i32
    %c0_i32_1 = arith.constant 0 : i32
    return %c0_i32, %c0_i32_0 : i32, i32
  }
  func.func @transform_4(%arg0: i32) -> (i32, i32) {
    %c0_i32 = arith.constant 0 : i32
    %c0_i32_0 = arith.constant 0 : i32
    %c0_i32_1 = arith.constant 0 : i32
    return %c0_i32, %c0_i32_0 : i32, i32
  }
  func.func @transform_5(%arg0: i32) -> (i32, i32) {
    %c0_i32 = arith.constant 0 : i32
    %c0_i32_0 = arith.constant 0 : i32
    %c0_i32_1 = arith.constant 0 : i32
    return %c0_i32, %c0_i32_0 : i32, i32
  }
  func.func @transform_6(%arg0: i32) -> (i32, i32) {
    %c0_i32 = arith.constant 0 : i32
    %c0_i32_0 = arith.constant 0 : i32
    return %arg0, %c0_i32 : i32, i32
  }
  func.func @transform_7(%arg0: i32) -> (i32, i32) {
    %c0_i32 = arith.constant 0 : i32
    %c0_i32_0 = arith.constant 0 : i32
    %c0_i32_1 = arith.constant 0 : i32
    return %c0_i32, %c0_i32_0 : i32, i32
  }
  func.func @transform_8(%arg0: i32) -> (i32, i32) {
    %c0_i32 = arith.constant 0 : i32
    %c0_i32_0 = arith.constant 0 : i32
    %c0_i32_1 = arith.constant 0 : i32
    return %c0_i32, %c0_i32_0 : i32, i32
  }
  func.func @transform_9(%arg0: i32) -> (i32, i32) {
    %c0_i32 = arith.constant 0 : i32
    %c0_i32_0 = arith.constant 0 : i32
    return %arg0, %c0_i32 : i32, i32
  }
}

module attributes {stable_mosaic.version = 11 : i64} {
  func.func @_fermi_dirac_kernel(%arg0: i32, %arg1: memref<16x4xf32, #tpu.memory_space<vmem>>, %arg2: memref<16x4xf32, #tpu.memory_space<vmem>>, %arg3: memref<1x1xf32, #tpu.memory_space<smem>>, %arg4: memref<1x4xf32, #tpu.memory_space<vmem>>) attributes {dimension_semantics = [#tpu.dimension_semantics<arbitrary>], iteration_bounds = array<i64: 1>, scalar_prefetch = 0 : i64, scratch_operands = 0 : i64, tpu.core_type = #tpu.core_type<tc>, window_params = [{pipeline_mode = #tpu.pipeline_mode<synchronous>, transform_indices = @transform_0, window_bounds = array<i64: 16, 4>}, {pipeline_mode = #tpu.pipeline_mode<synchronous>, transform_indices = @transform_1, window_bounds = array<i64: 16, 4>}, {transform_indices = @transform_2, window_bounds = array<i64: 1, 1>}, {pipeline_mode = #tpu.pipeline_mode<synchronous>, transform_indices = @transform_3, window_bounds = array<i64: 1, 4>}]} {
    %c0 = arith.constant 0 : index
    %c0_0 = arith.constant 0 : index
    %0 = memref.load %arg3[%c0, %c0_0] : memref<1x1xf32, #tpu.memory_space<smem>>
    %1 = math.sqrt %0 : f32
    %c0_1 = arith.constant 0 : index
    %c0_2 = arith.constant 0 : index
    %2 = vector.load %arg1[%c0_1, %c0_2] : memref<16x4xf32, #tpu.memory_space<vmem>>, vector<16x4xf32>
    %3 = arith.mulf %2, %2 : vector<16x4xf32>
    %cst = arith.constant dense<0.000000e+00> : vector<4xf32>
    %4 = vector.multi_reduction <add>, %3, %cst [0] : vector<16x4xf32> to vector<4xf32>
    %5 = vector.shape_cast %4 : vector<4xf32> to vector<1x4xf32>
    %cst_3 = arith.constant 1.000000e-15 : f32
    %6 = vector.broadcast %cst_3 : f32 to vector<1x4xf32>
    %7 = arith.maximumf %5, %6 : vector<1x4xf32>
    %8 = math.sqrt %7 : vector<1x4xf32>
    %9 = math.sqrt %0 : f32
    %cst_4 = arith.constant 0.995999991 : f32
    %10 = arith.divf %cst_4, %9 : f32
    %11 = vector.broadcast %10 : f32 to vector<1x4xf32>
    %12 = arith.divf %11, %8 : vector<1x4xf32>
    %cst_5 = arith.constant 1.000000e+00 : f32
    %13 = vector.broadcast %cst_5 : f32 to vector<1x4xf32>
    %14 = arith.minimumf %13, %12 : vector<1x4xf32>
    %15 = vector.broadcast %14 : vector<1x4xf32> to vector<16x4xf32>
    %16 = arith.mulf %2, %15 : vector<16x4xf32>
    %c0_6 = arith.constant 0 : index
    %c0_7 = arith.constant 0 : index
    %17 = vector.load %arg2[%c0_6, %c0_7] : memref<16x4xf32, #tpu.memory_space<vmem>>, vector<16x4xf32>
    %18 = arith.mulf %17, %17 : vector<16x4xf32>
    %cst_8 = arith.constant dense<0.000000e+00> : vector<4xf32>
    %19 = vector.multi_reduction <add>, %18, %cst_8 [0] : vector<16x4xf32> to vector<4xf32>
    %20 = vector.shape_cast %19 : vector<4xf32> to vector<1x4xf32>
    %cst_9 = arith.constant 1.000000e-15 : f32
    %21 = vector.broadcast %cst_9 : f32 to vector<1x4xf32>
    %22 = arith.maximumf %20, %21 : vector<1x4xf32>
    %23 = math.sqrt %22 : vector<1x4xf32>
    %24 = math.sqrt %0 : f32
    %cst_10 = arith.constant 0.995999991 : f32
    %25 = arith.divf %cst_10, %24 : f32
    %26 = vector.broadcast %25 : f32 to vector<1x4xf32>
    %27 = arith.divf %26, %23 : vector<1x4xf32>
    %cst_11 = arith.constant 1.000000e+00 : f32
    %28 = vector.broadcast %cst_11 : f32 to vector<1x4xf32>
    %29 = arith.minimumf %28, %27 : vector<1x4xf32>
    %30 = vector.broadcast %29 : vector<1x4xf32> to vector<16x4xf32>
    %31 = arith.mulf %17, %30 : vector<16x4xf32>
    %cst_12 = arith.constant 0.000000e+00 : f32
    %32 = vector.broadcast %cst_12 : f32 to vector<16x4xf32>
    %33 = arith.subf %32, %16 : vector<16x4xf32>
    %34 = arith.mulf %33, %33 : vector<16x4xf32>
    %cst_13 = arith.constant dense<0.000000e+00> : vector<4xf32>
    %35 = vector.multi_reduction <add>, %34, %cst_13 [0] : vector<16x4xf32> to vector<4xf32>
    %36 = vector.shape_cast %35 : vector<4xf32> to vector<1x4xf32>
    %37 = arith.mulf %31, %31 : vector<16x4xf32>
    %cst_14 = arith.constant dense<0.000000e+00> : vector<4xf32>
    %38 = vector.multi_reduction <add>, %37, %cst_14 [0] : vector<16x4xf32> to vector<4xf32>
    %39 = vector.shape_cast %38 : vector<4xf32> to vector<1x4xf32>
    %40 = arith.mulf %33, %31 : vector<16x4xf32>
    %cst_15 = arith.constant dense<0.000000e+00> : vector<4xf32>
    %41 = vector.multi_reduction <add>, %40, %cst_15 [0] : vector<16x4xf32> to vector<4xf32>
    %42 = vector.shape_cast %41 : vector<4xf32> to vector<1x4xf32>
    %cst_16 = arith.constant 2.000000e+00 : f32
    %43 = arith.mulf %cst_16, %0 : f32
    %44 = vector.broadcast %43 : f32 to vector<1x4xf32>
    %45 = arith.mulf %44, %42 : vector<1x4xf32>
    %cst_17 = arith.constant 1.000000e+00 : f32
    %46 = vector.broadcast %cst_17 : f32 to vector<1x4xf32>
    %47 = arith.addf %46, %45 : vector<1x4xf32>
    %48 = vector.broadcast %0 : f32 to vector<1x4xf32>
    %49 = arith.mulf %48, %39 : vector<1x4xf32>
    %50 = arith.addf %47, %49 : vector<1x4xf32>
    %51 = vector.broadcast %50 : vector<1x4xf32> to vector<16x4xf32>
    %52 = arith.mulf %51, %33 : vector<16x4xf32>
    %53 = vector.broadcast %0 : f32 to vector<1x4xf32>
    %54 = arith.mulf %53, %36 : vector<1x4xf32>
    %cst_18 = arith.constant 1.000000e+00 : f32
    %55 = vector.broadcast %cst_18 : f32 to vector<1x4xf32>
    %56 = arith.subf %55, %54 : vector<1x4xf32>
    %57 = vector.broadcast %56 : vector<1x4xf32> to vector<16x4xf32>
    %58 = arith.mulf %57, %31 : vector<16x4xf32>
    %59 = arith.addf %52, %58 : vector<16x4xf32>
    %cst_19 = arith.constant 2.000000e+00 : f32
    %60 = arith.mulf %cst_19, %0 : f32
    %61 = vector.broadcast %60 : f32 to vector<1x4xf32>
    %62 = arith.mulf %61, %42 : vector<1x4xf32>
    %cst_20 = arith.constant 1.000000e+00 : f32
    %63 = vector.broadcast %cst_20 : f32 to vector<1x4xf32>
    %64 = arith.addf %63, %62 : vector<1x4xf32>
    %65 = arith.mulf %0, %0 : f32
    %66 = vector.broadcast %65 : f32 to vector<1x4xf32>
    %67 = arith.mulf %66, %36 : vector<1x4xf32>
    %68 = arith.mulf %67, %39 : vector<1x4xf32>
    %69 = arith.addf %64, %68 : vector<1x4xf32>
    %cst_21 = arith.constant 1.000000e-15 : f32
    %70 = vector.broadcast %cst_21 : f32 to vector<1x4xf32>
    %71 = arith.maximumf %69, %70 : vector<1x4xf32>
    %72 = tpu.reciprocal %71 {approx = true} : vector<1x4xf32> -> vector<1x4xf32>
    %73 = vector.broadcast %72 : vector<1x4xf32> to vector<16x4xf32>
    %74 = arith.mulf %59, %73 : vector<16x4xf32>
    %cst_22 = arith.constant 2.000000e+00 : f32
    %75 = arith.divf %cst_22, %1 : f32
    %76 = arith.mulf %74, %74 : vector<16x4xf32>
    %cst_23 = arith.constant dense<0.000000e+00> : vector<4xf32>
    %77 = vector.multi_reduction <add>, %76, %cst_23 [0] : vector<16x4xf32> to vector<4xf32>
    %78 = vector.shape_cast %77 : vector<4xf32> to vector<1x4xf32>
    %cst_24 = arith.constant 1.000000e-15 : f32
    %79 = vector.broadcast %cst_24 : f32 to vector<1x4xf32>
    %80 = arith.maximumf %78, %79 : vector<1x4xf32>
    %81 = math.sqrt %80 : vector<1x4xf32>
    %82 = vector.broadcast %1 : f32 to vector<1x4xf32>
    %83 = arith.mulf %82, %81 : vector<1x4xf32>
    %cst_25 = arith.constant -0.99999988 : f32
    %cst_26 = arith.constant 0.99999988 : f32
    %84 = vector.broadcast %cst_25 : f32 to vector<1x4xf32>
    %85 = arith.maximumf %84, %83 : vector<1x4xf32>
    %86 = vector.broadcast %cst_26 : f32 to vector<1x4xf32>
    %87 = arith.minimumf %86, %85 : vector<1x4xf32>
    %cst_27 = arith.constant 1.000000e+00 : f32
    %88 = vector.broadcast %cst_27 : f32 to vector<1x4xf32>
    %89 = arith.addf %88, %87 : vector<1x4xf32>
    %cst_28 = arith.constant 1.000000e+00 : f32
    %90 = vector.broadcast %cst_28 : f32 to vector<1x4xf32>
    %91 = arith.subf %90, %87 : vector<1x4xf32>
    %92 = arith.divf %89, %91 : vector<1x4xf32>
    %93 = math.log %92 : vector<1x4xf32>
    %cst_29 = arith.constant 5.000000e-01 : f32
    %94 = vector.broadcast %cst_29 : f32 to vector<1x4xf32>
    %95 = arith.mulf %94, %93 : vector<1x4xf32>
    %96 = vector.broadcast %75 : f32 to vector<1x4xf32>
    %97 = arith.mulf %96, %95 : vector<1x4xf32>
    %98 = arith.mulf %97, %97 : vector<1x4xf32>
    %cst_30 = arith.constant 2.000000e+00 : f32
    %99 = vector.broadcast %cst_30 : f32 to vector<1x4xf32>
    %100 = arith.subf %98, %99 : vector<1x4xf32>
    %cst_31 = arith.constant 1.000000e+00 : f32
    %101 = vector.broadcast %cst_31 : f32 to vector<1x4xf32>
    %102 = arith.divf %100, %101 : vector<1x4xf32>
    %103 = math.absf %102 : vector<1x4xf32>
    %cst_32 = arith.constant 0.000000e+00 : f32
    %104 = vector.broadcast %cst_32 : f32 to vector<1x4xf32>
    %105 = arith.subf %104, %103 : vector<1x4xf32>
    %106 = math.exp %105 : vector<1x4xf32>
    %cst_33 = arith.constant 1.000000e+00 : f32
    %107 = vector.broadcast %cst_33 : f32 to vector<1x4xf32>
    %108 = arith.addf %107, %106 : vector<1x4xf32>
    %109 = tpu.reciprocal %108 {approx = true} : vector<1x4xf32> -> vector<1x4xf32>
    %cst_34 = arith.constant 0.000000e+00 : f32
    %110 = vector.broadcast %cst_34 : f32 to vector<1x4xf32>
    %111 = arith.cmpf oge, %102, %110 : vector<1x4xf32>
    %112 = arith.mulf %106, %109 : vector<1x4xf32>
    %113 = arith.select %111, %112, %109 : vector<1x4xi1>, vector<1x4xf32>
    %cst_35 = arith.constant 0.000000e+00 : f32
    %cst_36 = arith.constant 1.000000e+00 : f32
    %114 = vector.broadcast %cst_35 : f32 to vector<1x4xf32>
    %115 = arith.maximumf %114, %113 : vector<1x4xf32>
    %116 = vector.broadcast %cst_36 : f32 to vector<1x4xf32>
    %117 = arith.minimumf %116, %115 : vector<1x4xf32>
    %c0_37 = arith.constant 0 : index
    %c0_38 = arith.constant 0 : index
    %118 = vector.load %arg4[%c0_37, %c0_38] : memref<1x4xf32, #tpu.memory_space<vmem>>, vector<1x4xf32>
    tpu.vector_store %arg4[%c0_37, %c0_38], %117 {strides = array<i32>} : memref<1x4xf32, #tpu.memory_space<vmem>>, vector<1x4xf32>,
    return
  }
  func.func @transform_0(%arg0: i32) -> (i32, i32) {
    %c0_i32 = arith.constant 0 : i32
    %c0_i32_0 = arith.constant 0 : i32
    %c0_i32_1 = arith.constant 0 : i32
    return %c0_i32, %c0_i32_0 : i32, i32
  }
  func.func @transform_1(%arg0: i32) -> (i32, i32) {
    %c0_i32 = arith.constant 0 : i32
    %c0_i32_0 = arith.constant 0 : i32
    %c0_i32_1 = arith.constant 0 : i32
    return %c0_i32, %c0_i32_0 : i32, i32
  }
  func.func @transform_2(%arg0: i32) -> (i32, i32) {
    %c0_i32 = arith.constant 0 : i32
    %c0_i32_0 = arith.constant 0 : i32
    %c0_i32_1 = arith.constant 0 : i32
    return %c0_i32, %c0_i32_0 : i32, i32
  }
  func.func @transform_3(%arg0: i32) -> (i32, i32) {
    %c0_i32 = arith.constant 0 : i32
    %c0_i32_0 = arith.constant 0 : i32
    %c0_i32_1 = arith.constant 0 : i32
    return %c0_i32, %c0_i32_0 : i32, i32
  }
}

</mosaic_0001>

<llo_original>
// kernel: hgat_model_forward.5
$region0: #{hgat_model_forward.5}
  #allocation0 [shape = 'u32[]', space=smem, size = 0x4, offset = 0x4, fixed_abs, tag = 'smem constant byte address 0x4 - core index']
  #allocation1 [shape = 'u32[72,128]{1,0:T(1,128)}', space=vmem, size = 0x9000, scoped, tag = 'internal scratch']
  #allocation2 [shape = 'f32[1,1]{1,0:T(1,128)S(6)}', space=smem, size = 0x200, scoped, tag = 'scoped memory for hgat_model_forward.5']
  %s0 = inlined_call_operand.vmem [shape: f32[16,4], index: 0, kind: input, shape index: {}]
  %s1 = inlined_call_operand.vmem [shape: f32[16,4], index: 1, kind: input, shape index: {}]
  %s2 = inlined_call_operand.<no memory space> [shape: f32[1,1], index: 2, kind: input, shape index: {}]
  %s3 = inlined_call_operand.hbm [shape: f32[1,4], index: 3, kind: output, shape index: {}]
  %s4 = sld [smem:[#allocation0]]
  $region22: #{hgat_model_forward.5} parent=0
    _
  %s6 = ssub.s32 1, %s4
  %s7 = scalar_select 0, %s6, %s4
  %8 = sst [smem:[#allocation2]] %s2
  $region1: #{hgat_model_forward.5} parent=0
    #allocation3 [shape = 'u8[512]{0}', space=vmem, size = 0x400, scoped, tag = 'output window, operand 0, single buffered']
    #allocation4 [shape = 's32[1]{0}', space=sflag, size = 0x4, scoped, tag = 'scoped memory for hgat_model_forward.5']
    %9 = vsyncpa [#allocation4], 0
    // Predicated region
    $region2: #{hgat_model_forward.5} parent=1 // pred_check
      _
    $region3: #{hgat_model_forward.5} parent=1 // pred_check_branch
      %11 = sbr.rel (0) target = $region5
    $region4: #{hgat_model_forward.5} parent=1 // pred_region
      _
    $region5: #{hgat_model_forward.5} parent=1 // pred_fallthru
      _
    // Predicated region
    $region6: #{hgat_model_forward.5} parent=1 // pred_check
      _
    $region7: #{hgat_model_forward.5} parent=1 // pred_check_branch
      %13 = sbr.rel (0) target = $region9
    $region8: #{hgat_model_forward.5} parent=1 // pred_region
      _
    $region9: #{hgat_model_forward.5} parent=1 // pred_fallthru
      _
    // Predicated region
    $region10: #{hgat_model_forward.5} parent=1 // pred_check
      _
    $region11: #{hgat_model_forward.5} parent=1 // pred_check_branch
      %15 = sbr.rel (0) target = $region13
    $region12: #{hgat_model_forward.5} parent=1 // pred_region
      _
    $region13: #{hgat_model_forward.5} parent=1 // pred_fallthru
      _
    %s16 = sld [smem:[#allocation2]]
    %v17 = vstv %s16
    %v18 = vrsqrt.pop %v17
    %v19 = vmul.f32 %v18, %v17
    %v20 = vmul.f32 %v19, %v18
    %v21 = vmul.f32 0.5, %v20
    %v22 = vsub.f32 1.5, %v21
    %v23 = vmul.f32 %v18, %v22
    %v24 = vmul.f32 %v17, %v23
    %vm25 = vcmp.eq.f32.partialorder %v17, inf
    %v26 = vsel %vm25, %v17, %v24
    %vm27 = vcmp.eq.f32.partialorder %v17, 0.0
    %v28 = vand.u32 %v17, 2147483648
    %v29 = vsel %vm27, %v28, %v26
    %s30 = vtos %v29
    %v31 = vld [vmem:[%s0] sm:$0xff]
    %v32 = vld [vmem:[%s0 + $0x8] sm:$0xff]
    %v33 = vmul.f32 %v31, %v31
    %v34 = vmul.f32 %v32, %v32
    %vm35 = vcmask 31744
    %v36 = vsel %vm35, %v33, 0.0
    %v37 = vsel %vm35, %v34, 0.0
    %v38 = vadd.f32 %v36, %v37
    %v39 = vrot.slane %v38, 4
    %v40 = vadd.f32 %v38, %v39
    %v41 = vrot.slane %v40, 2
    %v42 = vadd.f32 %v40, %v41
    %v43 = vrot.slane %v42, 1
    %v44 = vadd.f32 %v42, %v43
    %v45 = vmax.f32 %v44, 1e-15
    %v46 = vrsqrt.pop %v45
    %v47 = vmul.f32 %v46, %v45
    %v48 = vmul.f32 %v47, %v46
    %v49 = vmul.f32 0.5, %v48
    %v50 = vsub.f32 1.5, %v49
    %v51 = vmul.f32 %v46, %v50
    %v52 = vmul.f32 %v45, %v51
    %vm53 = vcmp.eq.f32.partialorder %v45, inf
    %v54 = vsel %vm53, %v45, %v52
    %vm55 = vcmp.eq.f32.partialorder %v45, 0.0
    %v56 = vand.u32 %v45, 2147483648
    %v57 = vsel %vm55, %v56, %v54
    %v58 = vstv %s30
    %v59 = vrcp.pop %v58
    %v60 = vmul.f32 %v58, %v59
    %v61 = vsub.f32 1.0, %v60
    %v62 = vmul.f32 %v59, %v61
    %v63 = vadd.f32 %v59, %v62
    %vm64 = vweird.f32 %v58
    %vm65 = vweird.f32 %v59
    %vm66 = vmor %vm64, %vm65
    %v67 = vsel %vm66, %v59, %v63
    %v68 = vand.u32 2147483647, %v58
    %vm69 = vcmp.eq.f32.partialorder %v68, 8.507059e+37
    %v70 = vand.u32 %v58, 2147483648
    %v71 = vor.u32 1.1754944e-38, %v70
    %v72 = vsel %vm69, %v71, %v67
    %s73 = vtos %v72
    %s74 = smul.f32 0.996, %s73
    %v75 = vstv %s74
    %v76 = vrcp.pop %v57
    %v77 = vmul.f32 %v57, %v76
    %v78 = vsub.f32 1.0, %v77
    %v79 = vmul.f32 %v76, %v78
    %v80 = vadd.f32 %v76, %v79
    %vm81 = vweird.f32 %v57
    %vm82 = vweird.f32 %v76
    %vm83 = vmor %vm81, %vm82
    %v84 = vsel %vm83, %v76, %v80
    %v85 = vand.u32 2147483647, %v57
    %vm86 = vcmp.eq.f32.partialorder %v85, 8.507059e+37
    %v87 = vand.u32 %v57, 2147483648
    %v88 = vor.u32 1.1754944e-38, %v87
    %v89 = vsel %vm86, %v88, %v84
    %v90 = vmul.f32 %v75, %v89
    %v91 = vmin.f32 %v90, 1.0
    %v92 = vmul.f32 %v31, %v91
    %v93 = vmul.f32 %v32, %v91
    %v94 = vld [vmem:[%s1] sm:$0xff]
    %v95 = vld [vmem:[%s1 + $0x8] sm:$0xff]
    %v96 = vmul.f32 %v94, %v94
    %v97 = vmul.f32 %v95, %v95
    %v98 = vsel %vm35, %v96, 0.0
    %v99 = vsel %vm35, %v97, 0.0
    %v100 = vadd.f32 %v98, %v99
    %v101 = vrot.slane %v100, 4
    %v102 = vadd.f32 %v100, %v101
    %v103 = vrot.slane %v102, 2
    %v104 = vadd.f32 %v102, %v103
    %v105 = vrot.slane %v104, 1
    %v106 = vadd.f32 %v104, %v105
    %v107 = vmax.f32 %v106, 1e-15
    %v108 = vrsqrt.pop %v107
    %v109 = vmul.f32 %v108, %v107
    %v110 = vmul.f32 %v109, %v108
    %v111 = vmul.f32 0.5, %v110
    %v112 = vsub.f32 1.5, %v111
    %v113 = vmul.f32 %v108, %v112
    %v114 = vmul.f32 %v107, %v113
    %vm115 = vcmp.eq.f32.partialorder %v107, inf
    %v116 = vsel %vm115, %v107, %v114
    %vm117 = vcmp.eq.f32.partialorder %v107, 0.0
    %v118 = vand.u32 %v107, 2147483648
    %v119 = vsel %vm117, %v118, %v116
    %v120 = vrcp.pop %v119
    %v121 = vmul.f32 %v119, %v120
    %v122 = vsub.f32 1.0, %v121
    %v123 = vmul.f32 %v120, %v122
    %v124 = vadd.f32 %v120, %v123
    %vm125 = vweird.f32 %v119
    %vm126 = vweird.f32 %v120
    %vm127 = vmor %vm125, %vm126
    %v128 = vsel %vm127, %v120, %v124
    %v129 = vand.u32 2147483647, %v119
    %vm130 = vcmp.eq.f32.partialorder %v129, 8.507059e+37
    %v131 = vand.u32 %v119, 2147483648
    %v132 = vor.u32 1.1754944e-38, %v131
    %v133 = vsel %vm130, %v132, %v128
    %v134 = vmul.f32 %v75, %v133
    %v135 = vmin.f32 %v134, 1.0
    %v136 = vmul.f32 %v94, %v135
    %v137 = vmul.f32 %v95, %v135
    %v138 = vsub.f32 0.0, %v92
    %v139 = vsub.f32 0.0, %v93
    %v140 = vmul.f32 %v138, %v138
    %v141 = vmul.f32 %v139, %v139
    %v142 = vsel %vm35, %v140, 0.0
    %v143 = vsel %vm35, %v141, 0.0
    %v144 = vadd.f32 %v142, %v143
    %v145 = vrot.slane %v144, 4
    %v146 = vadd.f32 %v144, %v145
    %v147 = vrot.slane %v146, 2
    %v148 = vadd.f32 %v146, %v147
    %v149 = vrot.slane %v148, 1
    %v150 = vadd.f32 %v148, %v149
    %v151 = vmul.f32 %v136, %v136
    %v152 = vmul.f32 %v137, %v137
    %v153 = vsel %vm35, %v151, 0.0
    %v154 = vsel %vm35, %v152, 0.0
    %v155 = vadd.f32 %v153, %v154
    %v156 = vrot.slane %v155, 4
    %v157 = vadd.f32 %v155, %v156
    %v158 = vrot.slane %v157, 2
    %v159 = vadd.f32 %v157, %v158
    %v160 = vrot.slane %v159, 1
    %v161 = vadd.f32 %v159, %v160
    %v162 = vmul.f32 %v138, %v136
    %v163 = vmul.f32 %v139, %v137
    %v164 = vsel %vm35, %v162, 0.0
    %v165 = vsel %vm35, %v163, 0.0
    %v166 = vadd.f32 %v164, %v165
    %v167 = vrot.slane %v166, 4
    %v168 = vadd.f32 %v166, %v167
    %v169 = vrot.slane %v168, 2
    %v170 = vadd.f32 %v168, %v169
    %v171 = vrot.slane %v170, 1
    %v172 = vadd.f32 %v170, %v171
    %s173 = smul.f32 %s16, 2.0
    %v174 = vstv %s173
    %v175 = vmul.f32 %v174, %v172
    %v176 = vadd.f32 %v175, 1.0
    %v177 = vstv %s16
    %v178 = vmul.f32 %v177, %v161
    %v179 = vadd.f32 %v176, %v178
    %v180 = vmul.f32 %v179, %v138
    %v181 = vmul.f32 %v179, %v139
    %v182 = vmul.f32 %v177, %v150
    %v183 = vsub.f32 1.0, %v182
    %v184 = vmul.f32 %v183, %v136
    %v185 = vmul.f32 %v183, %v137
    %v186 = vadd.f32 %v180, %v184
    %v187 = vadd.f32 %v181, %v185
    %s188 = smul.f32 %s16, %s16
    %v189 = vstv %s188
    %v190 = vmul.f32 %v189, %v150
    %v191 = vmul.f32 %v190, %v161
    %v192 = vadd.f32 %v176, %v191
    %v193 = vmax.f32 %v192, 1e-15
    %v194 = vrcp.pop %v193
    %v195 = vmul.f32 %v186, %v194
    %v196 = vmul.f32 %v187, %v194
    %v197 = vstv %s30
    %v198 = vrcp.pop %v197
    %v199 = vmul.f32 %v197, %v198
    %v200 = vsub.f32 1.0, %v199
    %v201 = vmul.f32 %v198, %v200
    %v202 = vadd.f32 %v198, %v201
    %vm203 = vweird.f32 %v197
    %vm204 = vweird.f32 %v198
    %vm205 = vmor %vm203, %vm204
    %v206 = vsel %vm205, %v198, %v202
    %v207 = vand.u32 2147483647, %v197
    %vm208 = vcmp.eq.f32.partialorder %v207, 8.507059e+37
    %v209 = vand.u32 %v197, 2147483648
    %v210 = vor.u32 1.1754944e-38, %v209
    %v211 = vsel %vm208, %v210, %v206
    %s212 = vtos %v211
    %s213 = smul.f32 2.0, %s212
    %v214 = vmul.f32 %v195, %v195
    %v215 = vmul.f32 %v196, %v196
    %v216 = vsel %vm35, %v214, 0.0
    %v217 = vsel %vm35, %v215, 0.0
    %v218 = vadd.f32 %v216, %v217
    %v219 = vrot.slane %v218, 4
    %v220 = vadd.f32 %v218, %v219
    %v221 = vrot.slane %v220, 2
    %v222 = vadd.f32 %v220, %v221
    %v223 = vrot.slane %v222, 1
    %v224 = vadd.f32 %v222, %v223
    %v225 = vmax.f32 %v224, 1e-15
    %v226 = vrsqrt.pop %v225
    %v227 = vmul.f32 %v226, %v225
    %v228 = vmul.f32 %v227, %v226
    %v229 = vmul.f32 0.5, %v228
    %v230 = vsub.f32 1.5, %v229
    %v231 = vmul.f32 %v226, %v230
    %v232 = vmul.f32 %v225, %v231
    %vm233 = vcmp.eq.f32.partialorder %v225, inf
    %v234 = vsel %vm233, %v225, %v232
    %vm235 = vcmp.eq.f32.partialorder %v225, 0.0
    %v236 = vand.u32 %v225, 2147483648
    %v237 = vsel %vm235, %v236, %v234
    %v238 = vstv %s30
    %v239 = vmul.f32 %v238, %v237
    %v240 = vmax.f32 %v239, -0.9999999
    %v241 = vmin.f32 %v240, 0.9999999
    %v242 = vadd.f32 %v241, 1.0
    %v243 = vsub.f32 1.0, %v241
    %v244 = vrcp.pop %v243
    %v245 = vmul.f32 %v243, %v244
    %v246 = vsub.f32 1.0, %v245
    %v247 = vmul.f32 %v244, %v246
    %v248 = vadd.f32 %v244, %v247
    %vm249 = vweird.f32 %v243
    %vm250 = vweird.f32 %v244
    %vm251 = vmor %vm249, %vm250
    %v252 = vsel %vm251, %v244, %v248
    %v253 = vand.u32 2147483647, %v243
    %vm254 = vcmp.eq.f32.partialorder %v253, 8.507059e+37
    %v255 = vand.u32 %v243, 2147483648
    %v256 = vor.u32 1.1754944e-38, %v255
    %v257 = vsel %vm254, %v256, %v252
    %v258 = vmul.f32 %v242, %v257
    %v259 = vlog2.pop %v258
    %v260 = vmul.f32 %v259, 0.6931472
    %v261 = vmul.f32 %v260, 0.5
    %v262 = vstv %s213
    %v263 = vmul.f32 %v262, %v261
    %v264 = vmul.f32 %v263, %v263
    %v265 = vsub.f32 %v264, 2.0
    %v266 = vand.u32 2147483647, %v265
    %v267 = vsub.f32 0.0, %v266
    %v268 = vmul.f32 %v267, 1.442695
    %v269 = vpow.pop %v268
    %v270 = vadd.f32 %v269, 1.0
    %v271 = vrcp.pop %v270
    %vm272 = vcmp.ge.f32.partialorder %v265, 0.0
    %v273 = vmul.f32 %v269, %v271
    %v274 = vsel %vm272, %v273, %v271
    %v275 = vmax.f32 %v274, 0.0
    %v276 = vmin.f32 %v275, 1.0
    %vm277 = vcmask 24576
    %278 = vst.msk [vmem:[#allocation3] sm:$0x1] %vm277, %v276
    // Predicated region
    $region14: #{hgat_model_forward.5} parent=1 // pred_check
      _
    $region15: #{hgat_model_forward.5} parent=1 // pred_check_branch
      %280 = sbr.rel (0) target = $region17
    $region16: #{hgat_model_forward.5} parent=1 // pred_region
      %282 = vsyncadd [#allocation4], 0
      %s284 = sshll.u32 [#allocation3], 4
      %s285 = int_to_ptr.vmem [resolvable:$true] %s284
      %s286 = sshll.u32 %s3, 4
      %s287 = int_to_ptr.hbm [resolvable:$true] %s286
      %289 = dma.vmem_to_hbm [thread:$0]  %s285, 16, %s287, [#allocation4]
    $region17: #{hgat_model_forward.5} parent=1 // pred_fallthru
      _
    // Predicated region
    $region18: #{hgat_model_forward.5} parent=1 // pred_check
      _
    $region19: #{hgat_model_forward.5} parent=1 // pred_check_branch
      %291 = sbr.rel (0) target = $region21
    $region20: #{hgat_model_forward.5} parent=1 // pred_region
      %293 = dma.done [#allocation4], 16
    $region21: #{hgat_model_forward.5} parent=1 // pred_fallthru
      _
    %294 = vsyncpa [#allocation4], 1

// kernel: hgat_model_forward.4
$region0: #{hgat_model_forward.4}
  #allocation0 [shape = 'u32[]', space=smem, size = 0x4, offset = 0x4, fixed_abs, tag = 'smem constant byte address 0x4 - core index']
  #allocation1 [shape = 'u32[72,128]{1,0:T(1,128)}', space=vmem, size = 0x9000, scoped, tag = 'internal scratch']
  #allocation2 [shape = 'f32[1,1]{1,0:T(1,128)S(6)}', space=smem, size = 0x200, scoped, tag = 'scoped memory for hgat_model_forward.4']
  #allocation3 [shape = 'f32[1,1]{1,0:T(1,128)S(6)}', space=smem, size = 0x200, scoped, tag = 'scoped memory for hgat_model_forward.4']
  %s0 = inlined_call_operand.vmem [shape: f32[16,32], index: 0, kind: input, shape index: {}, may-alias: {0,1}]
  %s1 = inlined_call_operand.vmem [shape: f32[16,32], index: 1, kind: input, shape index: {}, may-alias: {0,1}]
  %s2 = inlined_call_operand.vmem [shape: bf16[32,16], index: 2, kind: input, shape index: {}]
  %s3 = inlined_call_operand.vmem [shape: f32[1,16], index: 3, kind: input, shape index: {}]
  %s4 = inlined_call_operand.vmem [shape: f32[1,16], index: 4, kind: input, shape index: {}]
  %s5 = inlined_call_operand.vmem [shape: f32[1,16], index: 5, kind: input, shape index: {}]
  %s6 = inlined_call_operand.vmem [shape: f32[16,16], index: 6, kind: input, shape index: {}]
  %s7 = inlined_call_operand.<no memory space> [shape: f32[1,1], index: 7, kind: input, shape index: {}]
  %s8 = inlined_call_operand.<no memory space> [shape: f32[1,1], index: 8, kind: input, shape index: {}]
  %s9 = inlined_call_operand.vmem [shape: f32[16,16], index: 9, kind: output, shape index: {}]
  %s10 = sld [smem:[#allocation0]]
  $region69: #{hgat_model_forward.4} parent=0
    _
  %s12 = ssub.s32 1, %s10
  %s13 = scalar_select 0, %s12, %s10
  %14 = sst [smem:[#allocation2]] %s7
  %15 = sst [smem:[#allocation3]] %s8
  loop: start=0, step=1, limit=4
  $region2: #{hgat_model_forward.4} parent=0 // loop_pre_header
    _
  $region3: #{hgat_model_forward.4} parent=0 // loop_header
    %s17 = sphi 0, %s21
    %p18 = scmp.ge.s32.totalorder %s17, 4
    %s25 = sphi 0, %s25
    %s27 = sphi 0, %s25
    %s28 = sphi 0, %s27
    %s42 = sphi 0, %s28
    %s48 = sphi 0, %s50
    %s51 = sphi 0, %s48
    %s52 = sphi 0, %s51
    %s68 = sphi 0, %s52
    %s72 = sphi 0, %s72
    %s74 = sphi 0, %s72
    %s75 = sphi 0, %s74
    %s89 = sphi 0, %s75
    %s93 = sphi 0, %s93
    %s95 = sphi 0, %s93
    %s96 = sphi 0, %s95
    %s110 = sphi 0, %s96
    %s114 = sphi 0, %s114
    %s116 = sphi 0, %s114
    %s117 = sphi 0, %s116
    %s131 = sphi 0, %s117
    %s135 = sphi 0, %s135
    %s137 = sphi 0, %s135
    %s138 = sphi 0, %s137
    %s152 = sphi 0, %s138
    %s158 = sphi 0, %s160
    %s161 = sphi 0, %s158
    %s162 = sphi 0, %s161
    %s178 = sphi 0, %s162
    %s182 = sphi 0, %s182
    %s184 = sphi 0, %s182
    %s185 = sphi 0, %s184
    %s199 = sphi 0, %s185
    %s203 = sphi 0, %s203
    %s205 = sphi 0, %s203
    %s206 = sphi 0, %s205
    %s220 = sphi 0, %s206
    %s226 = sphi 0, %s228
    %s229 = sphi 0, %s226
    %s230 = sphi 0, %s229
    %s246 = sphi 0, %s230
  $region4: #{hgat_model_forward.4} parent=0 // loop_header_branch
    %20 = sbr.rel (%p18) target = $region8
  $region5: #{hgat_model_forward.4} parent=0 // loop_body
    %s22 = ssub.s32 %s17, 1
    %s23 = ssub.s32 %s17, 2
    %s24 = sadd.s32 %s17, 1
    %s26 = sadd.s32 %s25, 1
    %p29 = scmp.eq.s32.totalorder %s17, 1
    %p30 = scmp.ne.s32.totalorder %s25, %s27
    %p31 = scmp.eq.s32.totalorder %s17, 0
    %p32 = por %p30, %p31
    %p33 = scmp.ne.s32.totalorder %s25, %s27
    %p34 = scmp.eq.s32.totalorder %s22, 1
    %p35 = por %p33, %p34
    %p36 = scmp.ne.s32.totalorder %s27, %s28
    %p37 = scmp.eq.s32.totalorder %s22, 0
    %p38 = por %p36, %p37
    %p39 = scmp.ne.s32.totalorder %s27, %s28
    %p40 = scmp.eq.s32.totalorder %s23, 1
    %p41 = por %p39, %p40
    %p43 = scmp.ne.s32.totalorder %s28, %s42
    %p44 = scmp.eq.s32.totalorder %s23, 0
    %p45 = por %p43, %p44
    %s46 = ssub.s32 %s17, %s24
    %p47 = scmp.eq.s32.totalorder %s46, 0
    %s49 = sadd.s32 %s48, 1
    %s50 = scalar_select %p47, %s48, %s49
    %p53 = pneg %p47
    %p54 = scmp.eq.s32.totalorder %s17, 1
    %p55 = por %p53, %p54
    %p56 = scmp.ne.s32.totalorder %s48, %s51
    %p57 = scmp.eq.s32.totalorder %s17, 0
    %p58 = por %p56, %p57
    %p59 = scmp.ne.s32.totalorder %s48, %s51
    %p60 = scmp.eq.s32.totalorder %s22, 1
    %p61 = por %p59, %p60
    %p62 = scmp.ne.s32.totalorder %s51, %s52
    %p63 = scmp.eq.s32.totalorder %s22, 0
    %p64 = por %p62, %p63
    %p65 = scmp.ne.s32.totalorder %s51, %s52
    %p66 = scmp.eq.s32.totalorder %s23, 1
    %p67 = por %p65, %p66
    %p69 = scmp.ne.s32.totalorder %s52, %s68
    %p70 = scmp.eq.s32.totalorder %s23, 0
    %p71 = por %p69, %p70
    %s73 = sadd.s32 %s72, 1
    %p76 = scmp.eq.s32.totalorder %s17, 1
    %p77 = scmp.ne.s32.totalorder %s72, %s74
    %p78 = scmp.eq.s32.totalorder %s17, 0
    %p79 = por %p77, %p78
    %p80 = scmp.ne.s32.totalorder %s72, %s74
    %p81 = scmp.eq.s32.totalorder %s22, 1
    %p82 = por %p80, %p81
    %p83 = scmp.ne.s32.totalorder %s74, %s75
    %p84 = scmp.eq.s32.totalorder %s22, 0
    %p85 = por %p83, %p84
    %p86 = scmp.ne.s32.totalorder %s74, %s75
    %p87 = scmp.eq.s32.totalorder %s23, 1
    %p88 = por %p86, %p87
    %p90 = scmp.ne.s32.totalorder %s75, %s89
    %p91 = scmp.eq.s32.totalorder %s23, 0
    %p92 = por %p90, %p91
    %s94 = sadd.s32 %s93, 1
    %p97 = scmp.eq.s32.totalorder %s17, 1
    %p98 = scmp.ne.s32.totalorder %s93, %s95
    %p99 = scmp.eq.s32.totalorder %s17, 0
    %p100 = por %p98, %p99
    %p101 = scmp.ne.s32.totalorder %s93, %s95
    %p102 = scmp.eq.s32.totalorder %s22, 1
    %p103 = por %p101, %p102
    %p104 = scmp.ne.s32.totalorder %s95, %s96
    %p105 = scmp.eq.s32.totalorder %s22, 0
    %p106 = por %p104, %p105
    %p107 = scmp.ne.s32.totalorder %s95, %s96
    %p108 = scmp.eq.s32.totalorder %s23, 1
    %p109 = por %p107, %p108
    %p111 = scmp.ne.s32.totalorder %s96, %s110
    %p112 = scmp.eq.s32.totalorder %s23, 0
    %p113 = por %p111, %p112
    %s115 = sadd.s32 %s114, 1
    %p118 = scmp.eq.s32.totalorder %s17, 1
    %p119 = scmp.ne.s32.totalorder %s114, %s116
    %p120 = scmp.eq.s32.totalorder %s17, 0
    %p121 = por %p119, %p120
    %p122 = scmp.ne.s32.totalorder %s114, %s116
    %p123 = scmp.eq.s32.totalorder %s22, 1
    %p124 = por %p122, %p123
    %p125 = scmp.ne.s32.totalorder %s116, %s117
    %p126 = scmp.eq.s32.totalorder %s22, 0
    %p127 = por %p125, %p126
    %p128 = scmp.ne.s32.totalorder %s116, %s117
    %p129 = scmp.eq.s32.totalorder %s23, 1
    %p130 = por %p128, %p129
    %p132 = scmp.ne.s32.totalorder %s117, %s131
    %p133 = scmp.eq.s32.totalorder %s23, 0
    %p134 = por %p132, %p133
    %s136 = sadd.s32 %s135, 1
    %p139 = scmp.eq.s32.totalorder %s17, 1
    %p140 = scmp.ne.s32.totalorder %s135, %s137
    %p141 = scmp.eq.s32.totalorder %s17, 0
    %p142 = por %p140, %p141
    %p143 = scmp.ne.s32.totalorder %s135, %s137
    %p144 = scmp.eq.s32.totalorder %s22, 1
    %p145 = por %p143, %p144
    %p146 = scmp.ne.s32.totalorder %s137, %s138
    %p147 = scmp.eq.s32.totalorder %s22, 0
    %p148 = por %p146, %p147
    %p149 = scmp.ne.s32.totalorder %s137, %s138
    %p150 = scmp.eq.s32.totalorder %s23, 1
    %p151 = por %p149, %p150
    %p153 = scmp.ne.s32.totalorder %s138, %s152
    %p154 = scmp.eq.s32.totalorder %s23, 0
    %p155 = por %p153, %p154
    %s156 = ssub.s32 %s17, %s24
    %p157 = scmp.eq.s32.totalorder %s156, 0
    %s159 = sadd.s32 %s158, 1
    %s160 = scalar_select %p157, %s158, %s159
    %p163 = pneg %p157
    %p164 = scmp.eq.s32.totalorder %s17, 1
    %p165 = por %p163, %p164
    %p166 = scmp.ne.s32.totalorder %s158, %s161
    %p167 = scmp.eq.s32.totalorder %s17, 0
    %p168 = por %p166, %p167
    %p169 = scmp.ne.s32.totalorder %s158, %s161
    %p170 = scmp.eq.s32.totalorder %s22, 1
    %p171 = por %p169, %p170
    %p172 = scmp.ne.s32.totalorder %s161, %s162
    %p173 = scmp.eq.s32.totalorder %s22, 0
    %p174 = por %p172, %p173
    %p175 = scmp.ne.s32.totalorder %s161, %s162
    %p176 = scmp.eq.s32.totalorder %s23, 1
    %p177 = por %p175, %p176
    %p179 = scmp.ne.s32.totalorder %s162, %s178
    %p180 = scmp.eq.s32.totalorder %s23, 0
    %p181 = por %p179, %p180
    %s183 = sadd.s32 %s182, 1
    %p186 = scmp.eq.s32.totalorder %s17, 1
    %p187 = scmp.ne.s32.totalorder %s182, %s184
    %p188 = scmp.eq.s32.totalorder %s17, 0
    %p189 = por %p187, %p188
    %p190 = scmp.ne.s32.totalorder %s182, %s184
    %p191 = scmp.eq.s32.totalorder %s22, 1
    %p192 = por %p190, %p191
    %p193 = scmp.ne.s32.totalorder %s184, %s185
    %p194 = scmp.eq.s32.totalorder %s22, 0
    %p195 = por %p193, %p194
    %p196 = scmp.ne.s32.totalorder %s184, %s185
    %p197 = scmp.eq.s32.totalorder %s23, 1
    %p198 = por %p196, %p197
    %p200 = scmp.ne.s32.totalorder %s185, %s199
    %p201 = scmp.eq.s32.totalorder %s23, 0
    %p202 = por %p200, %p201
    %s204 = sadd.s32 %s203, 1
    %p207 = scmp.eq.s32.totalorder %s17, 1
    %p208 = scmp.ne.s32.totalorder %s203, %s205
    %p209 = scmp.eq.s32.totalorder %s17, 0
    %p210 = por %p208, %p209
    %p211 = scmp.ne.s32.totalorder %s203, %s205
    %p212 = scmp.eq.s32.totalorder %s22, 1
    %p213 = por %p211, %p212
    %p214 = scmp.ne.s32.totalorder %s205, %s206
    %p215 = scmp.eq.s32.totalorder %s22, 0
    %p216 = por %p214, %p215
    %p217 = scmp.ne.s32.totalorder %s205, %s206
    %p218 = scmp.eq.s32.totalorder %s23, 1
    %p219 = por %p217, %p218
    %p221 = scmp.ne.s32.totalorder %s206, %s220
    %p222 = scmp.eq.s32.totalorder %s23, 0
    %p223 = por %p221, %p222
    %s224 = ssub.s32 %s17, %s24
    %p225 = scmp.eq.s32.totalorder %s224, 0
    %s227 = sadd.s32 %s226, 1
    %s228 = scalar_select %p225, %s226, %s227
    %p231 = pneg %p225
    %p232 = scmp.eq.s32.totalorder %s17, 1
    %p233 = por %p231, %p232
    %p234 = scmp.ne.s32.totalorder %s226, %s229
    %p235 = scmp.eq.s32.totalorder %s17, 0
    %p236 = por %p234, %p235
    %p237 = scmp.ne.s32.totalorder %s226, %s229
    %p238 = scmp.eq.s32.totalorder %s22, 1
    %p239 = por %p237, %p238
    %p240 = scmp.ne.s32.totalorder %s229, %s230
    %p241 = scmp.eq.s32.totalorder %s22, 0
    %p242 = por %p240, %p241
    %p243 = scmp.ne.s32.totalorder %s229, %s230
    %p244 = scmp.eq.s32.totalorder %s23, 1
    %p245 = por %p243, %p244
    %p247 = scmp.ne.s32.totalorder %s230, %s246
    %p248 = scmp.eq.s32.totalorder %s23, 0
    %p249 = por %p247, %p248
    %p250 = scmp.le.s32.totalorder 1, %s17
    %p251 = scmp.lt.s32.totalorder %s17, 3
    %p252 = pnand %p250, %p251
    %p253 = pneg %p252
    // Predicated region
    $region9: #{hgat_model_forward.4} parent=5 // pred_check
      _
    $region10: #{hgat_model_forward.4} parent=5 // pred_check_branch
      %255 = sbr.rel (%p252) target = $region12
    $region11: #{hgat_model_forward.4} parent=5 // pred_region
      %s256 = ssub.s32 %s17, 1
      // Predicated region
      $region13: #{hgat_model_forward.4} parent=11 // pred_check
        %p257 = pneg %p38
      $region14: #{hgat_model_forward.4} parent=11 // pred_check_branch
        %259 = sbr.rel (%p257) target = $region16
      $region15: #{hgat_model_forward.4} parent=11 // pred_region
        _
      $region16: #{hgat_model_forward.4} parent=11 // pred_fallthru
        _
      // Predicated region
      $region17: #{hgat_model_forward.4} parent=11 // pred_check
        %p260 = pneg %p85
      $region18: #{hgat_model_forward.4} parent=11 // pred_check_branch
        %262 = sbr.rel (%p260) target = $region20
      $region19: #{hgat_model_forward.4} parent=11 // pred_region
        _
      $region20: #{hgat_model_forward.4} parent=11 // pred_fallthru
        _
      // Predicated region
      $region21: #{hgat_model_forward.4} parent=11 // pred_check
        %p263 = pneg %p106
      $region22: #{hgat_model_forward.4} parent=11 // pred_check_branch
        %265 = sbr.rel (%p263) target = $region24
      $region23: #{hgat_model_forward.4} parent=11 // pred_region
        _
      $region24: #{hgat_model_forward.4} parent=11 // pred_fallthru
        _
      // Predicated region
      $region25: #{hgat_model_forward.4} parent=11 // pred_check
        %p266 = pneg %p127
      $region26: #{hgat_model_forward.4} parent=11 // pred_check_branch
        %268 = sbr.rel (%p266) target = $region28
      $region27: #{hgat_model_forward.4} parent=11 // pred_region
        _
      $region28: #{hgat_model_forward.4} parent=11 // pred_fallthru
        _
      // Predicated region
      $region29: #{hgat_model_forward.4} parent=11 // pred_check
        %p269 = pneg %p148
      $region30: #{hgat_model_forward.4} parent=11 // pred_check_branch
        %271 = sbr.rel (%p269) target = $region32
      $region31: #{hgat_model_forward.4} parent=11 // pred_region
        _
      $region32: #{hgat_model_forward.4} parent=11 // pred_fallthru
        _
      // Predicated region
      $region33: #{hgat_model_forward.4} parent=11 // pred_check
        %p272 = pneg %p195
      $region34: #{hgat_model_forward.4} parent=11 // pred_check_branch
        %274 = sbr.rel (%p272) target = $region36
      $region35: #{hgat_model_forward.4} parent=11 // pred_region
        _
      $region36: #{hgat_model_forward.4} parent=11 // pred_fallthru
        _
      // Predicated region
      $region37: #{hgat_model_forward.4} parent=11 // pred_check
        %p275 = pneg %p216
      $region38: #{hgat_model_forward.4} parent=11 // pred_check_branch
        %277 = sbr.rel (%p275) target = $region40
      $region39: #{hgat_model_forward.4} parent=11 // pred_region
        _
      $region40: #{hgat_model_forward.4} parent=11 // pred_fallthru
        _
    $region12: #{hgat_model_forward.4} parent=5 // pred_fallthru
      _
    %p278 = scmp.lt.s32.totalorder %s17, 2
    // Predicated region
    $region41: #{hgat_model_forward.4} parent=5 // pred_check
      %p279 = pneg %p278
    $region42: #{hgat_model_forward.4} parent=5 // pred_check_branch
      %281 = sbr.rel (%p279) target = $region44
    $region43: #{hgat_model_forward.4} parent=5 // pred_region
      // Predicated region
      $region45: #{hgat_model_forward.4} parent=43 // pred_check
        %p282 = pneg %p58
      $region46: #{hgat_model_forward.4} parent=43 // pred_check_branch
        %284 = sbr.rel (%p282) target = $region48
      $region47: #{hgat_model_forward.4} parent=43 // pred_region
        %p285 = scmp.lt.s32.totalorder %s17, 1
        %s286 = scalar_select %p285, %s17, 1
        %s287 = smul.addr %s286, 8
        %s288 = scalar_lea.vmem %s1, %s287
      $region48: #{hgat_model_forward.4} parent=43 // pred_fallthru
        _
      // Predicated region
      $region49: #{hgat_model_forward.4} parent=43 // pred_check
        %p289 = pneg %p168
      $region50: #{hgat_model_forward.4} parent=43 // pred_check_branch
        %291 = sbr.rel (%p289) target = $region52
      $region51: #{hgat_model_forward.4} parent=43 // pred_region
        %p292 = scmp.lt.s32.totalorder %s17, 1
        %s293 = scalar_select %p292, %s17, 1
        %s294 = smul.addr %s293, 8
        %s295 = scalar_lea.vmem %s6, %s294
      $region52: #{hgat_model_forward.4} parent=43 // pred_fallthru
        _
    $region44: #{hgat_model_forward.4} parent=5 // pred_fallthru
      _
    %p296 = scmp.le.s32.totalorder 1, %s17
    %p297 = scmp.lt.s32.totalorder %s17, 3
    %p298 = pnand %p296, %p297
    %p299 = pneg %p298
    // Predicated region
    $region53: #{hgat_model_forward.4} parent=5 // pred_check
      _
    $region54: #{hgat_model_forward.4} parent=5 // pred_check_branch
      %301 = sbr.rel (%p298) target = $region56
    $region55: #{hgat_model_forward.4} parent=5 // pred_region
      %s302 = ssub.s32 %s17, 1
      %p303 = pneg %p38
      %p304 = pneg %p35
      %p305 = scmp.lt.s32.totalorder %s22, 1
      %s306 = scalar_select %p305, %s22, 1
      %s307 = smul.addr %s306, 8
      %s308 = scalar_lea.vmem %s1, %s307
      %p309 = pneg %p64
      %p310 = pneg %p61
      %p311 = pneg %p85
      %p312 = pneg %p82
      %p313 = pneg %p106
      %p314 = pneg %p103
      %p315 = pneg %p127
      %p316 = pneg %p124
      %p317 = pneg %p148
      %p318 = pneg %p145
      %p319 = scmp.lt.s32.totalorder %s22, 1
      %s320 = scalar_select %p319, %s22, 1
      %s321 = smul.addr %s320, 8
      %s322 = scalar_lea.vmem %s6, %s321
      %p323 = pneg %p174
      %p324 = pneg %p171
      %p325 = pneg %p195
      %p326 = pneg %p192
      %p327 = pneg %p216
      %p328 = pneg %p213
      %p329 = pneg %p242
      %p330 = pneg %p239
      %p331 = scmp.lt.s32.totalorder %s22, 1
      %s332 = scalar_select %p331, %s22, 1
      %s333 = smul.addr %s332, 8
      %s334 = scalar_lea.vmem %s9, %s333
      %p335 = scmp.lt.s32.totalorder %s22, 1
      %s336 = scalar_select %p335, %s22, 1
      %s337 = smul.addr %s336, 8
      %s338 = scalar_lea.vmem %s1, %s337
      %p339 = scmp.lt.s32.totalorder %s22, 1
      %s340 = scalar_select %p339, %s22, 1
      %s341 = smul.addr %s340, 8
      %s342 = scalar_lea.vmem %s6, %s341
      %p343 = scmp.lt.s32.totalorder %s22, 1
      %s344 = scalar_select %p343, %s22, 1
      %s345 = smul.addr %s344, 8
      %s346 = scalar_lea.vmem %s9, %s345
      %s348 = sld [smem:[#allocation2]]
      %s349 = sld [smem:[#allocation3]]
      %v350 = vstv %s348
      %v351 = vrsqrt.pop %v350
      %v352 = vmul.f32 %v351, %v350
      %v353 = vmul.f32 %v352, %v351
      %v354 = vmul.f32 0.5, %v353
      %v355 = vsub.f32 1.5, %v354
      %v356 = vmul.f32 %v351, %v355
      %v357 = vmul.f32 %v350, %v356
      %vm358 = vcmp.eq.f32.partialorder %v350, inf
      %v359 = vsel %vm358, %v350, %v357
      %vm360 = vcmp.eq.f32.partialorder %v350, 0.0
      %v361 = vand.u32 %v350, 2147483648
      %v362 = vsel %vm360, %v361, %v359
      %s363 = vtos %v362
      %v364 = vstv %s349
      %v365 = vrsqrt.pop %v364
      %v366 = vmul.f32 %v365, %v364
      %v367 = vmul.f32 %v366, %v365
      %v368 = vmul.f32 0.5, %v367
      %v369 = vsub.f32 1.5, %v368
      %v370 = vmul.f32 %v365, %v369
      %v371 = vmul.f32 %v364, %v370
      %vm372 = vcmp.eq.f32.partialorder %v364, inf
      %v373 = vsel %vm372, %v364, %v371
      %vm374 = vcmp.eq.f32.partialorder %v364, 0.0
      %v375 = vand.u32 %v364, 2147483648
      %v376 = vsel %vm374, %v375, %v373
      %s377 = vtos %v376
      %v378 = vld [vmem:[%s2] sm:$0xf]
      %v379 = vld [vmem:[%s2 + $0x4] sm:$0xf]
      %v380 = vld [vmem:[%s2 + $0x8] sm:$0xf]
      %v381 = vld [vmem:[%s2 + $0xc] sm:$0xf]
      %v382 = vld [vmem:[%s3] sm:$0x1]
      %v383 = vld [vmem:[%s0] sm:$0xff]
      %v384 = vld [vmem:[%s0 + $0x8] sm:$0xff]
      %v385 = vmul.f32 %v383, %v383
      %v386 = vmul.f32 %v384, %v384
      %vm387 = vcmask 261120
      %v388 = vsel %vm387, %v385, 0.0
      %389 = vadd.xlane.f32.xlu0 %v388
      %v390 = vpop.xlane.xlu0 %389
      %v391 = vsel %vm387, %v386, 0.0
      %392 = vadd.xlane.f32.xlu0 %v391
      %v393 = vpop.xlane.xlu0 %392
      %v394 = vmax.f32 %v390, 1e-15
      %v395 = vmax.f32 %v393, 1e-15
      %v396 = vrsqrt.pop %v394
      %v397 = vmul.f32 %v396, %v394
      %v398 = vmul.f32 %v397, %v396
      %v399 = vmul.f32 0.5, %v398
      %v400 = vsub.f32 1.5, %v399
      %v401 = vmul.f32 %v396, %v400
      %v402 = vmul.f32 %v394, %v401
      %vm403 = vcmp.eq.f32.partialorder %v394, inf
      %v404 = vsel %vm403, %v394, %v402
      %vm405 = vcmp.eq.f32.partialorder %v394, 0.0
      %v406 = vand.u32 %v394, 2147483648
      %v407 = vsel %vm405, %v406, %v404
      %v408 = vrsqrt.pop %v395
      %v409 = vmul.f32 %v408, %v395
      %v410 = vmul.f32 %v409, %v408
      %v411 = vmul.f32 0.5, %v410
      %v412 = vsub.f32 1.5, %v411
      %v413 = vmul.f32 %v408, %v412
      %v414 = vmul.f32 %v395, %v413
      %vm415 = vcmp.eq.f32.partialorder %v395, inf
      %v416 = vsel %vm415, %v395, %v414
      %vm417 = vcmp.eq.f32.partialorder %v395, 0.0
      %v418 = vand.u32 %v395, 2147483648
      %v419 = vsel %vm417, %v418, %v416
      %v420 = vpack.c.bf16 %v384, %v383
      %v425 = vunpack.c.l.b16 %v378
      %v426 = vunpack.c.l.b16 %v379
      %v427 = vunpack.c.l.b16 %v380
      %v428 = vunpack.c.l.b16 %v381
      %v429 = vpack.c.b16 %v426, %v425
      %v430 = vpack.c.b16 %v428, %v427
      %v434 = vsel %vm387, %v420, 0
      %436 = vmatpush.bf16.msra.mxu0 0
      %437 = vmatpush.bf16.msra.mxu0 0
      %438 = vmatpush.bf16.msra.mxu0 0
      %439 = vmatpush.bf16.msra.mxu0 0
      %440 = vmatpush.bf16.msra.mxu0 0
      %441 = vmatpush.bf16.msra.mxu0 0
      %442 = vmatpush.bf16.msra.mxu0 %v430
      %443 = vmatpush.bf16.msra.mxu0 %v429
      %444 = vmatmul.bf16.gmra.mxu0 %v434
      %v445 = vpop.f32.mrf.mxu0
      %v446 = vadd.f32 0.0, %v445
      %v447 = vpop.f32.mrf.mxu0
      %v448 = vadd.f32 0.0, %v447
      %449 = vdwg.mxu0
      %v450 = vmul.f32 %v446, %v446
      %v451 = vmul.f32 %v448, %v448
      %vm452 = vcmask 130048
      %v453 = vsel %vm452, %v450, 0.0
      %454 = vadd.xlane.f32.xlu0 %v453
      %v455 = vpop.xlane.xlu0 %454
      %v456 = vsel %vm452, %v451, 0.0
      %457 = vadd.xlane.f32.xlu0 %v456
      %v458 = vpop.xlane.xlu0 %457
      %v459 = vmax.f32 %v455, 1e-15
      %v460 = vmax.f32 %v458, 1e-15
      %v461 = vrsqrt.pop %v459
      %v462 = vmul.f32 %v461, %v459
      %v463 = vmul.f32 %v462, %v461
      %v464 = vmul.f32 0.5, %v463
      %v465 = vsub.f32 1.5, %v464
      %v466 = vmul.f32 %v461, %v465
      %v467 = vmul.f32 %v459, %v466
      %vm468 = vcmp.eq.f32.partialorder %v459, inf
      %v469 = vsel %vm468, %v459, %v467
      %vm470 = vcmp.eq.f32.partialorder %v459, 0.0
      %v471 = vand.u32 %v459, 2147483648
      %v472 = vsel %vm470, %v471, %v469
      %v473 = vrsqrt.pop %v460
      %v474 = vmul.f32 %v473, %v460
      %v475 = vmul.f32 %v474, %v473
      %v476 = vmul.f32 0.5, %v475
      %v477 = vsub.f32 1.5, %v476
      %v478 = vmul.f32 %v473, %v477
      %v479 = vmul.f32 %v460, %v478
      %vm480 = vcmp.eq.f32.partialorder %v460, inf
      %v481 = vsel %vm480, %v460, %v479
      %vm482 = vcmp.eq.f32.partialorder %v460, 0.0
      %v483 = vand.u32 %v460, 2147483648
      %v484 = vsel %vm482, %v483, %v481
      %v485 = vrcp.pop %v407
      %v486 = vrcp.pop %v419
      %v487 = vmul.f32 %v472, %v485
      %v488 = vmul.f32 %v484, %v486
      %v489 = vstv %s363
      %v490 = vmul.f32 %v489, %v407
      %v491 = vmul.f32 %v489, %v419
      %v492 = vmax.f32 %v490, -0.9999999
      %v493 = vmax.f32 %v491, -0.9999999
      %v494 = vmin.f32 %v492, 0.9999999
      %v495 = vmin.f32 %v493, 0.9999999
      %v496 = vadd.f32 %v494, 1.0
      %v497 = vadd.f32 %v495, 1.0
      %v498 = vsub.f32 1.0, %v494
      %v499 = vsub.f32 1.0, %v495
      %v500 = vrcp.pop %v498
      %v501 = vmul.f32 %v498, %v500
      %v502 = vsub.f32 1.0, %v501
      %v503 = vmul.f32 %v500, %v502
      %v504 = vadd.f32 %v500, %v503
      %vm505 = vweird.f32 %v498
      %vm506 = vweird.f32 %v500
      %vm507 = vmor %vm505, %vm506
      %v508 = vsel %vm507, %v500, %v504
      %v509 = vand.u32 2147483647, %v498
      %vm510 = vcmp.eq.f32.partialorder %v509, 8.507059e+37
      %v511 = vand.u32 %v498, 2147483648
      %v512 = vor.u32 1.1754944e-38, %v511
      %v513 = vsel %vm510, %v512, %v508
      %v514 = vmul.f32 %v496, %v513
      %v515 = vrcp.pop %v499
      %v516 = vmul.f32 %v499, %v515
      %v517 = vsub.f32 1.0, %v516
      %v518 = vmul.f32 %v515, %v517
      %v519 = vadd.f32 %v515, %v518
      %vm520 = vweird.f32 %v499
      %vm521 = vweird.f32 %v515
      %vm522 = vmor %vm520, %vm521
      %v523 = vsel %vm522, %v515, %v519
      %v524 = vand.u32 2147483647, %v499
      %vm525 = vcmp.eq.f32.partialorder %v524, 8.507059e+37
      %v526 = vand.u32 %v499, 2147483648
      %v527 = vor.u32 1.1754944e-38, %v526
      %v528 = vsel %vm525, %v527, %v523
      %v529 = vmul.f32 %v497, %v528
      %v530 = vlog2.pop %v514
      %v531 = vmul.f32 %v530, 0.6931472
      %v532 = vlog2.pop %v529
      %v533 = vmul.f32 %v532, 0.6931472
      %v534 = vmul.f32 %v531, 0.5
      %v535 = vmul.f32 %v533, 0.5
      %v536 = vmul.f32 %v487, %v534
      %v537 = vmul.f32 %v488, %v535
      %v538 = vtanh.pop %v536
      %v539 = vtanh.pop %v537
      %v540 = vmul.f32 %v538, %v446
      %v541 = vmul.f32 %v539, %v448
      %v542 = vmul.f32 %v472, %v489
      %v543 = vmul.f32 %v484, %v489
      %v544 = vrcp.pop %v542
      %v545 = vrcp.pop %v543
      %v546 = vmul.f32 %v540, %v544
      %v547 = vmul.f32 %v541, %v545
      %vm548 = vcmp.le.f32.partialorder %v455, 1e-15
      %vm549 = vcmp.le.f32.partialorder %v458, 1e-15
      %v550 = vsel %vm548, 1, 0
      %v551 = vsel %vm549, 1, 0
      %vm552 = vcmp.eq.s32.totalorder %v550, 1
      %vm553 = vcmp.eq.s32.totalorder %v551, 1
      %v554 = vsel %vm552, 0.0, %v546
      %v555 = vsel %vm553, 0.0, %v547
      %v556 = vmul.f32 %v554, %v554
      %v557 = vmul.f32 %v555, %v555
      %v558 = vsel %vm452, %v556, 0.0
      %559 = vadd.xlane.f32.xlu0 %v558
      %v560 = vpop.xlane.xlu0 %559
      %v561 = vsel %vm452, %v557, 0.0
      %562 = vadd.xlane.f32.xlu0 %v561
      %v563 = vpop.xlane.xlu0 %562
      %v564 = vmax.f32 %v560, 1e-15
      %v565 = vmax.f32 %v563, 1e-15
      %v566 = vrsqrt.pop %v564
      %v567 = vmul.f32 %v566, %v564
      %v568 = vmul.f32 %v567, %v566
      %v569 = vmul.f32 0.5, %v568
      %v570 = vsub.f32 1.5, %v569
      %v571 = vmul.f32 %v566, %v570
      %v572 = vmul.f32 %v564, %v571
      %vm573 = vcmp.eq.f32.partialorder %v564, inf
      %v574 = vsel %vm573, %v564, %v572
      %vm575 = vcmp.eq.f32.partialorder %v564, 0.0
      %v576 = vand.u32 %v564, 2147483648
      %v577 = vsel %vm575, %v576, %v574
      %v578 = vrsqrt.pop %v565
      %v579 = vmul.f32 %v578, %v565
      %v580 = vmul.f32 %v579, %v578
      %v581 = vmul.f32 0.5, %v580
      %v582 = vsub.f32 1.5, %v581
      %v583 = vmul.f32 %v578, %v582
      %v584 = vmul.f32 %v565, %v583
      %vm585 = vcmp.eq.f32.partialorder %v565, inf
      %v586 = vsel %vm585, %v565, %v584
      %vm587 = vcmp.eq.f32.partialorder %v565, 0.0
      %v588 = vand.u32 %v565, 2147483648
      %v589 = vsel %vm587, %v588, %v586
      %v590 = vstv %s363
      %v591 = vrcp.pop %v590
      %v592 = vmul.f32 %v590, %v591
      %v593 = vsub.f32 1.0, %v592
      %v594 = vmul.f32 %v591, %v593
      %v595 = vadd.f32 %v591, %v594
      %vm596 = vweird.f32 %v590
      %vm597 = vweird.f32 %v591
      %vm598 = vmor %vm596, %vm597
      %v599 = vsel %vm598, %v591, %v595
      %v600 = vand.u32 2147483647, %v590
      %vm601 = vcmp.eq.f32.partialorder %v600, 8.507059e+37
      %v602 = vand.u32 %v590, 2147483648
      %v603 = vor.u32 1.1754944e-38, %v602
      %v604 = vsel %vm601, %v603, %v599
      %s605 = vtos %v604
      %s606 = smul.f32 0.996, %s605
      %v607 = vstv %s606
      %v608 = vrcp.pop %v577
      %v609 = vmul.f32 %v577, %v608
      %v610 = vsub.f32 1.0, %v609
      %v611 = vmul.f32 %v608, %v610
      %v612 = vadd.f32 %v608, %v611
      %vm613 = vweird.f32 %v577
      %vm614 = vweird.f32 %v608
      %vm615 = vmor %vm613, %vm614
      %v616 = vsel %vm615, %v608, %v612
      %v617 = vand.u32 2147483647, %v577
      %vm618 = vcmp.eq.f32.partialorder %v617, 8.507059e+37
      %v619 = vand.u32 %v577, 2147483648
      %v620 = vor.u32 1.1754944e-38, %v619
      %v621 = vsel %vm618, %v620, %v616
      %v622 = vmul.f32 %v607, %v621
      %v623 = vrcp.pop %v589
      %v624 = vmul.f32 %v589, %v623
      %v625 = vsub.f32 1.0, %v624
      %v626 = vmul.f32 %v623, %v625
      %v627 = vadd.f32 %v623, %v626
      %vm628 = vweird.f32 %v589
      %vm629 = vweird.f32 %v623
      %vm630 = vmor %vm628, %vm629
      %v631 = vsel %vm630, %v623, %v627
      %v632 = vand.u32 2147483647, %v589
      %vm633 = vcmp.eq.f32.partialorder %v632, 8.507059e+37
      %v634 = vand.u32 %v589, 2147483648
      %v635 = vor.u32 1.1754944e-38, %v634
      %v636 = vsel %vm633, %v635, %v631
      %v637 = vmul.f32 %v607, %v636
      %v638 = vmin.f32 %v622, 1.0
      %v639 = vmin.f32 %v637, 1.0
      %v640 = vmul.f32 %v554, %v638
      %v641 = vmul.f32 %v555, %v639
      %v642 = vmul.f32 %v640, %v640
      %v643 = vmul.f32 %v641, %v641
      %v644 = vsel %vm452, %v642, 0.0
      %645 = vadd.xlane.f32.xlu0 %v644
      %v646 = vpop.xlane.xlu0 %645
      %v647 = vsel %vm452, %v643, 0.0
      %648 = vadd.xlane.f32.xlu0 %v647
      %v649 = vpop.xlane.xlu0 %648
      %v650 = vmul.f32 %v382, %v382
      %vm651 = vcmask 122880
      %v652 = vsel %vm651, %v650, 0.0
      %653 = vadd.xlane.f32.xlu0 %v652
      %v654 = vpop.xlane.xlu0 %653
      %v656 = vperm.slane %v382, 0
      %v658 = vmul.f32 %v640, %v656
      %v659 = vmul.f32 %v641, %v656
      %v660 = vsel %vm452, %v658, 0.0
      %661 = vadd.xlane.f32.xlu0 %v660
      %v662 = vpop.xlane.xlu0 %661
      %v663 = vsel %vm452, %v659, 0.0
      %664 = vadd.xlane.f32.xlu0 %v663
      %v665 = vpop.xlane.xlu0 %664
      %s666 = smul.f32 %s348, 2.0
      %v667 = vstv %s666
      %v668 = vmul.f32 %v667, %v662
      %v669 = vmul.f32 %v667, %v665
      %v670 = vadd.f32 %v668, 1.0
      %v671 = vadd.f32 %v669, 1.0
      %v672 = vstv %s348
      %v673 = vmul.f32 %v672, %v654
      %v674 = vperm.slane %v673, 0
      %v675 = vadd.f32 %v670, %v674
      %v676 = vadd.f32 %v671, %v674
      %v677 = vmul.f32 %v675, %v640
      %v678 = vmul.f32 %v676, %v641
      %v679 = vmul.f32 %v672, %v646
      %v680 = vmul.f32 %v672, %v649
      %v681 = vsub.f32 1.0, %v679
      %v682 = vsub.f32 1.0, %v680
      %v683 = vmul.f32 %v681, %v656
      %v684 = vmul.f32 %v682, %v656
      %v685 = vadd.f32 %v677, %v683
      %v686 = vadd.f32 %v678, %v684
      %s687 = smul.f32 %s348, %s348
      %v688 = vstv %s687
      %v689 = vmul.f32 %v688, %v646
      %v690 = vmul.f32 %v688, %v649
      %v691 = vperm.slane %v654, 0
      %v692 = vmul.f32 %v689, %v691
      %v693 = vmul.f32 %v690, %v691
      %v694 = vadd.f32 %v670, %v692
      %v695 = vadd.f32 %v671, %v693
      %v696 = vmax.f32 %v694, 1e-15
      %v697 = vmax.f32 %v695, 1e-15
      %v698 = vrcp.pop %v696
      %v699 = vrcp.pop %v697
      %v700 = vmul.f32 %v685, %v698
      %v701 = vmul.f32 %v686, %v699
      %v702 = vmul.f32 %v700, %v700
      %v703 = vmul.f32 %v701, %v701
      %v704 = vsel %vm452, %v702, 0.0
      %705 = vadd.xlane.f32.xlu0 %v704
      %v706 = vpop.xlane.xlu0 %705
      %v707 = vsel %vm452, %v703, 0.0
      %708 = vadd.xlane.f32.xlu0 %v707
      %v709 = vpop.xlane.xlu0 %708
      %v710 = vmax.f32 %v706, 1e-15
      %v711 = vmax.f32 %v709, 1e-15
      %v712 = vrsqrt.pop %v710
      %v713 = vmul.f32 %v712, %v710
      %v714 = vmul.f32 %v713, %v712
      %v715 = vmul.f32 0.5, %v714
      %v716 = vsub.f32 1.5, %v715
      %v717 = vmul.f32 %v712, %v716
      %v718 = vmul.f32 %v710, %v717
      %vm719 = vcmp.eq.f32.partialorder %v710, inf
      %v720 = vsel %vm719, %v710, %v718
      %vm721 = vcmp.eq.f32.partialorder %v710, 0.0
      %v722 = vand.u32 %v710, 2147483648
      %v723 = vsel %vm721, %v722, %v720
      %v724 = vrsqrt.pop %v711
      %v725 = vmul.f32 %v724, %v711
      %v726 = vmul.f32 %v725, %v724
      %v727 = vmul.f32 0.5, %v726
      %v728 = vsub.f32 1.5, %v727
      %v729 = vmul.f32 %v724, %v728
      %v730 = vmul.f32 %v711, %v729
      %vm731 = vcmp.eq.f32.partialorder %v711, inf
      %v732 = vsel %vm731, %v711, %v730
      %vm733 = vcmp.eq.f32.partialorder %v711, 0.0
      %v734 = vand.u32 %v711, 2147483648
      %v735 = vsel %vm733, %v734, %v732
      %v736 = vrcp.pop %v723
      %v737 = vmul.f32 %v723, %v736
      %v738 = vsub.f32 1.0, %v737
      %v739 = vmul.f32 %v736, %v738
      %v740 = vadd.f32 %v736, %v739
      %vm741 = vweird.f32 %v723
      %vm742 = vweird.f32 %v736
      %vm743 = vmor %vm741, %vm742
      %v744 = vsel %vm743, %v736, %v740
      %v745 = vand.u32 2147483647, %v723
      %vm746 = vcmp.eq.f32.partialorder %v745, 8.507059e+37
      %v747 = vand.u32 %v723, 2147483648
      %v748 = vor.u32 1.1754944e-38, %v747
      %v749 = vsel %vm746, %v748, %v744
      %v750 = vmul.f32 %v607, %v749
      %v751 = vrcp.pop %v735
      %v752 = vmul.f32 %v735, %v751
      %v753 = vsub.f32 1.0, %v752
      %v754 = vmul.f32 %v751, %v753
      %v755 = vadd.f32 %v751, %v754
      %vm756 = vweird.f32 %v735
      %vm757 = vweird.f32 %v751
      %vm758 = vmor %vm756, %vm757
      %v759 = vsel %vm758, %v751, %v755
      %v760 = vand.u32 2147483647, %v735
      %vm761 = vcmp.eq.f32.partialorder %v760, 8.507059e+37
      %v762 = vand.u32 %v735, 2147483648
      %v763 = vor.u32 1.1754944e-38, %v762
      %v764 = vsel %vm761, %v763, %v759
      %v765 = vmul.f32 %v607, %v764
      %v766 = vmin.f32 %v750, 1.0
      %v767 = vmin.f32 %v765, 1.0
      %v768 = vmul.f32 %v700, %v766
      %v769 = vmul.f32 %v701, %v767
      %v770 = vmul.f32 %v768, %v768
      %v771 = vmul.f32 %v769, %v769
      %v772 = vsel %vm452, %v770, 0.0
      %773 = vadd.xlane.f32.xlu0 %v772
      %v774 = vpop.xlane.xlu0 %773
      %v775 = vsel %vm452, %v771, 0.0
      %776 = vadd.xlane.f32.xlu0 %v775
      %v777 = vpop.xlane.xlu0 %776
      %v778 = vmax.f32 %v774, 1e-15
      %v779 = vmax.f32 %v777, 1e-15
      %v780 = vrsqrt.pop %v778
      %v781 = vmul.f32 %v780, %v778
      %v782 = vmul.f32 %v781, %v780
      %v783 = vmul.f32 0.5, %v782
      %v784 = vsub.f32 1.5, %v783
      %v785 = vmul.f32 %v780, %v784
      %v786 = vmul.f32 %v778, %v785
      %vm787 = vcmp.eq.f32.partialorder %v778, inf
      %v788 = vsel %vm787, %v778, %v786
      %vm789 = vcmp.eq.f32.partialorder %v778, 0.0
      %v790 = vand.u32 %v778, 2147483648
      %v791 = vsel %vm789, %v790, %v788
      %v792 = vrsqrt.pop %v779
      %v793 = vmul.f32 %v792, %v779
      %v794 = vmul.f32 %v793, %v792
      %v795 = vmul.f32 0.5, %v794
      %v796 = vsub.f32 1.5, %v795
      %v797 = vmul.f32 %v792, %v796
      %v798 = vmul.f32 %v779, %v797
      %vm799 = vcmp.eq.f32.partialorder %v779, inf
      %v800 = vsel %vm799, %v779, %v798
      %vm801 = vcmp.eq.f32.partialorder %v779, 0.0
      %v802 = vand.u32 %v779, 2147483648
      %v803 = vsel %vm801, %v802, %v800
      %v804 = vmul.f32 %v489, %v791
      %v805 = vmul.f32 %v489, %v803
      %v806 = vmax.f32 %v804, -0.9999999
      %v807 = vmax.f32 %v805, -0.9999999
      %v808 = vmin.f32 %v806, 0.9999999
      %v809 = vmin.f32 %v807, 0.9999999
      %v810 = vadd.f32 %v808, 1.0
      %v811 = vadd.f32 %v809, 1.0
      %v812 = vsub.f32 1.0, %v808
      %v813 = vsub.f32 1.0, %v809
      %v814 = vrcp.pop %v812
      %v815 = vmul.f32 %v812, %v814
      %v816 = vsub.f32 1.0, %v815
      %v817 = vmul.f32 %v814, %v816
      %v818 = vadd.f32 %v814, %v817
      %vm819 = vweird.f32 %v812
      %vm820 = vweird.f32 %v814
      %vm821 = vmor %vm819, %vm820
      %v822 = vsel %vm821, %v814, %v818
      %v823 = vand.u32 2147483647, %v812
      %vm824 = vcmp.eq.f32.partialorder %v823, 8.507059e+37
      %v825 = vand.u32 %v812, 2147483648
      %v826 = vor.u32 1.1754944e-38, %v825
      %v827 = vsel %vm824, %v826, %v822
      %v828 = vmul.f32 %v810, %v827
      %v829 = vrcp.pop %v813
      %v830 = vmul.f32 %v813, %v829
      %v831 = vsub.f32 1.0, %v830
      %v832 = vmul.f32 %v829, %v831
      %v833 = vadd.f32 %v829, %v832
      %vm834 = vweird.f32 %v813
      %vm835 = vweird.f32 %v829
      %vm836 = vmor %vm834, %vm835
      %v837 = vsel %vm836, %v829, %v833
      %v838 = vand.u32 2147483647, %v813
      %vm839 = vcmp.eq.f32.partialorder %v838, 8.507059e+37
      %v840 = vand.u32 %v813, 2147483648
      %v841 = vor.u32 1.1754944e-38, %v840
      %v842 = vsel %vm839, %v841, %v837
      %v843 = vmul.f32 %v811, %v842
      %v844 = vlog2.pop %v828
      %v845 = vmul.f32 %v844, 0.6931472
      %v846 = vlog2.pop %v843
      %v847 = vmul.f32 %v846, 0.6931472
      %v848 = vmul.f32 %v845, 0.5
      %v849 = vmul.f32 %v847, 0.5
      %v850 = vmul.f32 %v848, %v768
      %v851 = vmul.f32 %v849, %v769
      %v852 = vrcp.pop %v804
      %v853 = vrcp.pop %v805
      %v854 = vmul.f32 %v850, %v852
      %v855 = vmul.f32 %v851, %v853
      %v856 = vld [vmem:[%s338] sm:$0xff]
      %v857 = vmul.f32 %v856, %v856
      %v858 = vsel %vm387, %v857, 0.0
      %859 = vadd.xlane.f32.xlu0 %v858
      %v860 = vpop.xlane.xlu0 %859
      %v861 = vmax.f32 %v860, 1e-15
      %v862 = vrsqrt.pop %v861
      %v863 = vmul.f32 %v862, %v861
      %v864 = vmul.f32 %v863, %v862
      %v865 = vmul.f32 0.5, %v864
      %v866 = vsub.f32 1.5, %v865
      %v867 = vmul.f32 %v862, %v866
      %v868 = vmul.f32 %v861, %v867
      %vm869 = vcmp.eq.f32.partialorder %v861, inf
      %v870 = vsel %vm869, %v861, %v868
      %vm871 = vcmp.eq.f32.partialorder %v861, 0.0
      %v872 = vand.u32 %v861, 2147483648
      %v873 = vsel %vm871, %v872, %v870
      %v874 = vpack.c.bf16 %v856, %v856
      %v876 = vsel %vm387, %v874, 0
      %878 = vmatpush.bf16.msra.mxu0 0
      %879 = vmatpush.bf16.msra.mxu0 0
      %880 = vmatpush.bf16.msra.mxu0 0
      %881 = vmatpush.bf16.msra.mxu0 0
      %882 = vmatpush.bf16.msra.mxu0 0
      %883 = vmatpush.bf16.msra.mxu0 0
      %884 = vmatpush.bf16.msra.mxu0 %v430
      %885 = vmatpush.bf16.msra.mxu0 %v429
      %886 = vmatmul.bf16.gmra.mxu0 %v876
      %v887 = vpop.f32.mrf.mxu0
      %v888 = vadd.f32 0.0, %v887
      %v889 = vpop.f32.mrf.mxu0
      %890 = vdwg.mxu0
      %v891 = vmul.f32 %v888, %v888
      %v892 = vsel %vm452, %v891, 0.0
      %893 = vadd.xlane.f32.xlu0 %v892
      %v894 = vpop.xlane.xlu0 %893
      %v895 = vmax.f32 %v894, 1e-15
      %v896 = vrsqrt.pop %v895
      %v897 = vmul.f32 %v896, %v895
      %v898 = vmul.f32 %v897, %v896
      %v899 = vmul.f32 0.5, %v898
      %v900 = vsub.f32 1.5, %v899
      %v901 = vmul.f32 %v896, %v900
      %v902 = vmul.f32 %v895, %v901
      %vm903 = vcmp.eq.f32.partialorder %v895, inf
      %v904 = vsel %vm903, %v895, %v902
      %vm905 = vcmp.eq.f32.partialorder %v895, 0.0
      %v906 = vand.u32 %v895, 2147483648
      %v907 = vsel %vm905, %v906, %v904
      %v908 = vrcp.pop %v873
      %v909 = vmul.f32 %v907, %v908
      %v910 = vmul.f32 %v489, %v873
      %v911 = vmax.f32 %v910, -0.9999999
      %v912 = vmin.f32 %v911, 0.9999999
      %v913 = vadd.f32 %v912, 1.0
      %v914 = vsub.f32 1.0, %v912
      %v915 = vrcp.pop %v914
      %v916 = vmul.f32 %v914, %v915
      %v917 = vsub.f32 1.0, %v916
      %v918 = vmul.f32 %v915, %v917
      %v919 = vadd.f32 %v915, %v918
      %vm920 = vweird.f32 %v914
      %vm921 = vweird.f32 %v915
      %vm922 = vmor %vm920, %vm921
      %v923 = vsel %vm922, %v915, %v919
      %v924 = vand.u32 2147483647, %v914
      %vm925 = vcmp.eq.f32.partialorder %v924, 8.507059e+37
      %v926 = vand.u32 %v914, 2147483648
      %v927 = vor.u32 1.1754944e-38, %v926
      %v928 = vsel %vm925, %v927, %v923
      %v929 = vmul.f32 %v913, %v928
      %v930 = vlog2.pop %v929
      %v931 = vmul.f32 %v930, 0.6931472
      %v932 = vmul.f32 %v931, 0.5
      %v933 = vmul.f32 %v909, %v932
      %v934 = vtanh.pop %v933
      %v935 = vmul.f32 %v934, %v888
      %v936 = vmul.f32 %v907, %v489
      %v937 = vrcp.pop %v936
      %v938 = vmul.f32 %v935, %v937
      %vm939 = vcmp.le.f32.partialorder %v894, 1e-15
      %v940 = vsel %vm939, 1, 0
      %vm941 = vcmp.eq.s32.totalorder %v940, 1
      %v942 = vsel %vm941, 0.0, %v938
      %v943 = vmul.f32 %v942, %v942
      %v944 = vsel %vm452, %v943, 0.0
      %945 = vadd.xlane.f32.xlu0 %v944
      %v946 = vpop.xlane.xlu0 %945
      %v947 = vmax.f32 %v946, 1e-15
      %v948 = vrsqrt.pop %v947
      %v949 = vmul.f32 %v948, %v947
      %v950 = vmul.f32 %v949, %v948
      %v951 = vmul.f32 0.5, %v950
      %v952 = vsub.f32 1.5, %v951
      %v953 = vmul.f32 %v948, %v952
      %v954 = vmul.f32 %v947, %v953
      %vm955 = vcmp.eq.f32.partialorder %v947, inf
      %v956 = vsel %vm955, %v947, %v954
      %vm957 = vcmp.eq.f32.partialorder %v947, 0.0
      %v958 = vand.u32 %v947, 2147483648
      %v959 = vsel %vm957, %v958, %v956
      %v960 = vrcp.pop %v959
      %v961 = vmul.f32 %v959, %v960
      %v962 = vsub.f32 1.0, %v961
      %v963 = vmul.f32 %v960, %v962
      %v964 = vadd.f32 %v960, %v963
      %vm965 = vweird.f32 %v959
      %vm966 = vweird.f32 %v960
      %vm967 = vmor %vm965, %vm966
      %v968 = vsel %vm967, %v960, %v964
      %v969 = vand.u32 2147483647, %v959
      %vm970 = vcmp.eq.f32.partialorder %v969, 8.507059e+37
      %v971 = vand.u32 %v959, 2147483648
      %v972 = vor.u32 1.1754944e-38, %v971
      %v973 = vsel %vm970, %v972, %v968
      %v974 = vmul.f32 %v607, %v973
      %v975 = vmin.f32 %v974, 1.0
      %v976 = vmul.f32 %v942, %v975
      %v977 = vmul.f32 %v976, %v976
      %v978 = vsel %vm452, %v977, 0.0
      %979 = vadd.xlane.f32.xlu0 %v978
      %v980 = vpop.xlane.xlu0 %979
      %v981 = vmul.f32 %v976, %v656
      %v982 = vsel %vm452, %v981, 0.0
      %983 = vadd.xlane.f32.xlu0 %v982
      %v984 = vpop.xlane.xlu0 %983
      %v985 = vmul.f32 %v667, %v984
      %v986 = vadd.f32 %v985, 1.0
      %v987 = vadd.f32 %v986, %v674
      %v988 = vmul.f32 %v987, %v976
      %v989 = vmul.f32 %v672, %v980
      %v990 = vsub.f32 1.0, %v989
      %v991 = vmul.f32 %v990, %v656
      %v992 = vadd.f32 %v988, %v991
      %v993 = vmul.f32 %v688, %v980
      %v994 = vmul.f32 %v993, %v691
      %v995 = vadd.f32 %v986, %v994
      %v996 = vmax.f32 %v995, 1e-15
      %v997 = vrcp.pop %v996
      %v998 = vmul.f32 %v992, %v997
      %v999 = vmul.f32 %v998, %v998
      %v1000 = vsel %vm452, %v999, 0.0
      %1001 = vadd.xlane.f32.xlu0 %v1000
      %v1002 = vpop.xlane.xlu0 %1001
      %v1003 = vmax.f32 %v1002, 1e-15
      %v1004 = vrsqrt.pop %v1003
      %v1005 = vmul.f32 %v1004, %v1003
      %v1006 = vmul.f32 %v1005, %v1004
      %v1007 = vmul.f32 0.5, %v1006
      %v1008 = vsub.f32 1.5, %v1007
      %v1009 = vmul.f32 %v1004, %v1008
      %v1010 = vmul.f32 %v1003, %v1009
      %vm1011 = vcmp.eq.f32.partialorder %v1003, inf
      %v1012 = vsel %vm1011, %v1003, %v1010
      %vm1013 = vcmp.eq.f32.partialorder %v1003, 0.0
      %v1014 = vand.u32 %v1003, 2147483648
      %v1015 = vsel %vm1013, %v1014, %v1012
      %v1016 = vrcp.pop %v1015
      %v1017 = vmul.f32 %v1015, %v1016
      %v1018 = vsub.f32 1.0, %v1017
      %v1019 = vmul.f32 %v1016, %v1018
      %v1020 = vadd.f32 %v1016, %v1019
      %vm1021 = vweird.f32 %v1015
      %vm1022 = vweird.f32 %v1016
      %vm1023 = vmor %vm1021, %vm1022
      %v1024 = vsel %vm1023, %v1016, %v1020
      %v1025 = vand.u32 2147483647, %v1015
      %vm1026 = vcmp.eq.f32.partialorder %v1025, 8.507059e+37
      %v1027 = vand.u32 %v1015, 2147483648
      %v1028 = vor.u32 1.1754944e-38, %v1027
      %v1029 = vsel %vm1026, %v1028, %v1024
      %v1030 = vmul.f32 %v607, %v1029
      %v1031 = vmin.f32 %v1030, 1.0
      %v1032 = vmul.f32 %v998, %v1031
      %v1033 = vmul.f32 %v1032, %v1032
      %v1034 = vsel %vm452, %v1033, 0.0
      %1035 = vadd.xlane.f32.xlu0 %v1034
      %v1036 = vpop.xlane.xlu0 %1035
      %v1037 = vmax.f32 %v1036, 1e-15
      %v1038 = vrsqrt.pop %v1037
      %v1039 = vmul.f32 %v1038, %v1037
      %v1040 = vmul.f32 %v1039, %v1038
      %v1041 = vmul.f32 0.5, %v1040
      %v1042 = vsub.f32 1.5, %v1041
      %v1043 = vmul.f32 %v1038, %v1042
      %v1044 = vmul.f32 %v1037, %v1043
      %vm1045 = vcmp.eq.f32.partialorder %v1037, inf
      %v1046 = vsel %vm1045, %v1037, %v1044
      %vm1047 = vcmp.eq.f32.partialorder %v1037, 0.0
      %v1048 = vand.u32 %v1037, 2147483648
      %v1049 = vsel %vm1047, %v1048, %v1046
      %v1050 = vmul.f32 %v489, %v1049
      %v1051 = vmax.f32 %v1050, -0.9999999
      %v1052 = vmin.f32 %v1051, 0.9999999
      %v1053 = vadd.f32 %v1052, 1.0
      %v1054 = vsub.f32 1.0, %v1052
      %v1055 = vrcp.pop %v1054
      %v1056 = vmul.f32 %v1054, %v1055
      %v1057 = vsub.f32 1.0, %v1056
      %v1058 = vmul.f32 %v1055, %v1057
      %v1059 = vadd.f32 %v1055, %v1058
      %vm1060 = vweird.f32 %v1054
      %vm1061 = vweird.f32 %v1055
      %vm1062 = vmor %vm1060, %vm1061
      %v1063 = vsel %vm1062, %v1055, %v1059
      %v1064 = vand.u32 2147483647, %v1054
      %vm1065 = vcmp.eq.f32.partialorder %v1064, 8.507059e+37
      %v1066 = vand.u32 %v1054, 2147483648
      %v1067 = vor.u32 1.1754944e-38, %v1066
      %v1068 = vsel %vm1065, %v1067, %v1063
      %v1069 = vmul.f32 %v1053, %v1068
      %v1070 = vlog2.pop %v1069
      %v1071 = vmul.f32 %v1070, 0.6931472
      %v1072 = vmul.f32 %v1071, 0.5
      %v1073 = vmul.f32 %v1072, %v1032
      %v1074 = vrcp.pop %v1050
      %v1075 = vmul.f32 %v1073, %v1074
      %v1076 = vld [vmem:[%s4] sm:$0x1]
      %v1078 = vperm.slane %v1076, 0
      %v1080 = vmul.f32 %v1075, %v1078
      %v1081 = vsel %vm452, %v1080, 0.0
      %1082 = vadd.xlane.f32.xlu0 %v1081
      %v1083 = vpop.xlane.xlu0 %1082
      %v1084 = vld [vmem:[%s5] sm:$0x1]
      %v1086 = vsel %vm452, %v1084, 0
      %v1089 = vsel %vm452, %v854, 0
      %v1092 = vsel %vm452, %v855, 0
      %1094 = vmatpush.xpose.msra.mxu0 0.0
      %1095 = vmatpush.xpose.msra.mxu0 0.0
      %1096 = vmatpush.xpose.msra.mxu0 0.0
      %1097 = vmatpush.xpose.msra.mxu0 0.0
      %1098 = vmatpush.xpose.msra.mxu0 0.0
      %1099 = vmatpush.xpose.msra.mxu0 0.0
      %1100 = vmatpush.xpose.msra.mxu0 0.0
      %1101 = vmatpush.xpose.msra.mxu0 0.0
      %1102 = vmatpush.xpose.msra.mxu0 0.0
      %1103 = vmatpush.xpose.msra.mxu0 0.0
      %1104 = vmatpush.xpose.msra.mxu0 0.0
      %1105 = vmatpush.xpose.msra.mxu0 0.0
      %1106 = vmatpush.xpose.msra.mxu0 0.0
      %1107 = vmatpush.xpose.msra.mxu0 0.0
      %1108 = vmatpush.xpose.msra.mxu0 %v1092
      %1109 = vmatpush.xpose.msra.mxu0 %v1089
      %1110 = vmatmul.f32.gmra.mxu0 %v1086
      %v1111 = vpop.f32.mrf.mxu0
      %v1112 = vadd.f32 0.0, %v1111
      %1113 = vdwg.mxu0
      %v1114 = vperm.slane %v1112, 0
      %v1115 = vadd.f32 %v1083, %v1114
      %vm1116 = vcmp.gt.f32.partialorder %v1115, 0.0
      %v1117 = vmul.f32 %v1115, 0.2
      %v1118 = vsel %vm1116, %v1115, %v1117
      %v1119 = vld [vmem:[%s342] sm:$0xff]
      %vm1120 = vcmp.gt.f32.partialorder %v1119, 0.0
      %v1121 = vsel %vm1120, %v1118, -1e+09
      %v1122 = vsel %vm452, %v1121, -inf
      %1123 = vmax.xlane.f32.xlu0 %v1122
      %v1124 = vpop.xlane.xlu0 %1123
      %v1125 = vsub.f32 %v1121, %v1124
      %v1126 = vmul.f32 %v1125, 1.442695
      %v1127 = vpow.pop %v1126
      %v1128 = vsel %vm1120, %v1127, 0.0
      %v1129 = vsel %vm452, %v1128, 0.0
      %1130 = vadd.xlane.f32.xlu0 %v1129
      %v1131 = vpop.xlane.xlu0 %1130
      %v1132 = vmax.f32 %v1131, 1e-15
      %v1133 = vrcp.pop %v1132
      %v1134 = vmul.f32 %v1128, %v1133
      %v1135 = vpack.c.bf16 %v1134, %v1134
      %v1136 = vpack.c.bf16 %v855, %v854
      %v1138 = vsel %vm452, %v1135, 0
      %1140 = vmatpush.bf16.msra.mxu0 0
      %1141 = vmatpush.bf16.msra.mxu0 0
      %1142 = vmatpush.bf16.msra.mxu0 0
      %1143 = vmatpush.bf16.msra.mxu0 0
      %1144 = vmatpush.bf16.msra.mxu0 0
      %1145 = vmatpush.bf16.msra.mxu0 0
      %1146 = vmatpush.bf16.msra.mxu0 0
      %1147 = vmatpush.bf16.msra.mxu0 %v1136
      %1148 = vmatmul.bf16.gmra.mxu0 %v1138
      %v1149 = vpop.f32.mrf.mxu0
      %v1150 = vadd.f32 0.0, %v1149
      %v1151 = vpop.f32.mrf.mxu0
      %1152 = vdwg.mxu0
      %v1153 = vstv %s363
      %v1154 = vrcp.pop %v1153
      %v1155 = vmul.f32 %v1153, %v1154
      %v1156 = vsub.f32 1.0, %v1155
      %v1157 = vmul.f32 %v1154, %v1156
      %v1158 = vadd.f32 %v1154, %v1157
      %vm1159 = vweird.f32 %v1153
      %vm1160 = vweird.f32 %v1154
      %vm1161 = vmor %vm1159, %vm1160
      %v1162 = vsel %vm1161, %v1154, %v1158
      %v1163 = vand.u32 2147483647, %v1153
      %vm1164 = vcmp.eq.f32.partialorder %v1163, 8.507059e+37
      %v1165 = vand.u32 %v1153, 2147483648
      %v1166 = vor.u32 1.1754944e-38, %v1165
      %v1167 = vsel %vm1164, %v1166, %v1162
      %s1168 = vtos %v1167
      %s1169 = smul.f32 3.106303, %s1168
      %v1170 = vmul.f32 %v1150, %v1150
      %v1171 = vsel %vm452, %v1170, 0.0
      %1172 = vadd.xlane.f32.xlu0 %v1171
      %v1173 = vpop.xlane.xlu0 %1172
      %v1174 = vmax.f32 %v1173, 1e-15
      %v1175 = vrsqrt.pop %v1174
      %v1176 = vmul.f32 %v1175, %v1174
      %v1177 = vmul.f32 %v1176, %v1175
      %v1178 = vmul.f32 0.5, %v1177
      %v1179 = vsub.f32 1.5, %v1178
      %v1180 = vmul.f32 %v1175, %v1179
      %v1181 = vmul.f32 %v1174, %v1180
      %vm1182 = vcmp.eq.f32.partialorder %v1174, inf
      %v1183 = vsel %vm1182, %v1174, %v1181
      %vm1184 = vcmp.eq.f32.partialorder %v1174, 0.0
      %v1185 = vand.u32 %v1174, 2147483648
      %v1186 = vsel %vm1184, %v1185, %v1183
      %v1187 = vstv %s1169
      %v1188 = vrcp.pop %v1186
      %v1189 = vmul.f32 %v1186, %v1188
      %v1190 = vsub.f32 1.0, %v1189
      %v1191 = vmul.f32 %v1188, %v1190
      %v1192 = vadd.f32 %v1188, %v1191
      %vm1193 = vweird.f32 %v1186
      %vm1194 = vweird.f32 %v1188
      %vm1195 = vmor %vm1193, %vm1194
      %v1196 = vsel %vm1195, %v1188, %v1192
      %v1197 = vand.u32 2147483647, %v1186
      %vm1198 = vcmp.eq.f32.partialorder %v1197, 8.507059e+37
      %v1199 = vand.u32 %v1186, 2147483648
      %v1200 = vor.u32 1.1754944e-38, %v1199
      %v1201 = vsel %vm1198, %v1200, %v1196
      %v1202 = vmul.f32 %v1187, %v1201
      %v1203 = vmin.f32 %v1202, 1.0
      %v1204 = vmul.f32 %v1150, %v1203
      %v1205 = vmax.f32 %v1204, 0.0
      %v1206 = vmul.f32 %v1205, %v1205
      %v1207 = vsel %vm452, %v1206, 0.0
      %1208 = vadd.xlane.f32.xlu0 %v1207
      %v1209 = vpop.xlane.xlu0 %1208
      %v1210 = vmax.f32 %v1209, 1e-15
      %v1211 = vrsqrt.pop %v1210
      %v1212 = vmul.f32 %v1211, %v1210
      %v1213 = vmul.f32 %v1212, %v1211
      %v1214 = vmul.f32 0.5, %v1213
      %v1215 = vsub.f32 1.5, %v1214
      %v1216 = vmul.f32 %v1211, %v1215
      %v1217 = vmul.f32 %v1210, %v1216
      %vm1218 = vcmp.eq.f32.partialorder %v1210, inf
      %v1219 = vsel %vm1218, %v1210, %v1217
      %vm1220 = vcmp.eq.f32.partialorder %v1210, 0.0
      %v1221 = vand.u32 %v1210, 2147483648
      %v1222 = vsel %vm1220, %v1221, %v1219
      %v1223 = vstv %s377
      %v1224 = vmul.f32 %v1223, %v1222
      %v1225 = vtanh.pop %v1224
      %v1226 = vmul.f32 %v1225, %v1205
      %v1227 = vrcp.pop %v1224
      %v1228 = vmul.f32 %v1226, %v1227
      %v1229 = vmul.f32 %v1228, %v1228
      %v1230 = vsel %vm452, %v1229, 0.0
      %1231 = vadd.xlane.f32.xlu0 %v1230
      %v1232 = vpop.xlane.xlu0 %1231
      %v1233 = vmax.f32 %v1232, 1e-15
      %v1234 = vrsqrt.pop %v1233
      %v1235 = vmul.f32 %v1234, %v1233
      %v1236 = vmul.f32 %v1235, %v1234
      %v1237 = vmul.f32 0.5, %v1236
      %v1238 = vsub.f32 1.5, %v1237
      %v1239 = vmul.f32 %v1234, %v1238
      %v1240 = vmul.f32 %v1233, %v1239
      %vm1241 = vcmp.eq.f32.partialorder %v1233, inf
      %v1242 = vsel %vm1241, %v1233, %v1240
      %vm1243 = vcmp.eq.f32.partialorder %v1233, 0.0
      %v1244 = vand.u32 %v1233, 2147483648
      %v1245 = vsel %vm1243, %v1244, %v1242
      %v1246 = vstv %s377
      %v1247 = vrcp.pop %v1246
      %v1248 = vmul.f32 %v1246, %v1247
      %v1249 = vsub.f32 1.0, %v1248
      %v1250 = vmul.f32 %v1247, %v1249
      %v1251 = vadd.f32 %v1247, %v1250
      %vm1252 = vweird.f32 %v1246
      %vm1253 = vweird.f32 %v1247
      %vm1254 = vmor %vm1252, %vm1253
      %v1255 = vsel %vm1254, %v1247, %v1251
      %v1256 = vand.u32 2147483647, %v1246
      %vm1257 = vcmp.eq.f32.partialorder %v1256, 8.507059e+37
      %v1258 = vand.u32 %v1246, 2147483648
      %v1259 = vor.u32 1.1754944e-38, %v1258
      %v1260 = vsel %vm1257, %v1259, %v1255
      %s1261 = vtos %v1260
      %s1262 = smul.f32 0.996, %s1261
      %v1263 = vstv %s1262
      %v1264 = vrcp.pop %v1245
      %v1265 = vmul.f32 %v1245, %v1264
      %v1266 = vsub.f32 1.0, %v1265
      %v1267 = vmul.f32 %v1264, %v1266
      %v1268 = vadd.f32 %v1264, %v1267
      %vm1269 = vweird.f32 %v1245
      %vm1270 = vweird.f32 %v1264
      %vm1271 = vmor %vm1269, %vm1270
      %v1272 = vsel %vm1271, %v1264, %v1268
      %v1273 = vand.u32 2147483647, %v1245
      %vm1274 = vcmp.eq.f32.partialorder %v1273, 8.507059e+37
      %v1275 = vand.u32 %v1245, 2147483648
      %v1276 = vor.u32 1.1754944e-38, %v1275
      %v1277 = vsel %vm1274, %v1276, %v1272
      %v1278 = vmul.f32 %v1263, %v1277
      %v1279 = vmin.f32 %v1278, 1.0
      %v1280 = vmul.f32 %v1228, %v1279
      %1281 = vst.msk [vmem:[%s346] sm:$0xff] %vm452, %v1280
      %p1282 = scmp.lt.s32.totalorder %s22, 1
      %s1283 = scalar_select %p1282, %s22, 1
      %s1284 = smul.addr %s1283, 8
      %s1285 = scalar_lea.vmem %s9, %s1284
      // Predicated region
      $region57: #{hgat_model_forward.4} parent=55 // pred_check
        %p1286 = pneg %p239
      $region58: #{hgat_model_forward.4} parent=55 // pred_check_branch
        %1288 = sbr.rel (%p1286) target = $region60
      $region59: #{hgat_model_forward.4} parent=55 // pred_region
        _
      $region60: #{hgat_model_forward.4} parent=55 // pred_fallthru
        _
    $region56: #{hgat_model_forward.4} parent=5 // pred_fallthru
      _
    %p1289 = scmp.le.s32.totalorder 2, %s17
    // Predicated region
    $region61: #{hgat_model_forward.4} parent=5 // pred_check
      %p1290 = pneg %p1289
    $region62: #{hgat_model_forward.4} parent=5 // pred_check_branch
      %1292 = sbr.rel (%p1290) target = $region64
    $region63: #{hgat_model_forward.4} parent=5 // pred_region
      %s1293 = ssub.s32 %s17, 2
      // Predicated region
      $region65: #{hgat_model_forward.4} parent=63 // pred_check
        %p1294 = pneg %p245
      $region66: #{hgat_model_forward.4} parent=63 // pred_check_branch
        %1296 = sbr.rel (%p1294) target = $region68
      $region67: #{hgat_model_forward.4} parent=63 // pred_region
        %p1297 = scmp.lt.s32.totalorder %s23, 1
        %s1298 = scalar_select %p1297, %s23, 1
        %s1299 = smul.addr %s1298, 8
        %s1300 = scalar_lea.vmem %s9, %s1299
      $region68: #{hgat_model_forward.4} parent=63 // pred_fallthru
        _
    $region64: #{hgat_model_forward.4} parent=5 // pred_fallthru
      _
  $region6: #{hgat_model_forward.4} parent=0 // loop_footer
    %s21 = sadd.s32 1, %s17
  $region7: #{hgat_model_forward.4} parent=0 // loop_footer_branch
    %16 = sbr.rel target = $region3
  $region8: #{hgat_model_forward.4} parent=0 // loop_exit
    _

// kernel: hgat_model_forward.3
$region0: #{hgat_model_forward.3}
  #allocation0 [shape = 'u32[]', space=smem, size = 0x4, offset = 0x4, fixed_abs, tag = 'smem constant byte address 0x4 - core index']
  #allocation1 [shape = 'u32[72,128]{1,0:T(1,128)}', space=vmem, size = 0x9000, scoped, tag = 'internal scratch']
  #allocation2 [shape = 'f32[1,1]{1,0:T(1,128)S(6)}', space=smem, size = 0x200, scoped, tag = 'scoped memory for hgat_model_forward.3']
  #allocation3 [shape = 'f32[1,1]{1,0:T(1,128)S(6)}', space=smem, size = 0x200, scoped, tag = 'scoped memory for hgat_model_forward.3']
  %s0 = inlined_call_operand.vmem [shape: f32[16,32], index: 0, kind: input, shape index: {}, may-alias: {0,1}]
  %s1 = inlined_call_operand.vmem [shape: f32[16,32], index: 1, kind: input, shape index: {}, may-alias: {0,1}]
  %s2 = inlined_call_operand.vmem [shape: bf16[32,32], index: 2, kind: input, shape index: {}]
  %s3 = inlined_call_operand.vmem [shape: f32[1,32], index: 3, kind: input, shape index: {}]
  %s4 = inlined_call_operand.vmem [shape: f32[1,32], index: 4, kind: input, shape index: {}]
  %s5 = inlined_call_operand.vmem [shape: f32[1,32], index: 5, kind: input, shape index: {}]
  %s6 = inlined_call_operand.vmem [shape: f32[16,16], index: 6, kind: input, shape index: {}]
  %s7 = inlined_call_operand.<no memory space> [shape: f32[1,1], index: 7, kind: input, shape index: {}]
  %s8 = inlined_call_operand.<no memory space> [shape: f32[1,1], index: 8, kind: input, shape index: {}]
  %s9 = inlined_call_operand.vmem [shape: f32[16,32], index: 9, kind: output, shape index: {}]
  %s10 = sld [smem:[#allocation0]]
  $region69: #{hgat_model_forward.3} parent=0
    _
  %s12 = ssub.s32 1, %s10
  %s13 = scalar_select 0, %s12, %s10
  %14 = sst [smem:[#allocation2]] %s7
  %15 = sst [smem:[#allocation3]] %s8
  loop: start=0, step=1, limit=4
  $region2: #{hgat_model_forward.3} parent=0 // loop_pre_header
    _
  $region3: #{hgat_model_forward.3} parent=0 // loop_header
    %s17 = sphi 0, %s21
    %p18 = scmp.ge.s32.totalorder %s17, 4
    %s25 = sphi 0, %s25
    %s27 = sphi 0, %s25
    %s28 = sphi 0, %s27
    %s42 = sphi 0, %s28
    %s48 = sphi 0, %s50
    %s51 = sphi 0, %s48
    %s52 = sphi 0, %s51
    %s68 = sphi 0, %s52
    %s72 = sphi 0, %s72
    %s74 = sphi 0, %s72
    %s75 = sphi 0, %s74
    %s89 = sphi 0, %s75
    %s93 = sphi 0, %s93
    %s95 = sphi 0, %s93
    %s96 = sphi 0, %s95
    %s110 = sphi 0, %s96
    %s114 = sphi 0, %s114
    %s116 = sphi 0, %s114
    %s117 = sphi 0, %s116
    %s131 = sphi 0, %s117
    %s135 = sphi 0, %s135
    %s137 = sphi 0, %s135
    %s138 = sphi 0, %s137
    %s152 = sphi 0, %s138
    %s158 = sphi 0, %s160
    %s161 = sphi 0, %s158
    %s162 = sphi 0, %s161
    %s178 = sphi 0, %s162
    %s182 = sphi 0, %s182
    %s184 = sphi 0, %s182
    %s185 = sphi 0, %s184
    %s199 = sphi 0, %s185
    %s203 = sphi 0, %s203
    %s205 = sphi 0, %s203
    %s206 = sphi 0, %s205
    %s220 = sphi 0, %s206
    %s226 = sphi 0, %s228
    %s229 = sphi 0, %s226
    %s230 = sphi 0, %s229
    %s246 = sphi 0, %s230
  $region4: #{hgat_model_forward.3} parent=0 // loop_header_branch
    %20 = sbr.rel (%p18) target = $region8
  $region5: #{hgat_model_forward.3} parent=0 // loop_body
    %s22 = ssub.s32 %s17, 1
    %s23 = ssub.s32 %s17, 2
    %s24 = sadd.s32 %s17, 1
    %s26 = sadd.s32 %s25, 1
    %p29 = scmp.eq.s32.totalorder %s17, 1
    %p30 = scmp.ne.s32.totalorder %s25, %s27
    %p31 = scmp.eq.s32.totalorder %s17, 0
    %p32 = por %p30, %p31
    %p33 = scmp.ne.s32.totalorder %s25, %s27
    %p34 = scmp.eq.s32.totalorder %s22, 1
    %p35 = por %p33, %p34
    %p36 = scmp.ne.s32.totalorder %s27, %s28
    %p37 = scmp.eq.s32.totalorder %s22, 0
    %p38 = por %p36, %p37
    %p39 = scmp.ne.s32.totalorder %s27, %s28
    %p40 = scmp.eq.s32.totalorder %s23, 1
    %p41 = por %p39, %p40
    %p43 = scmp.ne.s32.totalorder %s28, %s42
    %p44 = scmp.eq.s32.totalorder %s23, 0
    %p45 = por %p43, %p44
    %s46 = ssub.s32 %s17, %s24
    %p47 = scmp.eq.s32.totalorder %s46, 0
    %s49 = sadd.s32 %s48, 1
    %s50 = scalar_select %p47, %s48, %s49
    %p53 = pneg %p47
    %p54 = scmp.eq.s32.totalorder %s17, 1
    %p55 = por %p53, %p54
    %p56 = scmp.ne.s32.totalorder %s48, %s51
    %p57 = scmp.eq.s32.totalorder %s17, 0
    %p58 = por %p56, %p57
    %p59 = scmp.ne.s32.totalorder %s48, %s51
    %p60 = scmp.eq.s32.totalorder %s22, 1
    %p61 = por %p59, %p60
    %p62 = scmp.ne.s32.totalorder %s51, %s52
    %p63 = scmp.eq.s32.totalorder %s22, 0
    %p64 = por %p62, %p63
    %p65 = scmp.ne.s32.totalorder %s51, %s52
    %p66 = scmp.eq.s32.totalorder %s23, 1
    %p67 = por %p65, %p66
    %p69 = scmp.ne.s32.totalorder %s52, %s68
    %p70 = scmp.eq.s32.totalorder %s23, 0
    %p71 = por %p69, %p70
    %s73 = sadd.s32 %s72, 1
    %p76 = scmp.eq.s32.totalorder %s17, 1
    %p77 = scmp.ne.s32.totalorder %s72, %s74
    %p78 = scmp.eq.s32.totalorder %s17, 0
    %p79 = por %p77, %p78
    %p80 = scmp.ne.s32.totalorder %s72, %s74
    %p81 = scmp.eq.s32.totalorder %s22, 1
    %p82 = por %p80, %p81
    %p83 = scmp.ne.s32.totalorder %s74, %s75
    %p84 = scmp.eq.s32.totalorder %s22, 0
    %p85 = por %p83, %p84
    %p86 = scmp.ne.s32.totalorder %s74, %s75
    %p87 = scmp.eq.s32.totalorder %s23, 1
    %p88 = por %p86, %p87
    %p90 = scmp.ne.s32.totalorder %s75, %s89
    %p91 = scmp.eq.s32.totalorder %s23, 0
    %p92 = por %p90, %p91
    %s94 = sadd.s32 %s93, 1
    %p97 = scmp.eq.s32.totalorder %s17, 1
    %p98 = scmp.ne.s32.totalorder %s93, %s95
    %p99 = scmp.eq.s32.totalorder %s17, 0
    %p100 = por %p98, %p99
    %p101 = scmp.ne.s32.totalorder %s93, %s95
    %p102 = scmp.eq.s32.totalorder %s22, 1
    %p103 = por %p101, %p102
    %p104 = scmp.ne.s32.totalorder %s95, %s96
    %p105 = scmp.eq.s32.totalorder %s22, 0
    %p106 = por %p104, %p105
    %p107 = scmp.ne.s32.totalorder %s95, %s96
    %p108 = scmp.eq.s32.totalorder %s23, 1
    %p109 = por %p107, %p108
    %p111 = scmp.ne.s32.totalorder %s96, %s110
    %p112 = scmp.eq.s32.totalorder %s23, 0
    %p113 = por %p111, %p112
    %s115 = sadd.s32 %s114, 1
    %p118 = scmp.eq.s32.totalorder %s17, 1
    %p119 = scmp.ne.s32.totalorder %s114, %s116
    %p120 = scmp.eq.s32.totalorder %s17, 0
    %p121 = por %p119, %p120
    %p122 = scmp.ne.s32.totalorder %s114, %s116
    %p123 = scmp.eq.s32.totalorder %s22, 1
    %p124 = por %p122, %p123
    %p125 = scmp.ne.s32.totalorder %s116, %s117
    %p126 = scmp.eq.s32.totalorder %s22, 0
    %p127 = por %p125, %p126
    %p128 = scmp.ne.s32.totalorder %s116, %s117
    %p129 = scmp.eq.s32.totalorder %s23, 1
    %p130 = por %p128, %p129
    %p132 = scmp.ne.s32.totalorder %s117, %s131
    %p133 = scmp.eq.s32.totalorder %s23, 0
    %p134 = por %p132, %p133
    %s136 = sadd.s32 %s135, 1
    %p139 = scmp.eq.s32.totalorder %s17, 1
    %p140 = scmp.ne.s32.totalorder %s135, %s137
    %p141 = scmp.eq.s32.totalorder %s17, 0
    %p142 = por %p140, %p141
    %p143 = scmp.ne.s32.totalorder %s135, %s137
    %p144 = scmp.eq.s32.totalorder %s22, 1
    %p145 = por %p143, %p144
    %p146 = scmp.ne.s32.totalorder %s137, %s138
    %p147 = scmp.eq.s32.totalorder %s22, 0
    %p148 = por %p146, %p147
    %p149 = scmp.ne.s32.totalorder %s137, %s138
    %p150 = scmp.eq.s32.totalorder %s23, 1
    %p151 = por %p149, %p150
    %p153 = scmp.ne.s32.totalorder %s138, %s152
    %p154 = scmp.eq.s32.totalorder %s23, 0
    %p155 = por %p153, %p154
    %s156 = ssub.s32 %s17, %s24
    %p157 = scmp.eq.s32.totalorder %s156, 0
    %s159 = sadd.s32 %s158, 1
    %s160 = scalar_select %p157, %s158, %s159
    %p163 = pneg %p157
    %p164 = scmp.eq.s32.totalorder %s17, 1
    %p165 = por %p163, %p164
    %p166 = scmp.ne.s32.totalorder %s158, %s161
    %p167 = scmp.eq.s32.totalorder %s17, 0
    %p168 = por %p166, %p167
    %p169 = scmp.ne.s32.totalorder %s158, %s161
    %p170 = scmp.eq.s32.totalorder %s22, 1
    %p171 = por %p169, %p170
    %p172 = scmp.ne.s32.totalorder %s161, %s162
    %p173 = scmp.eq.s32.totalorder %s22, 0
    %p174 = por %p172, %p173
    %p175 = scmp.ne.s32.totalorder %s161, %s162
    %p176 = scmp.eq.s32.totalorder %s23, 1
    %p177 = por %p175, %p176
    %p179 = scmp.ne.s32.totalorder %s162, %s178
    %p180 = scmp.eq.s32.totalorder %s23, 0
    %p181 = por %p179, %p180
    %s183 = sadd.s32 %s182, 1
    %p186 = scmp.eq.s32.totalorder %s17, 1
    %p187 = scmp.ne.s32.totalorder %s182, %s184
    %p188 = scmp.eq.s32.totalorder %s17, 0
    %p189 = por %p187, %p188
    %p190 = scmp.ne.s32.totalorder %s182, %s184
    %p191 = scmp.eq.s32.totalorder %s22, 1
    %p192 = por %p190, %p191
    %p193 = scmp.ne.s32.totalorder %s184, %s185
    %p194 = scmp.eq.s32.totalorder %s22, 0
    %p195 = por %p193, %p194
    %p196 = scmp.ne.s32.totalorder %s184, %s185
    %p197 = scmp.eq.s32.totalorder %s23, 1
    %p198 = por %p196, %p197
    %p200 = scmp.ne.s32.totalorder %s185, %s199
    %p201 = scmp.eq.s32.totalorder %s23, 0
    %p202 = por %p200, %p201
    %s204 = sadd.s32 %s203, 1
    %p207 = scmp.eq.s32.totalorder %s17, 1
    %p208 = scmp.ne.s32.totalorder %s203, %s205
    %p209 = scmp.eq.s32.totalorder %s17, 0
    %p210 = por %p208, %p209
    %p211 = scmp.ne.s32.totalorder %s203, %s205
    %p212 = scmp.eq.s32.totalorder %s22, 1
    %p213 = por %p211, %p212
    %p214 = scmp.ne.s32.totalorder %s205, %s206
    %p215 = scmp.eq.s32.totalorder %s22, 0
    %p216 = por %p214, %p215
    %p217 = scmp.ne.s32.totalorder %s205, %s206
    %p218 = scmp.eq.s32.totalorder %s23, 1
    %p219 = por %p217, %p218
    %p221 = scmp.ne.s32.totalorder %s206, %s220
    %p222 = scmp.eq.s32.totalorder %s23, 0
    %p223 = por %p221, %p222
    %s224 = ssub.s32 %s17, %s24
    %p225 = scmp.eq.s32.totalorder %s224, 0
    %s227 = sadd.s32 %s226, 1
    %s228 = scalar_select %p225, %s226, %s227
    %p231 = pneg %p225
    %p232 = scmp.eq.s32.totalorder %s17, 1
    %p233 = por %p231, %p232
    %p234 = scmp.ne.s32.totalorder %s226, %s229
    %p235 = scmp.eq.s32.totalorder %s17, 0
    %p236 = por %p234, %p235
    %p237 = scmp.ne.s32.totalorder %s226, %s229
    %p238 = scmp.eq.s32.totalorder %s22, 1
    %p239 = por %p237, %p238
    %p240 = scmp.ne.s32.totalorder %s229, %s230
    %p241 = scmp.eq.s32.totalorder %s22, 0
    %p242 = por %p240, %p241
    %p243 = scmp.ne.s32.totalorder %s229, %s230
    %p244 = scmp.eq.s32.totalorder %s23, 1
    %p245 = por %p243, %p244
    %p247 = scmp.ne.s32.totalorder %s230, %s246
    %p248 = scmp.eq.s32.totalorder %s23, 0
    %p249 = por %p247, %p248
    %p250 = scmp.le.s32.totalorder 1, %s17
    %p251 = scmp.lt.s32.totalorder %s17, 3
    %p252 = pnand %p250, %p251
    %p253 = pneg %p252
    // Predicated region
    $region9: #{hgat_model_forward.3} parent=5 // pred_check
      _
    $region10: #{hgat_model_forward.3} parent=5 // pred_check_branch
      %255 = sbr.rel (%p252) target = $region12
    $region11: #{hgat_model_forward.3} parent=5 // pred_region
      %s256 = ssub.s32 %s17, 1
      // Predicated region
      $region13: #{hgat_model_forward.3} parent=11 // pred_check
        %p257 = pneg %p38
      $region14: #{hgat_model_forward.3} parent=11 // pred_check_branch
        %259 = sbr.rel (%p257) target = $region16
      $region15: #{hgat_model_forward.3} parent=11 // pred_region
        _
      $region16: #{hgat_model_forward.3} parent=11 // pred_fallthru
        _
      // Predicated region
      $region17: #{hgat_model_forward.3} parent=11 // pred_check
        %p260 = pneg %p85
      $region18: #{hgat_model_forward.3} parent=11 // pred_check_branch
        %262 = sbr.rel (%p260) target = $region20
      $region19: #{hgat_model_forward.3} parent=11 // pred_region
        _
      $region20: #{hgat_model_forward.3} parent=11 // pred_fallthru
        _
      // Predicated region
      $region21: #{hgat_model_forward.3} parent=11 // pred_check
        %p263 = pneg %p106
      $region22: #{hgat_model_forward.3} parent=11 // pred_check_branch
        %265 = sbr.rel (%p263) target = $region24
      $region23: #{hgat_model_forward.3} parent=11 // pred_region
        _
      $region24: #{hgat_model_forward.3} parent=11 // pred_fallthru
        _
      // Predicated region
      $region25: #{hgat_model_forward.3} parent=11 // pred_check
        %p266 = pneg %p127
      $region26: #{hgat_model_forward.3} parent=11 // pred_check_branch
        %268 = sbr.rel (%p266) target = $region28
      $region27: #{hgat_model_forward.3} parent=11 // pred_region
        _
      $region28: #{hgat_model_forward.3} parent=11 // pred_fallthru
        _
      // Predicated region
      $region29: #{hgat_model_forward.3} parent=11 // pred_check
        %p269 = pneg %p148
      $region30: #{hgat_model_forward.3} parent=11 // pred_check_branch
        %271 = sbr.rel (%p269) target = $region32
      $region31: #{hgat_model_forward.3} parent=11 // pred_region
        _
      $region32: #{hgat_model_forward.3} parent=11 // pred_fallthru
        _
      // Predicated region
      $region33: #{hgat_model_forward.3} parent=11 // pred_check
        %p272 = pneg %p195
      $region34: #{hgat_model_forward.3} parent=11 // pred_check_branch
        %274 = sbr.rel (%p272) target = $region36
      $region35: #{hgat_model_forward.3} parent=11 // pred_region
        _
      $region36: #{hgat_model_forward.3} parent=11 // pred_fallthru
        _
      // Predicated region
      $region37: #{hgat_model_forward.3} parent=11 // pred_check
        %p275 = pneg %p216
      $region38: #{hgat_model_forward.3} parent=11 // pred_check_branch
        %277 = sbr.rel (%p275) target = $region40
      $region39: #{hgat_model_forward.3} parent=11 // pred_region
        _
      $region40: #{hgat_model_forward.3} parent=11 // pred_fallthru
        _
    $region12: #{hgat_model_forward.3} parent=5 // pred_fallthru
      _
    %p278 = scmp.lt.s32.totalorder %s17, 2
    // Predicated region
    $region41: #{hgat_model_forward.3} parent=5 // pred_check
      %p279 = pneg %p278
    $region42: #{hgat_model_forward.3} parent=5 // pred_check_branch
      %281 = sbr.rel (%p279) target = $region44
    $region43: #{hgat_model_forward.3} parent=5 // pred_region
      // Predicated region
      $region45: #{hgat_model_forward.3} parent=43 // pred_check
        %p282 = pneg %p58
      $region46: #{hgat_model_forward.3} parent=43 // pred_check_branch
        %284 = sbr.rel (%p282) target = $region48
      $region47: #{hgat_model_forward.3} parent=43 // pred_region
        %p285 = scmp.lt.s32.totalorder %s17, 1
        %s286 = scalar_select %p285, %s17, 1
        %s287 = smul.addr %s286, 8
        %s288 = scalar_lea.vmem %s1, %s287
      $region48: #{hgat_model_forward.3} parent=43 // pred_fallthru
        _
      // Predicated region
      $region49: #{hgat_model_forward.3} parent=43 // pred_check
        %p289 = pneg %p168
      $region50: #{hgat_model_forward.3} parent=43 // pred_check_branch
        %291 = sbr.rel (%p289) target = $region52
      $region51: #{hgat_model_forward.3} parent=43 // pred_region
        %p292 = scmp.lt.s32.totalorder %s17, 1
        %s293 = scalar_select %p292, %s17, 1
        %s294 = smul.addr %s293, 8
        %s295 = scalar_lea.vmem %s6, %s294
      $region52: #{hgat_model_forward.3} parent=43 // pred_fallthru
        _
    $region44: #{hgat_model_forward.3} parent=5 // pred_fallthru
      _
    %p296 = scmp.le.s32.totalorder 1, %s17
    %p297 = scmp.lt.s32.totalorder %s17, 3
    %p298 = pnand %p296, %p297
    %p299 = pneg %p298
    // Predicated region
    $region53: #{hgat_model_forward.3} parent=5 // pred_check
      _
    $region54: #{hgat_model_forward.3} parent=5 // pred_check_branch
      %301 = sbr.rel (%p298) target = $region56
    $region55: #{hgat_model_forward.3} parent=5 // pred_region
      %s302 = ssub.s32 %s17, 1
      %p303 = pneg %p38
      %p304 = pneg %p35
      %p305 = scmp.lt.s32.totalorder %s22, 1
      %s306 = scalar_select %p305, %s22, 1
      %s307 = smul.addr %s306, 8
      %s308 = scalar_lea.vmem %s1, %s307
      %p309 = pneg %p64
      %p310 = pneg %p61
      %p311 = pneg %p85
      %p312 = pneg %p82
      %p313 = pneg %p106
      %p314 = pneg %p103
      %p315 = pneg %p127
      %p316 = pneg %p124
      %p317 = pneg %p148
      %p318 = pneg %p145
      %p319 = scmp.lt.s32.totalorder %s22, 1
      %s320 = scalar_select %p319, %s22, 1
      %s321 = smul.addr %s320, 8
      %s322 = scalar_lea.vmem %s6, %s321
      %p323 = pneg %p174
      %p324 = pneg %p171
      %p325 = pneg %p195
      %p326 = pneg %p192
      %p327 = pneg %p216
      %p328 = pneg %p213
      %p329 = pneg %p242
      %p330 = pneg %p239
      %p331 = scmp.lt.s32.totalorder %s22, 1
      %s332 = scalar_select %p331, %s22, 1
      %s333 = smul.addr %s332, 8
      %s334 = scalar_lea.vmem %s9, %s333
      %p335 = scmp.lt.s32.totalorder %s22, 1
      %s336 = scalar_select %p335, %s22, 1
      %s337 = smul.addr %s336, 8
      %s338 = scalar_lea.vmem %s1, %s337
      %p339 = scmp.lt.s32.totalorder %s22, 1
      %s340 = scalar_select %p339, %s22, 1
      %s341 = smul.addr %s340, 8
      %s342 = scalar_lea.vmem %s6, %s341
      %p343 = scmp.lt.s32.totalorder %s22, 1
      %s344 = scalar_select %p343, %s22, 1
      %s345 = smul.addr %s344, 8
      %s346 = scalar_lea.vmem %s9, %s345
      %s348 = sld [smem:[#allocation2]]
      %s349 = sld [smem:[#allocation3]]
      %v350 = vstv %s348
      %v351 = vrsqrt.pop %v350
      %v352 = vmul.f32 %v351, %v350
      %v353 = vmul.f32 %v352, %v351
      %v354 = vmul.f32 0.5, %v353
      %v355 = vsub.f32 1.5, %v354
      %v356 = vmul.f32 %v351, %v355
      %v357 = vmul.f32 %v350, %v356
      %vm358 = vcmp.eq.f32.partialorder %v350, inf
      %v359 = vsel %vm358, %v350, %v357
      %vm360 = vcmp.eq.f32.partialorder %v350, 0.0
      %v361 = vand.u32 %v350, 2147483648
      %v362 = vsel %vm360, %v361, %v359
      %s363 = vtos %v362
      %v364 = vstv %s349
      %v365 = vrsqrt.pop %v364
      %v366 = vmul.f32 %v365, %v364
      %v367 = vmul.f32 %v366, %v365
      %v368 = vmul.f32 0.5, %v367
      %v369 = vsub.f32 1.5, %v368
      %v370 = vmul.f32 %v365, %v369
      %v371 = vmul.f32 %v364, %v370
      %vm372 = vcmp.eq.f32.partialorder %v364, inf
      %v373 = vsel %vm372, %v364, %v371
      %vm374 = vcmp.eq.f32.partialorder %v364, 0.0
      %v375 = vand.u32 %v364, 2147483648
      %v376 = vsel %vm374, %v375, %v373
      %s377 = vtos %v376
      %v378 = vld [vmem:[%s2] sm:$0xf]
      %v379 = vld [vmem:[%s2 + $0x4] sm:$0xf]
      %v380 = vld [vmem:[%s2 + $0x8] sm:$0xf]
      %v381 = vld [vmem:[%s2 + $0xc] sm:$0xf]
      %v382 = vld [vmem:[%s3] sm:$0x1]
      %v383 = vld [vmem:[%s0] sm:$0xff]
      %v384 = vld [vmem:[%s0 + $0x8] sm:$0xff]
      %v385 = vmul.f32 %v383, %v383
      %v386 = vmul.f32 %v384, %v384
      %vm387 = vcmask 261120
      %v388 = vsel %vm387, %v385, 0.0
      %389 = vadd.xlane.f32.xlu0 %v388
      %v390 = vpop.xlane.xlu0 %389
      %v391 = vsel %vm387, %v386, 0.0
      %392 = vadd.xlane.f32.xlu0 %v391
      %v393 = vpop.xlane.xlu0 %392
      %v394 = vmax.f32 %v390, 1e-15
      %v395 = vmax.f32 %v393, 1e-15
      %v396 = vrsqrt.pop %v394
      %v397 = vmul.f32 %v396, %v394
      %v398 = vmul.f32 %v397, %v396
      %v399 = vmul.f32 0.5, %v398
      %v400 = vsub.f32 1.5, %v399
      %v401 = vmul.f32 %v396, %v400
      %v402 = vmul.f32 %v394, %v401
      %vm403 = vcmp.eq.f32.partialorder %v394, inf
      %v404 = vsel %vm403, %v394, %v402
      %vm405 = vcmp.eq.f32.partialorder %v394, 0.0
      %v406 = vand.u32 %v394, 2147483648
      %v407 = vsel %vm405, %v406, %v404
      %v408 = vrsqrt.pop %v395
      %v409 = vmul.f32 %v408, %v395
      %v410 = vmul.f32 %v409, %v408
      %v411 = vmul.f32 0.5, %v410
      %v412 = vsub.f32 1.5, %v411
      %v413 = vmul.f32 %v408, %v412
      %v414 = vmul.f32 %v395, %v413
      %vm415 = vcmp.eq.f32.partialorder %v395, inf
      %v416 = vsel %vm415, %v395, %v414
      %vm417 = vcmp.eq.f32.partialorder %v395, 0.0
      %v418 = vand.u32 %v395, 2147483648
      %v419 = vsel %vm417, %v418, %v416
      %v420 = vpack.c.bf16 %v384, %v383
      %v425 = vunpack.c.l.b16 %v378
      %v426 = vunpack.c.l.b16 %v379
      %v427 = vunpack.c.l.b16 %v380
      %v428 = vunpack.c.l.b16 %v381
      %v429 = vpack.c.b16 %v426, %v425
      %v430 = vpack.c.b16 %v428, %v427
      %v434 = vsel %vm387, %v420, 0
      %436 = vmatpush.bf16.msra.mxu0 0
      %437 = vmatpush.bf16.msra.mxu0 0
      %438 = vmatpush.bf16.msra.mxu0 0
      %439 = vmatpush.bf16.msra.mxu0 0
      %440 = vmatpush.bf16.msra.mxu0 0
      %441 = vmatpush.bf16.msra.mxu0 0
      %442 = vmatpush.bf16.msra.mxu0 %v430
      %443 = vmatpush.bf16.msra.mxu0 %v429
      %444 = vmatmul.bf16.gmra.mxu0 %v434
      %v445 = vpop.f32.mrf.mxu0
      %v446 = vadd.f32 0.0, %v445
      %v447 = vpop.f32.mrf.mxu0
      %v448 = vadd.f32 0.0, %v447
      %449 = vdwg.mxu0
      %v450 = vmul.f32 %v446, %v446
      %v451 = vmul.f32 %v448, %v448
      %v452 = vsel %vm387, %v450, 0.0
      %453 = vadd.xlane.f32.xlu0 %v452
      %v454 = vpop.xlane.xlu0 %453
      %v455 = vsel %vm387, %v451, 0.0
      %456 = vadd.xlane.f32.xlu0 %v455
      %v457 = vpop.xlane.xlu0 %456
      %v458 = vmax.f32 %v454, 1e-15
      %v459 = vmax.f32 %v457, 1e-15
      %v460 = vrsqrt.pop %v458
      %v461 = vmul.f32 %v460, %v458
      %v462 = vmul.f32 %v461, %v460
      %v463 = vmul.f32 0.5, %v462
      %v464 = vsub.f32 1.5, %v463
      %v465 = vmul.f32 %v460, %v464
      %v466 = vmul.f32 %v458, %v465
      %vm467 = vcmp.eq.f32.partialorder %v458, inf
      %v468 = vsel %vm467, %v458, %v466
      %vm469 = vcmp.eq.f32.partialorder %v458, 0.0
      %v470 = vand.u32 %v458, 2147483648
      %v471 = vsel %vm469, %v470, %v468
      %v472 = vrsqrt.pop %v459
      %v473 = vmul.f32 %v472, %v459
      %v474 = vmul.f32 %v473, %v472
      %v475 = vmul.f32 0.5, %v474
      %v476 = vsub.f32 1.5, %v475
      %v477 = vmul.f32 %v472, %v476
      %v478 = vmul.f32 %v459, %v477
      %vm479 = vcmp.eq.f32.partialorder %v459, inf
      %v480 = vsel %vm479, %v459, %v478
      %vm481 = vcmp.eq.f32.partialorder %v459, 0.0
      %v482 = vand.u32 %v459, 2147483648
      %v483 = vsel %vm481, %v482, %v480
      %v484 = vrcp.pop %v407
      %v485 = vrcp.pop %v419
      %v486 = vmul.f32 %v471, %v484
      %v487 = vmul.f32 %v483, %v485
      %v488 = vstv %s363
      %v489 = vmul.f32 %v488, %v407
      %v490 = vmul.f32 %v488, %v419
      %v491 = vmax.f32 %v489, -0.9999999
      %v492 = vmax.f32 %v490, -0.9999999
      %v493 = vmin.f32 %v491, 0.9999999
      %v494 = vmin.f32 %v492, 0.9999999
      %v495 = vadd.f32 %v493, 1.0
      %v496 = vadd.f32 %v494, 1.0
      %v497 = vsub.f32 1.0, %v493
      %v498 = vsub.f32 1.0, %v494
      %v499 = vrcp.pop %v497
      %v500 = vmul.f32 %v497, %v499
      %v501 = vsub.f32 1.0, %v500
      %v502 = vmul.f32 %v499, %v501
      %v503 = vadd.f32 %v499, %v502
      %vm504 = vweird.f32 %v497
      %vm505 = vweird.f32 %v499
      %vm506 = vmor %vm504, %vm505
      %v507 = vsel %vm506, %v499, %v503
      %v508 = vand.u32 2147483647, %v497
      %vm509 = vcmp.eq.f32.partialorder %v508, 8.507059e+37
      %v510 = vand.u32 %v497, 2147483648
      %v511 = vor.u32 1.1754944e-38, %v510
      %v512 = vsel %vm509, %v511, %v507
      %v513 = vmul.f32 %v495, %v512
      %v514 = vrcp.pop %v498
      %v515 = vmul.f32 %v498, %v514
      %v516 = vsub.f32 1.0, %v515
      %v517 = vmul.f32 %v514, %v516
      %v518 = vadd.f32 %v514, %v517
      %vm519 = vweird.f32 %v498
      %vm520 = vweird.f32 %v514
      %vm521 = vmor %vm519, %vm520
      %v522 = vsel %vm521, %v514, %v518
      %v523 = vand.u32 2147483647, %v498
      %vm524 = vcmp.eq.f32.partialorder %v523, 8.507059e+37
      %v525 = vand.u32 %v498, 2147483648
      %v526 = vor.u32 1.1754944e-38, %v525
      %v527 = vsel %vm524, %v526, %v522
      %v528 = vmul.f32 %v496, %v527
      %v529 = vlog2.pop %v513
      %v530 = vmul.f32 %v529, 0.6931472
      %v531 = vlog2.pop %v528
      %v532 = vmul.f32 %v531, 0.6931472
      %v533 = vmul.f32 %v530, 0.5
      %v534 = vmul.f32 %v532, 0.5
      %v535 = vmul.f32 %v486, %v533
      %v536 = vmul.f32 %v487, %v534
      %v537 = vtanh.pop %v535
      %v538 = vtanh.pop %v536
      %v539 = vmul.f32 %v537, %v446
      %v540 = vmul.f32 %v538, %v448
      %v541 = vmul.f32 %v471, %v488
      %v542 = vmul.f32 %v483, %v488
      %v543 = vrcp.pop %v541
      %v544 = vrcp.pop %v542
      %v545 = vmul.f32 %v539, %v543
      %v546 = vmul.f32 %v540, %v544
      %vm547 = vcmp.le.f32.partialorder %v454, 1e-15
      %vm548 = vcmp.le.f32.partialorder %v457, 1e-15
      %v549 = vsel %vm547, 1, 0
      %v550 = vsel %vm548, 1, 0
      %vm551 = vcmp.eq.s32.totalorder %v549, 1
      %vm552 = vcmp.eq.s32.totalorder %v550, 1
      %v553 = vsel %vm551, 0.0, %v545
      %v554 = vsel %vm552, 0.0, %v546
      %v555 = vmul.f32 %v553, %v553
      %v556 = vmul.f32 %v554, %v554
      %v557 = vsel %vm387, %v555, 0.0
      %558 = vadd.xlane.f32.xlu0 %v557
      %v559 = vpop.xlane.xlu0 %558
      %v560 = vsel %vm387, %v556, 0.0
      %561 = vadd.xlane.f32.xlu0 %v560
      %v562 = vpop.xlane.xlu0 %561
      %v563 = vmax.f32 %v559, 1e-15
      %v564 = vmax.f32 %v562, 1e-15
      %v565 = vrsqrt.pop %v563
      %v566 = vmul.f32 %v565, %v563
      %v567 = vmul.f32 %v566, %v565
      %v568 = vmul.f32 0.5, %v567
      %v569 = vsub.f32 1.5, %v568
      %v570 = vmul.f32 %v565, %v569
      %v571 = vmul.f32 %v563, %v570
      %vm572 = vcmp.eq.f32.partialorder %v563, inf
      %v573 = vsel %vm572, %v563, %v571
      %vm574 = vcmp.eq.f32.partialorder %v563, 0.0
      %v575 = vand.u32 %v563, 2147483648
      %v576 = vsel %vm574, %v575, %v573
      %v577 = vrsqrt.pop %v564
      %v578 = vmul.f32 %v577, %v564
      %v579 = vmul.f32 %v578, %v577
      %v580 = vmul.f32 0.5, %v579
      %v581 = vsub.f32 1.5, %v580
      %v582 = vmul.f32 %v577, %v581
      %v583 = vmul.f32 %v564, %v582
      %vm584 = vcmp.eq.f32.partialorder %v564, inf
      %v585 = vsel %vm584, %v564, %v583
      %vm586 = vcmp.eq.f32.partialorder %v564, 0.0
      %v587 = vand.u32 %v564, 2147483648
      %v588 = vsel %vm586, %v587, %v585
      %v589 = vstv %s363
      %v590 = vrcp.pop %v589
      %v591 = vmul.f32 %v589, %v590
      %v592 = vsub.f32 1.0, %v591
      %v593 = vmul.f32 %v590, %v592
      %v594 = vadd.f32 %v590, %v593
      %vm595 = vweird.f32 %v589
      %vm596 = vweird.f32 %v590
      %vm597 = vmor %vm595, %vm596
      %v598 = vsel %vm597, %v590, %v594
      %v599 = vand.u32 2147483647, %v589
      %vm600 = vcmp.eq.f32.partialorder %v599, 8.507059e+37
      %v601 = vand.u32 %v589, 2147483648
      %v602 = vor.u32 1.1754944e-38, %v601
      %v603 = vsel %vm600, %v602, %v598
      %s604 = vtos %v603
      %s605 = smul.f32 0.996, %s604
      %v606 = vstv %s605
      %v607 = vrcp.pop %v576
      %v608 = vmul.f32 %v576, %v607
      %v609 = vsub.f32 1.0, %v608
      %v610 = vmul.f32 %v607, %v609
      %v611 = vadd.f32 %v607, %v610
      %vm612 = vweird.f32 %v576
      %vm613 = vweird.f32 %v607
      %vm614 = vmor %vm612, %vm613
      %v615 = vsel %vm614, %v607, %v611
      %v616 = vand.u32 2147483647, %v576
      %vm617 = vcmp.eq.f32.partialorder %v616, 8.507059e+37
      %v618 = vand.u32 %v576, 2147483648
      %v619 = vor.u32 1.1754944e-38, %v618
      %v620 = vsel %vm617, %v619, %v615
      %v621 = vmul.f32 %v606, %v620
      %v622 = vrcp.pop %v588
      %v623 = vmul.f32 %v588, %v622
      %v624 = vsub.f32 1.0, %v623
      %v625 = vmul.f32 %v622, %v624
      %v626 = vadd.f32 %v622, %v625
      %vm627 = vweird.f32 %v588
      %vm628 = vweird.f32 %v622
      %vm629 = vmor %vm627, %vm628
      %v630 = vsel %vm629, %v622, %v626
      %v631 = vand.u32 2147483647, %v588
      %vm632 = vcmp.eq.f32.partialorder %v631, 8.507059e+37
      %v633 = vand.u32 %v588, 2147483648
      %v634 = vor.u32 1.1754944e-38, %v633
      %v635 = vsel %vm632, %v634, %v630
      %v636 = vmul.f32 %v606, %v635
      %v637 = vmin.f32 %v621, 1.0
      %v638 = vmin.f32 %v636, 1.0
      %v639 = vmul.f32 %v553, %v637
      %v640 = vmul.f32 %v554, %v638
      %v641 = vmul.f32 %v639, %v639
      %v642 = vmul.f32 %v640, %v640
      %v643 = vsel %vm387, %v641, 0.0
      %644 = vadd.xlane.f32.xlu0 %v643
      %v645 = vpop.xlane.xlu0 %644
      %v646 = vsel %vm387, %v642, 0.0
      %647 = vadd.xlane.f32.xlu0 %v646
      %v648 = vpop.xlane.xlu0 %647
      %v649 = vmul.f32 %v382, %v382
      %vm650 = vcmask 253952
      %v651 = vsel %vm650, %v649, 0.0
      %652 = vadd.xlane.f32.xlu0 %v651
      %v653 = vpop.xlane.xlu0 %652
      %v655 = vperm.slane %v382, 0
      %v657 = vmul.f32 %v639, %v655
      %v658 = vmul.f32 %v640, %v655
      %v659 = vsel %vm387, %v657, 0.0
      %660 = vadd.xlane.f32.xlu0 %v659
      %v661 = vpop.xlane.xlu0 %660
      %v662 = vsel %vm387, %v658, 0.0
      %663 = vadd.xlane.f32.xlu0 %v662
      %v664 = vpop.xlane.xlu0 %663
      %s665 = smul.f32 %s348, 2.0
      %v666 = vstv %s665
      %v667 = vmul.f32 %v666, %v661
      %v668 = vmul.f32 %v666, %v664
      %v669 = vadd.f32 %v667, 1.0
      %v670 = vadd.f32 %v668, 1.0
      %v671 = vstv %s348
      %v672 = vmul.f32 %v671, %v653
      %v673 = vperm.slane %v672, 0
      %v674 = vadd.f32 %v669, %v673
      %v675 = vadd.f32 %v670, %v673
      %v676 = vmul.f32 %v674, %v639
      %v677 = vmul.f32 %v675, %v640
      %v678 = vmul.f32 %v671, %v645
      %v679 = vmul.f32 %v671, %v648
      %v680 = vsub.f32 1.0, %v678
      %v681 = vsub.f32 1.0, %v679
      %v682 = vmul.f32 %v680, %v655
      %v683 = vmul.f32 %v681, %v655
      %v684 = vadd.f32 %v676, %v682
      %v685 = vadd.f32 %v677, %v683
      %s686 = smul.f32 %s348, %s348
      %v687 = vstv %s686
      %v688 = vmul.f32 %v687, %v645
      %v689 = vmul.f32 %v687, %v648
      %v690 = vperm.slane %v653, 0
      %v691 = vmul.f32 %v688, %v690
      %v692 = vmul.f32 %v689, %v690
      %v693 = vadd.f32 %v669, %v691
      %v694 = vadd.f32 %v670, %v692
      %v695 = vmax.f32 %v693, 1e-15
      %v696 = vmax.f32 %v694, 1e-15
      %v697 = vrcp.pop %v695
      %v698 = vrcp.pop %v696
      %v699 = vmul.f32 %v684, %v697
      %v700 = vmul.f32 %v685, %v698
      %v701 = vmul.f32 %v699, %v699
      %v702 = vmul.f32 %v700, %v700
      %v703 = vsel %vm387, %v701, 0.0
      %704 = vadd.xlane.f32.xlu0 %v703
      %v705 = vpop.xlane.xlu0 %704
      %v706 = vsel %vm387, %v702, 0.0
      %707 = vadd.xlane.f32.xlu0 %v706
      %v708 = vpop.xlane.xlu0 %707
      %v709 = vmax.f32 %v705, 1e-15
      %v710 = vmax.f32 %v708, 1e-15
      %v711 = vrsqrt.pop %v709
      %v712 = vmul.f32 %v711, %v709
      %v713 = vmul.f32 %v712, %v711
      %v714 = vmul.f32 0.5, %v713
      %v715 = vsub.f32 1.5, %v714
      %v716 = vmul.f32 %v711, %v715
      %v717 = vmul.f32 %v709, %v716
      %vm718 = vcmp.eq.f32.partialorder %v709, inf
      %v719 = vsel %vm718, %v709, %v717
      %vm720 = vcmp.eq.f32.partialorder %v709, 0.0
      %v721 = vand.u32 %v709, 2147483648
      %v722 = vsel %vm720, %v721, %v719
      %v723 = vrsqrt.pop %v710
      %v724 = vmul.f32 %v723, %v710
      %v725 = vmul.f32 %v724, %v723
      %v726 = vmul.f32 0.5, %v725
      %v727 = vsub.f32 1.5, %v726
      %v728 = vmul.f32 %v723, %v727
      %v729 = vmul.f32 %v710, %v728
      %vm730 = vcmp.eq.f32.partialorder %v710, inf
      %v731 = vsel %vm730, %v710, %v729
      %vm732 = vcmp.eq.f32.partialorder %v710, 0.0
      %v733 = vand.u32 %v710, 2147483648
      %v734 = vsel %vm732, %v733, %v731
      %v735 = vrcp.pop %v722
      %v736 = vmul.f32 %v722, %v735
      %v737 = vsub.f32 1.0, %v736
      %v738 = vmul.f32 %v735, %v737
      %v739 = vadd.f32 %v735, %v738
      %vm740 = vweird.f32 %v722
      %vm741 = vweird.f32 %v735
      %vm742 = vmor %vm740, %vm741
      %v743 = vsel %vm742, %v735, %v739
      %v744 = vand.u32 2147483647, %v722
      %vm745 = vcmp.eq.f32.partialorder %v744, 8.507059e+37
      %v746 = vand.u32 %v722, 2147483648
      %v747 = vor.u32 1.1754944e-38, %v746
      %v748 = vsel %vm745, %v747, %v743
      %v749 = vmul.f32 %v606, %v748
      %v750 = vrcp.pop %v734
      %v751 = vmul.f32 %v734, %v750
      %v752 = vsub.f32 1.0, %v751
      %v753 = vmul.f32 %v750, %v752
      %v754 = vadd.f32 %v750, %v753
      %vm755 = vweird.f32 %v734
      %vm756 = vweird.f32 %v750
      %vm757 = vmor %vm755, %vm756
      %v758 = vsel %vm757, %v750, %v754
      %v759 = vand.u32 2147483647, %v734
      %vm760 = vcmp.eq.f32.partialorder %v759, 8.507059e+37
      %v761 = vand.u32 %v734, 2147483648
      %v762 = vor.u32 1.1754944e-38, %v761
      %v763 = vsel %vm760, %v762, %v758
      %v764 = vmul.f32 %v606, %v763
      %v765 = vmin.f32 %v749, 1.0
      %v766 = vmin.f32 %v764, 1.0
      %v767 = vmul.f32 %v699, %v765
      %v768 = vmul.f32 %v700, %v766
      %v769 = vmul.f32 %v767, %v767
      %v770 = vmul.f32 %v768, %v768
      %v771 = vsel %vm387, %v769, 0.0
      %772 = vadd.xlane.f32.xlu0 %v771
      %v773 = vpop.xlane.xlu0 %772
      %v774 = vsel %vm387, %v770, 0.0
      %775 = vadd.xlane.f32.xlu0 %v774
      %v776 = vpop.xlane.xlu0 %775
      %v777 = vmax.f32 %v773, 1e-15
      %v778 = vmax.f32 %v776, 1e-15
      %v779 = vrsqrt.pop %v777
      %v780 = vmul.f32 %v779, %v777
      %v781 = vmul.f32 %v780, %v779
      %v782 = vmul.f32 0.5, %v781
      %v783 = vsub.f32 1.5, %v782
      %v784 = vmul.f32 %v779, %v783
      %v785 = vmul.f32 %v777, %v784
      %vm786 = vcmp.eq.f32.partialorder %v777, inf
      %v787 = vsel %vm786, %v777, %v785
      %vm788 = vcmp.eq.f32.partialorder %v777, 0.0
      %v789 = vand.u32 %v777, 2147483648
      %v790 = vsel %vm788, %v789, %v787
      %v791 = vrsqrt.pop %v778
      %v792 = vmul.f32 %v791, %v778
      %v793 = vmul.f32 %v792, %v791
      %v794 = vmul.f32 0.5, %v793
      %v795 = vsub.f32 1.5, %v794
      %v796 = vmul.f32 %v791, %v795
      %v797 = vmul.f32 %v778, %v796
      %vm798 = vcmp.eq.f32.partialorder %v778, inf
      %v799 = vsel %vm798, %v778, %v797
      %vm800 = vcmp.eq.f32.partialorder %v778, 0.0
      %v801 = vand.u32 %v778, 2147483648
      %v802 = vsel %vm800, %v801, %v799
      %v803 = vmul.f32 %v488, %v790
      %v804 = vmul.f32 %v488, %v802
      %v805 = vmax.f32 %v803, -0.9999999
      %v806 = vmax.f32 %v804, -0.9999999
      %v807 = vmin.f32 %v805, 0.9999999
      %v808 = vmin.f32 %v806, 0.9999999
      %v809 = vadd.f32 %v807, 1.0
      %v810 = vadd.f32 %v808, 1.0
      %v811 = vsub.f32 1.0, %v807
      %v812 = vsub.f32 1.0, %v808
      %v813 = vrcp.pop %v811
      %v814 = vmul.f32 %v811, %v813
      %v815 = vsub.f32 1.0, %v814
      %v816 = vmul.f32 %v813, %v815
      %v817 = vadd.f32 %v813, %v816
      %vm818 = vweird.f32 %v811
      %vm819 = vweird.f32 %v813
      %vm820 = vmor %vm818, %vm819
      %v821 = vsel %vm820, %v813, %v817
      %v822 = vand.u32 2147483647, %v811
      %vm823 = vcmp.eq.f32.partialorder %v822, 8.507059e+37
      %v824 = vand.u32 %v811, 2147483648
      %v825 = vor.u32 1.1754944e-38, %v824
      %v826 = vsel %vm823, %v825, %v821
      %v827 = vmul.f32 %v809, %v826
      %v828 = vrcp.pop %v812
      %v829 = vmul.f32 %v812, %v828
      %v830 = vsub.f32 1.0, %v829
      %v831 = vmul.f32 %v828, %v830
      %v832 = vadd.f32 %v828, %v831
      %vm833 = vweird.f32 %v812
      %vm834 = vweird.f32 %v828
      %vm835 = vmor %vm833, %vm834
      %v836 = vsel %vm835, %v828, %v832
      %v837 = vand.u32 2147483647, %v812
      %vm838 = vcmp.eq.f32.partialorder %v837, 8.507059e+37
      %v839 = vand.u32 %v812, 2147483648
      %v840 = vor.u32 1.1754944e-38, %v839
      %v841 = vsel %vm838, %v840, %v836
      %v842 = vmul.f32 %v810, %v841
      %v843 = vlog2.pop %v827
      %v844 = vmul.f32 %v843, 0.6931472
      %v845 = vlog2.pop %v842
      %v846 = vmul.f32 %v845, 0.6931472
      %v847 = vmul.f32 %v844, 0.5
      %v848 = vmul.f32 %v846, 0.5
      %v849 = vmul.f32 %v847, %v767
      %v850 = vmul.f32 %v848, %v768
      %v851 = vrcp.pop %v803
      %v852 = vrcp.pop %v804
      %v853 = vmul.f32 %v849, %v851
      %v854 = vmul.f32 %v850, %v852
      %v855 = vld [vmem:[%s338] sm:$0xff]
      %v856 = vmul.f32 %v855, %v855
      %v857 = vsel %vm387, %v856, 0.0
      %858 = vadd.xlane.f32.xlu0 %v857
      %v859 = vpop.xlane.xlu0 %858
      %v860 = vmax.f32 %v859, 1e-15
      %v861 = vrsqrt.pop %v860
      %v862 = vmul.f32 %v861, %v860
      %v863 = vmul.f32 %v862, %v861
      %v864 = vmul.f32 0.5, %v863
      %v865 = vsub.f32 1.5, %v864
      %v866 = vmul.f32 %v861, %v865
      %v867 = vmul.f32 %v860, %v866
      %vm868 = vcmp.eq.f32.partialorder %v860, inf
      %v869 = vsel %vm868, %v860, %v867
      %vm870 = vcmp.eq.f32.partialorder %v860, 0.0
      %v871 = vand.u32 %v860, 2147483648
      %v872 = vsel %vm870, %v871, %v869
      %v873 = vpack.c.bf16 %v855, %v855
      %v875 = vsel %vm387, %v873, 0
      %877 = vmatpush.bf16.msra.mxu0 0
      %878 = vmatpush.bf16.msra.mxu0 0
      %879 = vmatpush.bf16.msra.mxu0 0
      %880 = vmatpush.bf16.msra.mxu0 0
      %881 = vmatpush.bf16.msra.mxu0 0
      %882 = vmatpush.bf16.msra.mxu0 0
      %883 = vmatpush.bf16.msra.mxu0 %v430
      %884 = vmatpush.bf16.msra.mxu0 %v429
      %885 = vmatmul.bf16.gmra.mxu0 %v875
      %v886 = vpop.f32.mrf.mxu0
      %v887 = vadd.f32 0.0, %v886
      %v888 = vpop.f32.mrf.mxu0
      %889 = vdwg.mxu0
      %v890 = vmul.f32 %v887, %v887
      %v891 = vsel %vm387, %v890, 0.0
      %892 = vadd.xlane.f32.xlu0 %v891
      %v893 = vpop.xlane.xlu0 %892
      %v894 = vmax.f32 %v893, 1e-15
      %v895 = vrsqrt.pop %v894
      %v896 = vmul.f32 %v895, %v894
      %v897 = vmul.f32 %v896, %v895
      %v898 = vmul.f32 0.5, %v897
      %v899 = vsub.f32 1.5, %v898
      %v900 = vmul.f32 %v895, %v899
      %v901 = vmul.f32 %v894, %v900
      %vm902 = vcmp.eq.f32.partialorder %v894, inf
      %v903 = vsel %vm902, %v894, %v901
      %vm904 = vcmp.eq.f32.partialorder %v894, 0.0
      %v905 = vand.u32 %v894, 2147483648
      %v906 = vsel %vm904, %v905, %v903
      %v907 = vrcp.pop %v872
      %v908 = vmul.f32 %v906, %v907
      %v909 = vmul.f32 %v488, %v872
      %v910 = vmax.f32 %v909, -0.9999999
      %v911 = vmin.f32 %v910, 0.9999999
      %v912 = vadd.f32 %v911, 1.0
      %v913 = vsub.f32 1.0, %v911
      %v914 = vrcp.pop %v913
      %v915 = vmul.f32 %v913, %v914
      %v916 = vsub.f32 1.0, %v915
      %v917 = vmul.f32 %v914, %v916
      %v918 = vadd.f32 %v914, %v917
      %vm919 = vweird.f32 %v913
      %vm920 = vweird.f32 %v914
      %vm921 = vmor %vm919, %vm920
      %v922 = vsel %vm921, %v914, %v918
      %v923 = vand.u32 2147483647, %v913
      %vm924 = vcmp.eq.f32.partialorder %v923, 8.507059e+37
      %v925 = vand.u32 %v913, 2147483648
      %v926 = vor.u32 1.1754944e-38, %v925
      %v927 = vsel %vm924, %v926, %v922
      %v928 = vmul.f32 %v912, %v927
      %v929 = vlog2.pop %v928
      %v930 = vmul.f32 %v929, 0.6931472
      %v931 = vmul.f32 %v930, 0.5
      %v932 = vmul.f32 %v908, %v931
      %v933 = vtanh.pop %v932
      %v934 = vmul.f32 %v933, %v887
      %v935 = vmul.f32 %v906, %v488
      %v936 = vrcp.pop %v935
      %v937 = vmul.f32 %v934, %v936
      %vm938 = vcmp.le.f32.partialorder %v893, 1e-15
      %v939 = vsel %vm938, 1, 0
      %vm940 = vcmp.eq.s32.totalorder %v939, 1
      %v941 = vsel %vm940, 0.0, %v937
      %v942 = vmul.f32 %v941, %v941
      %v943 = vsel %vm387, %v942, 0.0
      %944 = vadd.xlane.f32.xlu0 %v943
      %v945 = vpop.xlane.xlu0 %944
      %v946 = vmax.f32 %v945, 1e-15
      %v947 = vrsqrt.pop %v946
      %v948 = vmul.f32 %v947, %v946
      %v949 = vmul.f32 %v948, %v947
      %v950 = vmul.f32 0.5, %v949
      %v951 = vsub.f32 1.5, %v950
      %v952 = vmul.f32 %v947, %v951
      %v953 = vmul.f32 %v946, %v952
      %vm954 = vcmp.eq.f32.partialorder %v946, inf
      %v955 = vsel %vm954, %v946, %v953
      %vm956 = vcmp.eq.f32.partialorder %v946, 0.0
      %v957 = vand.u32 %v946, 2147483648
      %v958 = vsel %vm956, %v957, %v955
      %v959 = vrcp.pop %v958
      %v960 = vmul.f32 %v958, %v959
      %v961 = vsub.f32 1.0, %v960
      %v962 = vmul.f32 %v959, %v961
      %v963 = vadd.f32 %v959, %v962
      %vm964 = vweird.f32 %v958
      %vm965 = vweird.f32 %v959
      %vm966 = vmor %vm964, %vm965
      %v967 = vsel %vm966, %v959, %v963
      %v968 = vand.u32 2147483647, %v958
      %vm969 = vcmp.eq.f32.partialorder %v968, 8.507059e+37
      %v970 = vand.u32 %v958, 2147483648
      %v971 = vor.u32 1.1754944e-38, %v970
      %v972 = vsel %vm969, %v971, %v967
      %v973 = vmul.f32 %v606, %v972
      %v974 = vmin.f32 %v973, 1.0
      %v975 = vmul.f32 %v941, %v974
      %v976 = vmul.f32 %v975, %v975
      %v977 = vsel %vm387, %v976, 0.0
      %978 = vadd.xlane.f32.xlu0 %v977
      %v979 = vpop.xlane.xlu0 %978
      %v980 = vmul.f32 %v975, %v655
      %v981 = vsel %vm387, %v980, 0.0
      %982 = vadd.xlane.f32.xlu0 %v981
      %v983 = vpop.xlane.xlu0 %982
      %v984 = vmul.f32 %v666, %v983
      %v985 = vadd.f32 %v984, 1.0
      %v986 = vadd.f32 %v985, %v673
      %v987 = vmul.f32 %v986, %v975
      %v988 = vmul.f32 %v671, %v979
      %v989 = vsub.f32 1.0, %v988
      %v990 = vmul.f32 %v989, %v655
      %v991 = vadd.f32 %v987, %v990
      %v992 = vmul.f32 %v687, %v979
      %v993 = vmul.f32 %v992, %v690
      %v994 = vadd.f32 %v985, %v993
      %v995 = vmax.f32 %v994, 1e-15
      %v996 = vrcp.pop %v995
      %v997 = vmul.f32 %v991, %v996
      %v998 = vmul.f32 %v997, %v997
      %v999 = vsel %vm387, %v998, 0.0
      %1000 = vadd.xlane.f32.xlu0 %v999
      %v1001 = vpop.xlane.xlu0 %1000
      %v1002 = vmax.f32 %v1001, 1e-15
      %v1003 = vrsqrt.pop %v1002
      %v1004 = vmul.f32 %v1003, %v1002
      %v1005 = vmul.f32 %v1004, %v1003
      %v1006 = vmul.f32 0.5, %v1005
      %v1007 = vsub.f32 1.5, %v1006
      %v1008 = vmul.f32 %v1003, %v1007
      %v1009 = vmul.f32 %v1002, %v1008
      %vm1010 = vcmp.eq.f32.partialorder %v1002, inf
      %v1011 = vsel %vm1010, %v1002, %v1009
      %vm1012 = vcmp.eq.f32.partialorder %v1002, 0.0
      %v1013 = vand.u32 %v1002, 2147483648
      %v1014 = vsel %vm1012, %v1013, %v1011
      %v1015 = vrcp.pop %v1014
      %v1016 = vmul.f32 %v1014, %v1015
      %v1017 = vsub.f32 1.0, %v1016
      %v1018 = vmul.f32 %v1015, %v1017
      %v1019 = vadd.f32 %v1015, %v1018
      %vm1020 = vweird.f32 %v1014
      %vm1021 = vweird.f32 %v1015
      %vm1022 = vmor %vm1020, %vm1021
      %v1023 = vsel %vm1022, %v1015, %v1019
      %v1024 = vand.u32 2147483647, %v1014
      %vm1025 = vcmp.eq.f32.partialorder %v1024, 8.507059e+37
      %v1026 = vand.u32 %v1014, 2147483648
      %v1027 = vor.u32 1.1754944e-38, %v1026
      %v1028 = vsel %vm1025, %v1027, %v1023
      %v1029 = vmul.f32 %v606, %v1028
      %v1030 = vmin.f32 %v1029, 1.0
      %v1031 = vmul.f32 %v997, %v1030
      %v1032 = vmul.f32 %v1031, %v1031
      %v1033 = vsel %vm387, %v1032, 0.0
      %1034 = vadd.xlane.f32.xlu0 %v1033
      %v1035 = vpop.xlane.xlu0 %1034
      %v1036 = vmax.f32 %v1035, 1e-15
      %v1037 = vrsqrt.pop %v1036
      %v1038 = vmul.f32 %v1037, %v1036
      %v1039 = vmul.f32 %v1038, %v1037
      %v1040 = vmul.f32 0.5, %v1039
      %v1041 = vsub.f32 1.5, %v1040
      %v1042 = vmul.f32 %v1037, %v1041
      %v1043 = vmul.f32 %v1036, %v1042
      %vm1044 = vcmp.eq.f32.partialorder %v1036, inf
      %v1045 = vsel %vm1044, %v1036, %v1043
      %vm1046 = vcmp.eq.f32.partialorder %v1036, 0.0
      %v1047 = vand.u32 %v1036, 2147483648
      %v1048 = vsel %vm1046, %v1047, %v1045
      %v1049 = vmul.f32 %v488, %v1048
      %v1050 = vmax.f32 %v1049, -0.9999999
      %v1051 = vmin.f32 %v1050, 0.9999999
      %v1052 = vadd.f32 %v1051, 1.0
      %v1053 = vsub.f32 1.0, %v1051
      %v1054 = vrcp.pop %v1053
      %v1055 = vmul.f32 %v1053, %v1054
      %v1056 = vsub.f32 1.0, %v1055
      %v1057 = vmul.f32 %v1054, %v1056
      %v1058 = vadd.f32 %v1054, %v1057
      %vm1059 = vweird.f32 %v1053
      %vm1060 = vweird.f32 %v1054
      %vm1061 = vmor %vm1059, %vm1060
      %v1062 = vsel %vm1061, %v1054, %v1058
      %v1063 = vand.u32 2147483647, %v1053
      %vm1064 = vcmp.eq.f32.partialorder %v1063, 8.507059e+37
      %v1065 = vand.u32 %v1053, 2147483648
      %v1066 = vor.u32 1.1754944e-38, %v1065
      %v1067 = vsel %vm1064, %v1066, %v1062
      %v1068 = vmul.f32 %v1052, %v1067
      %v1069 = vlog2.pop %v1068
      %v1070 = vmul.f32 %v1069, 0.6931472
      %v1071 = vmul.f32 %v1070, 0.5
      %v1072 = vmul.f32 %v1071, %v1031
      %v1073 = vrcp.pop %v1049
      %v1074 = vmul.f32 %v1072, %v1073
      %v1075 = vld [vmem:[%s4] sm:$0x1]
      %v1077 = vperm.slane %v1075, 0
      %v1079 = vmul.f32 %v1074, %v1077
      %v1080 = vsel %vm387, %v1079, 0.0
      %1081 = vadd.xlane.f32.xlu0 %v1080
      %v1082 = vpop.xlane.xlu0 %1081
      %v1083 = vld [vmem:[%s5] sm:$0x1]
      %v1085 = vsel %vm387, %v1083, 0
      %v1088 = vsel %vm387, %v853, 0
      %v1091 = vsel %vm387, %v854, 0
      %1093 = vmatpush.xpose.msra.mxu0 0.0
      %1094 = vmatpush.xpose.msra.mxu0 0.0
      %1095 = vmatpush.xpose.msra.mxu0 0.0
      %1096 = vmatpush.xpose.msra.mxu0 0.0
      %1097 = vmatpush.xpose.msra.mxu0 0.0
      %1098 = vmatpush.xpose.msra.mxu0 0.0
      %1099 = vmatpush.xpose.msra.mxu0 0.0
      %1100 = vmatpush.xpose.msra.mxu0 0.0
      %1101 = vmatpush.xpose.msra.mxu0 0.0
      %1102 = vmatpush.xpose.msra.mxu0 0.0
      %1103 = vmatpush.xpose.msra.mxu0 0.0
      %1104 = vmatpush.xpose.msra.mxu0 0.0
      %1105 = vmatpush.xpose.msra.mxu0 0.0
      %1106 = vmatpush.xpose.msra.mxu0 0.0
      %1107 = vmatpush.xpose.msra.mxu0 %v1091
      %1108 = vmatpush.xpose.msra.mxu0 %v1088
      %1109 = vmatmul.f32.gmra.mxu0 %v1085
      %v1110 = vpop.f32.mrf.mxu0
      %v1111 = vadd.f32 0.0, %v1110
      %1112 = vdwg.mxu0
      %v1113 = vperm.slane %v1111, 0
      %v1114 = vadd.f32 %v1082, %v1113
      %vm1115 = vcmp.gt.f32.partialorder %v1114, 0.0
      %v1116 = vmul.f32 %v1114, 0.2
      %v1117 = vsel %vm1115, %v1114, %v1116
      %v1118 = vld [vmem:[%s342] sm:$0xff]
      %vm1119 = vcmp.gt.f32.partialorder %v1118, 0.0
      %v1120 = vsel %vm1119, %v1117, -1e+09
      %vm1121 = vcmask 130048
      %v1122 = vsel %vm1121, %v1120, -inf
      %1123 = vmax.xlane.f32.xlu0 %v1122
      %v1124 = vpop.xlane.xlu0 %1123
      %v1125 = vsub.f32 %v1120, %v1124
      %v1126 = vmul.f32 %v1125, 1.442695
      %v1127 = vpow.pop %v1126
      %v1128 = vsel %vm1119, %v1127, 0.0
      %v1129 = vsel %vm1121, %v1128, 0.0
      %1130 = vadd.xlane.f32.xlu0 %v1129
      %v1131 = vpop.xlane.xlu0 %1130
      %v1132 = vmax.f32 %v1131, 1e-15
      %v1133 = vrcp.pop %v1132
      %v1134 = vmul.f32 %v1128, %v1133
      %v1135 = vpack.c.bf16 %v1134, %v1134
      %v1136 = vpack.c.bf16 %v854, %v853
      %v1138 = vsel %vm1121, %v1135, 0
      %1140 = vmatpush.bf16.msra.mxu0 0
      %1141 = vmatpush.bf16.msra.mxu0 0
      %1142 = vmatpush.bf16.msra.mxu0 0
      %1143 = vmatpush.bf16.msra.mxu0 0
      %1144 = vmatpush.bf16.msra.mxu0 0
      %1145 = vmatpush.bf16.msra.mxu0 0
      %1146 = vmatpush.bf16.msra.mxu0 0
      %1147 = vmatpush.bf16.msra.mxu0 %v1136
      %1148 = vmatmul.bf16.gmra.mxu0 %v1138
      %v1149 = vpop.f32.mrf.mxu0
      %v1150 = vadd.f32 0.0, %v1149
      %v1151 = vpop.f32.mrf.mxu0
      %1152 = vdwg.mxu0
      %v1153 = vstv %s363
      %v1154 = vrcp.pop %v1153
      %v1155 = vmul.f32 %v1153, %v1154
      %v1156 = vsub.f32 1.0, %v1155
      %v1157 = vmul.f32 %v1154, %v1156
      %v1158 = vadd.f32 %v1154, %v1157
      %vm1159 = vweird.f32 %v1153
      %vm1160 = vweird.f32 %v1154
      %vm1161 = vmor %vm1159, %vm1160
      %v1162 = vsel %vm1161, %v1154, %v1158
      %v1163 = vand.u32 2147483647, %v1153
      %vm1164 = vcmp.eq.f32.partialorder %v1163, 8.507059e+37
      %v1165 = vand.u32 %v1153, 2147483648
      %v1166 = vor.u32 1.1754944e-38, %v1165
      %v1167 = vsel %vm1164, %v1166, %v1162
      %s1168 = vtos %v1167
      %s1169 = smul.f32 3.106303, %s1168
      %v1170 = vmul.f32 %v1150, %v1150
      %v1171 = vsel %vm387, %v1170, 0.0
      %1172 = vadd.xlane.f32.xlu0 %v1171
      %v1173 = vpop.xlane.xlu0 %1172
      %v1174 = vmax.f32 %v1173, 1e-15
      %v1175 = vrsqrt.pop %v1174
      %v1176 = vmul.f32 %v1175, %v1174
      %v1177 = vmul.f32 %v1176, %v1175
      %v1178 = vmul.f32 0.5, %v1177
      %v1179 = vsub.f32 1.5, %v1178
      %v1180 = vmul.f32 %v1175, %v1179
      %v1181 = vmul.f32 %v1174, %v1180
      %vm1182 = vcmp.eq.f32.partialorder %v1174, inf
      %v1183 = vsel %vm1182, %v1174, %v1181
      %vm1184 = vcmp.eq.f32.partialorder %v1174, 0.0
      %v1185 = vand.u32 %v1174, 2147483648
      %v1186 = vsel %vm1184, %v1185, %v1183
      %v1187 = vstv %s1169
      %v1188 = vrcp.pop %v1186
      %v1189 = vmul.f32 %v1186, %v1188
      %v1190 = vsub.f32 1.0, %v1189
      %v1191 = vmul.f32 %v1188, %v1190
      %v1192 = vadd.f32 %v1188, %v1191
      %vm1193 = vweird.f32 %v1186
      %vm1194 = vweird.f32 %v1188
      %vm1195 = vmor %vm1193, %vm1194
      %v1196 = vsel %vm1195, %v1188, %v1192
      %v1197 = vand.u32 2147483647, %v1186
      %vm1198 = vcmp.eq.f32.partialorder %v1197, 8.507059e+37
      %v1199 = vand.u32 %v1186, 2147483648
      %v1200 = vor.u32 1.1754944e-38, %v1199
      %v1201 = vsel %vm1198, %v1200, %v1196
      %v1202 = vmul.f32 %v1187, %v1201
      %v1203 = vmin.f32 %v1202, 1.0
      %v1204 = vmul.f32 %v1150, %v1203
      %v1205 = vmax.f32 %v1204, 0.0
      %v1206 = vmul.f32 %v1205, %v1205
      %v1207 = vsel %vm387, %v1206, 0.0
      %1208 = vadd.xlane.f32.xlu0 %v1207
      %v1209 = vpop.xlane.xlu0 %1208
      %v1210 = vmax.f32 %v1209, 1e-15
      %v1211 = vrsqrt.pop %v1210
      %v1212 = vmul.f32 %v1211, %v1210
      %v1213 = vmul.f32 %v1212, %v1211
      %v1214 = vmul.f32 0.5, %v1213
      %v1215 = vsub.f32 1.5, %v1214
      %v1216 = vmul.f32 %v1211, %v1215
      %v1217 = vmul.f32 %v1210, %v1216
      %vm1218 = vcmp.eq.f32.partialorder %v1210, inf
      %v1219 = vsel %vm1218, %v1210, %v1217
      %vm1220 = vcmp.eq.f32.partialorder %v1210, 0.0
      %v1221 = vand.u32 %v1210, 2147483648
      %v1222 = vsel %vm1220, %v1221, %v1219
      %v1223 = vstv %s377
      %v1224 = vmul.f32 %v1223, %v1222
      %v1225 = vtanh.pop %v1224
      %v1226 = vmul.f32 %v1225, %v1205
      %v1227 = vrcp.pop %v1224
      %v1228 = vmul.f32 %v1226, %v1227
      %v1229 = vmul.f32 %v1228, %v1228
      %v1230 = vsel %vm387, %v1229, 0.0
      %1231 = vadd.xlane.f32.xlu0 %v1230
      %v1232 = vpop.xlane.xlu0 %1231
      %v1233 = vmax.f32 %v1232, 1e-15
      %v1234 = vrsqrt.pop %v1233
      %v1235 = vmul.f32 %v1234, %v1233
      %v1236 = vmul.f32 %v1235, %v1234
      %v1237 = vmul.f32 0.5, %v1236
      %v1238 = vsub.f32 1.5, %v1237
      %v1239 = vmul.f32 %v1234, %v1238
      %v1240 = vmul.f32 %v1233, %v1239
      %vm1241 = vcmp.eq.f32.partialorder %v1233, inf
      %v1242 = vsel %vm1241, %v1233, %v1240
      %vm1243 = vcmp.eq.f32.partialorder %v1233, 0.0
      %v1244 = vand.u32 %v1233, 2147483648
      %v1245 = vsel %vm1243, %v1244, %v1242
      %v1246 = vstv %s377
      %v1247 = vrcp.pop %v1246
      %v1248 = vmul.f32 %v1246, %v1247
      %v1249 = vsub.f32 1.0, %v1248
      %v1250 = vmul.f32 %v1247, %v1249
      %v1251 = vadd.f32 %v1247, %v1250
      %vm1252 = vweird.f32 %v1246
      %vm1253 = vweird.f32 %v1247
      %vm1254 = vmor %vm1252, %vm1253
      %v1255 = vsel %vm1254, %v1247, %v1251
      %v1256 = vand.u32 2147483647, %v1246
      %vm1257 = vcmp.eq.f32.partialorder %v1256, 8.507059e+37
      %v1258 = vand.u32 %v1246, 2147483648
      %v1259 = vor.u32 1.1754944e-38, %v1258
      %v1260 = vsel %vm1257, %v1259, %v1255
      %s1261 = vtos %v1260
      %s1262 = smul.f32 0.996, %s1261
      %v1263 = vstv %s1262
      %v1264 = vrcp.pop %v1245
      %v1265 = vmul.f32 %v1245, %v1264
      %v1266 = vsub.f32 1.0, %v1265
      %v1267 = vmul.f32 %v1264, %v1266
      %v1268 = vadd.f32 %v1264, %v1267
      %vm1269 = vweird.f32 %v1245
      %vm1270 = vweird.f32 %v1264
      %vm1271 = vmor %vm1269, %vm1270
      %v1272 = vsel %vm1271, %v1264, %v1268
      %v1273 = vand.u32 2147483647, %v1245
      %vm1274 = vcmp.eq.f32.partialorder %v1273, 8.507059e+37
      %v1275 = vand.u32 %v1245, 2147483648
      %v1276 = vor.u32 1.1754944e-38, %v1275
      %v1277 = vsel %vm1274, %v1276, %v1272
      %v1278 = vmul.f32 %v1263, %v1277
      %v1279 = vmin.f32 %v1278, 1.0
      %v1280 = vmul.f32 %v1228, %v1279
      %1281 = vst.msk [vmem:[%s346] sm:$0xff] %vm387, %v1280
      %p1282 = scmp.lt.s32.totalorder %s22, 1
      %s1283 = scalar_select %p1282, %s22, 1
      %s1284 = smul.addr %s1283, 8
      %s1285 = scalar_lea.vmem %s9, %s1284
      // Predicated region
      $region57: #{hgat_model_forward.3} parent=55 // pred_check
        %p1286 = pneg %p239
      $region58: #{hgat_model_forward.3} parent=55 // pred_check_branch
        %1288 = sbr.rel (%p1286) target = $region60
      $region59: #{hgat_model_forward.3} parent=55 // pred_region
        _
      $region60: #{hgat_model_forward.3} parent=55 // pred_fallthru
        _
    $region56: #{hgat_model_forward.3} parent=5 // pred_fallthru
      _
    %p1289 = scmp.le.s32.totalorder 2, %s17
    // Predicated region
    $region61: #{hgat_model_forward.3} parent=5 // pred_check
      %p1290 = pneg %p1289
    $region62: #{hgat_model_forward.3} parent=5 // pred_check_branch
      %1292 = sbr.rel (%p1290) target = $region64
    $region63: #{hgat_model_forward.3} parent=5 // pred_region
      %s1293 = ssub.s32 %s17, 2
      // Predicated region
      $region65: #{hgat_model_forward.3} parent=63 // pred_check
        %p1294 = pneg %p245
      $region66: #{hgat_model_forward.3} parent=63 // pred_check_branch
        %1296 = sbr.rel (%p1294) target = $region68
      $region67: #{hgat_model_forward.3} parent=63 // pred_region
        %p1297 = scmp.lt.s32.totalorder %s23, 1
        %s1298 = scalar_select %p1297, %s23, 1
        %s1299 = smul.addr %s1298, 8
        %s1300 = scalar_lea.vmem %s9, %s1299
      $region68: #{hgat_model_forward.3} parent=63 // pred_fallthru
        _
    $region64: #{hgat_model_forward.3} parent=5 // pred_fallthru
      _
  $region6: #{hgat_model_forward.3} parent=0 // loop_footer
    %s21 = sadd.s32 1, %s17
  $region7: #{hgat_model_forward.3} parent=0 // loop_footer_branch
    %16 = sbr.rel target = $region3
  $region8: #{hgat_model_forward.3} parent=0 // loop_exit
    _

</llo_original>
